<compile_context>
chip_gen: v7x
topology: tpu7x:2x2x1
jax: 0.10.0
libtpu: 0.0.40
codegen_flags: <defaults>
</compile_context>

<pallas_src>
import jax
import jax.numpy as jnp
from jax.experimental import pallas as pl
from jax.experimental.pallas import tpu as pltpu


def _round_up(x, m):
    return (x + m - 1) // m * m


# ---------------------------------------------------------------------------
# q_shift (glue, plain JAX) -- channels-last, pad/slice only (no transposes).
# Matches the vrwkv.py q_shift reference exactly.
# ---------------------------------------------------------------------------
def q_shift(x, shift_pixel, gamma, patch_resolution):
    B, N, C = x.shape
    H, W = patch_resolution
    assert N == H * W
    s = shift_pixel
    g = int(C * gamma)
    xi = x.reshape(B, H, W, C)

    def pad_w(a, lo, hi):
        return jnp.pad(a, ((0, 0), (0, 0), (lo, hi), (0, 0)))

    def pad_h(a, lo, hi):
        return jnp.pad(a, ((0, 0), (lo, hi), (0, 0), (0, 0)))

    parts = [
        pad_w(xi[:, :, : W - s, 0 * g:1 * g], s, 0),   # out[..., s:, 0:g]   = in[..., :W-s, 0:g]
        pad_w(xi[:, :, s:, 1 * g:2 * g], 0, s),        # out[..., :W-s, g:2g] = in[..., s:, g:2g]
        pad_h(xi[:, : H - s, :, 2 * g:3 * g], s, 0),   # out[:, s:, :, 2g:3g] = in[:, :H-s, :, 2g:3g]
        pad_h(xi[:, s:, :, 3 * g:4 * g], 0, s),        # out[:, :H-s, :, 3g:4g] = in[:, s:, :, 3g:4g]
        xi[:, :, :, 4 * g:],                           # untouched channels
    ]
    return jnp.concatenate(parts, axis=-1).reshape(B, N, C)


# ---------------------------------------------------------------------------
# Pallas kernel: mixing + key/receptance/value matmuls + activations.
# Weights are bf16 and fully resident; f32 accumulation on the MXU.
# ---------------------------------------------------------------------------
def channel_mix_kernel(x_ref, xx_ref, mk_ref, mr_ref, wk_ref, wr_ref, wv_ref,
                       o_ref):
    x = x_ref[...].astype(jnp.float32)       # (tm, Cp)
    xx = xx_ref[...].astype(jnp.float32)     # (tm, Cp)
    mk = mk_ref[...].astype(jnp.float32)     # (1, Cp) -- broadcasts over tokens
    mr = mr_ref[...].astype(jnp.float32)

    d = x - xx                               # shared term for both mixes
    xk = (xx + d * mk).astype(jnp.bfloat16)
    xr = (xx + d * mr).astype(jnp.bfloat16)

    # key -> relu^2   (bf16 MXU operands, f32 accumulate)
    k = jnp.dot(xk, wk_ref[...], preferred_element_type=jnp.float32)
    k = jnp.square(jnp.maximum(k, 0.0))
    # TODO(synk): key_norm (LayerNorm on hidden) not instantiated (key_norm=False).

    # value
    kv = jnp.dot(k.astype(jnp.bfloat16), wv_ref[...],
                 preferred_element_type=jnp.float32)

    # receptance gate
    r = jax.nn.sigmoid(jnp.dot(xr, wr_ref[...],
                               preferred_element_type=jnp.float32))

    o_ref[...] = (r * kv).astype(o_ref.dtype)


def vrwkv_channel_mix(x, xx, mix_k, mix_r, w_key, w_recep, w_value, *, tm=256):
    """x, xx: [B, N, C]; mix_*: [C]; w_key: [C, Hh]; w_recep: [C, C]; w_value: [Hh, C]."""
    B, N, C = x.shape
    Hh = w_key.shape[1]
    M = B * N

    # Pad channel dims to lane multiples (128) and tokens to the tile size.
    Cp = _round_up(C, 128)
    Hp = _round_up(Hh, 128)
    tm = min(tm, _round_up(M, 8))
    Mp = _round_up(M, tm)

    def pad2(a, rows, cols):
        return jnp.pad(a, ((0, rows - a.shape[0]), (0, cols - a.shape[1])))

    x2 = pad2(x.reshape(M, C), Mp, Cp)
    xx2 = pad2(xx.reshape(M, C), Mp, Cp)
    mk2 = pad2(mix_k.reshape(1, C), 1, Cp)
    mr2 = pad2(mix_r.reshape(1, C), 1, Cp)
    wk = pad2(w_key, Cp, Hp).astype(jnp.bfloat16)
    wr = pad2(w_recep, Cp, Cp).astype(jnp.bfloat16)
    wv = pad2(w_value, Hp, Cp).astype(jnp.bfloat16)

    itemsize = x2.dtype.itemsize
    cost = pl.CostEstimate(
        flops=2 * Mp * (Cp * Hp + Hp * Cp + Cp * Cp),
        transcendentals=Mp * Cp,                               # sigmoid gate
        bytes_accessed=3 * Mp * Cp * itemsize                  # x, xx, out streams
        + 2 * (Cp * Hp + Cp * Cp + Hp * Cp),                   # bf16 weights
    )

    def build(single_buffer_weights):
        if single_buffer_weights:
            # Constant block index across the grid -> one VMEM buffer is enough.
            def wspec(shape):
                return pl.BlockSpec(shape, lambda i: (0, 0),
                                    pipeline_mode=pl.Buffered(1))
        else:
            def wspec(shape):
                return pl.BlockSpec(shape, lambda i: (0, 0))

        return pl.pallas_call(
            channel_mix_kernel,
            out_shape=jax.ShapeDtypeStruct((Mp, Cp), x.dtype),
            grid_spec=pltpu.PrefetchScalarGridSpec(
                num_scalar_prefetch=0,
                grid=(Mp // tm,),
                in_specs=[
                    pl.BlockSpec((tm, Cp), lambda i: (i, 0)),   # x tile
                    pl.BlockSpec((tm, Cp), lambda i: (i, 0)),   # xx tile
                    pl.BlockSpec((1, Cp), lambda i: (0, 0)),    # mix_k
                    pl.BlockSpec((1, Cp), lambda i: (0, 0)),    # mix_r
                    wspec((Cp, Hp)),                            # W_key (bf16)
                    wspec((Cp, Cp)),                            # W_receptance (bf16)
                    wspec((Hp, Cp)),                            # W_value (bf16)
                ],
                out_specs=pl.BlockSpec((tm, Cp), lambda i: (i, 0)),
            ),
            compiler_params=pltpu.CompilerParams(
                dimension_semantics=("parallel",),
                vmem_limit_bytes=48 * 1024 * 1024),
            cost_estimate=cost,
        )

    args = (x2, xx2, mk2, mr2, wk, wr, wv)
    try:
        out = build(True)(*args)
    except Exception:  # pragma: no cover - Pallas build w/o pipeline_mode support
        out = build(False)(*args)

    return out[:M, :C].reshape(B, N, C)


# ---------------------------------------------------------------------------
# Parameter construction (deterministic, matching __init__ shapes).
# ---------------------------------------------------------------------------
def make_params(key, n_embd, n_layer, layer_id, hidden_rate=4):
    hidden_sz = hidden_rate * n_embd
    # 'fancy' init of spatial_mix_k / spatial_mix_r
    ratio_1_to_almost0 = 1.0 - layer_id / n_layer
    idx = jnp.arange(n_embd, dtype=jnp.float32) / n_embd
    spatial_mix_k = jnp.power(idx, ratio_1_to_almost0)
    spatial_mix_r = jnp.power(idx, ratio_1_to_almost0)

    k1, k2, k3 = jax.random.split(key, 3)

    # nn.Linear-style uniform init, stored pre-transposed as [in, out].
    def lin(k, fan_in, fan_out):
        bound = 1.0 / jnp.sqrt(fan_in)
        return jax.random.uniform(k, (fan_in, fan_out), jnp.float32, -bound, bound)

    w_key = lin(k1, n_embd, hidden_sz)       # key:        n_embd -> hidden
    w_recep = lin(k2, n_embd, n_embd)        # receptance: n_embd -> n_embd
    w_value = lin(k3, hidden_sz, n_embd)     # value:      hidden -> n_embd
    return spatial_mix_k, spatial_mix_r, w_key, w_recep, w_value


# ---------------------------------------------------------------------------
# Pure-JAX references for verification.
# ---------------------------------------------------------------------------
def reference_f32(x, xx, mix_k, mix_r, w_key, w_recep, w_value):
    xk = x * mix_k + xx * (1.0 - mix_k)
    xr = x * mix_r + xx * (1.0 - mix_r)
    k = jnp.square(jax.nn.relu(xk @ w_key))
    kv = k @ w_value
    return jax.nn.sigmoid(xr @ w_recep) * kv


def reference_bf16(x, xx, mix_k, mix_r, w_key, w_recep, w_value):
    # Mirrors the kernel's precision choices (bf16 MXU operands, f32 accumulate).
    bf = jnp.bfloat16
    xk = (x * mix_k + xx * (1.0 - mix_k)).astype(bf)
    xr = (x * mix_r + xx * (1.0 - mix_r)).astype(bf)
    k = jnp.dot(xk, w_key.astype(bf), preferred_element_type=jnp.float32)
    k = jnp.square(jax.nn.relu(k)).astype(bf)
    kv = jnp.dot(k, w_value.astype(bf), preferred_element_type=jnp.float32)
    r = jax.nn.sigmoid(jnp.dot(xr, w_recep.astype(bf),
                               preferred_element_type=jnp.float32))
    return r * kv


if __name__ == "__main__":
    # Small shapes: n_embd=32 (hidden=128), 16x16 patch grid -> N=256, batch=2.
    B, H, W, C = 2, 16, 16, 32
    n_layer, layer_id = 12, 3
    channel_gamma, shift_pixel = 1.0 / 4, 1
    N = H * W

    key = jax.random.PRNGKey(0)
    kx, kp = jax.random.split(key)
    x = jax.random.normal(kx, (B, N, C), jnp.float32)

    mix_k, mix_r, w_key, w_recep, w_value = make_params(
        kp, C, n_layer, layer_id, hidden_rate=4)

    xx = q_shift(x, shift_pixel, channel_gamma, (H, W))

    out = vrwkv_channel_mix(x, xx, mix_k, mix_r, w_key, w_recep, w_value, tm=256)
    out = jax.block_until_ready(out)
    assert out.shape == (B, N, C)

    ref_bf = reference_bf16(x, xx, mix_k, mix_r, w_key, w_recep, w_value)
    ref_f32 = reference_f32(x, xx, mix_k, mix_r, w_key, w_recep, w_value)
    assert jnp.allclose(out, ref_bf, atol=1e-2, rtol=1e-2), \
        "mismatch vs bf16-matched reference"
    assert jnp.allclose(out, ref_f32, atol=5e-2, rtol=5e-2), \
        "mismatch vs f32 reference"

    print("KERNEL_OK")
</pallas_src>

<mosaic_0001>
module attributes {stable_mosaic.version = 11 : i64} {
  func.func @channel_mix_kernel(%arg0: i32, %arg1: memref<256x128xf32, #tpu.memory_space<vmem>>, %arg2: memref<256x128xf32, #tpu.memory_space<vmem>>, %arg3: memref<1x128xf32, #tpu.memory_space<vmem>>, %arg4: memref<1x128xf32, #tpu.memory_space<vmem>>, %arg5: memref<128x128xbf16, #tpu.memory_space<vmem>>, %arg6: memref<128x128xbf16, #tpu.memory_space<vmem>>, %arg7: memref<128x128xbf16, #tpu.memory_space<vmem>>, %arg8: memref<256x128xf32, #tpu.memory_space<vmem>>) attributes {dimension_semantics = [#tpu.dimension_semantics<parallel>], iteration_bounds = array<i64: 2>, scalar_prefetch = 0 : i64, scratch_operands = 0 : i64, tpu.core_type = #tpu.core_type<tc>, window_params = [{transform_indices = @transform_0, window_bounds = array<i64: 256, 128>}, {transform_indices = @transform_1, window_bounds = array<i64: 256, 128>}, {pipeline_mode = #tpu.pipeline_mode<synchronous>, transform_indices = @transform_2, window_bounds = array<i64: 1, 128>}, {pipeline_mode = #tpu.pipeline_mode<synchronous>, transform_indices = @transform_3, window_bounds = array<i64: 1, 128>}, {pipeline_mode = #tpu.pipeline_mode<synchronous>, transform_indices = @transform_4, window_bounds = array<i64: 128, 128>}, {pipeline_mode = #tpu.pipeline_mode<synchronous>, transform_indices = @transform_5, window_bounds = array<i64: 128, 128>}, {pipeline_mode = #tpu.pipeline_mode<synchronous>, transform_indices = @transform_6, window_bounds = array<i64: 128, 128>}, {transform_indices = @transform_7, window_bounds = array<i64: 256, 128>}]} {
    %c0 = arith.constant 0 : index
    %c0_0 = arith.constant 0 : index
    %0 = vector.load %arg1[%c0, %c0_0] : memref<256x128xf32, #tpu.memory_space<vmem>>, vector<256x128xf32>
    %c0_1 = arith.constant 0 : index
    %c0_2 = arith.constant 0 : index
    %1 = vector.load %arg2[%c0_1, %c0_2] : memref<256x128xf32, #tpu.memory_space<vmem>>, vector<256x128xf32>
    %c0_3 = arith.constant 0 : index
    %c0_4 = arith.constant 0 : index
    %2 = vector.load %arg3[%c0_3, %c0_4] : memref<1x128xf32, #tpu.memory_space<vmem>>, vector<1x128xf32>
    %c0_5 = arith.constant 0 : index
    %c0_6 = arith.constant 0 : index
    %3 = vector.load %arg4[%c0_5, %c0_6] : memref<1x128xf32, #tpu.memory_space<vmem>>, vector<1x128xf32>
    %4 = arith.subf %0, %1 : vector<256x128xf32>
    %5 = vector.broadcast %2 : vector<1x128xf32> to vector<256x128xf32>
    %6 = arith.mulf %4, %5 : vector<256x128xf32>
    %7 = arith.addf %1, %6 : vector<256x128xf32>
    %8 = arith.truncf %7 : vector<256x128xf32> to vector<256x128xbf16>
    %9 = vector.broadcast %3 : vector<1x128xf32> to vector<256x128xf32>
    %10 = arith.mulf %4, %9 : vector<256x128xf32>
    %11 = arith.addf %1, %10 : vector<256x128xf32>
    %12 = arith.truncf %11 : vector<256x128xf32> to vector<256x128xbf16>
    %c0_7 = arith.constant 0 : index
    %c0_8 = arith.constant 0 : index
    %13 = vector.load %arg5[%c0_7, %c0_8] : memref<128x128xbf16, #tpu.memory_space<vmem>>, vector<128x128xbf16>
    %cst = arith.constant dense<0.000000e+00> : vector<256x128xf32>
    %14 = tpu.matmul %8, %13, %cst {dimension_numbers = #tpu.dot_dimension_numbers<[1], [0], [0], [1], [0, 0, 1, 1], [], []>} : vector<256x128xbf16>, vector<128x128xbf16>, vector<256x128xf32> -> vector<256x128xf32>
    %cst_9 = arith.constant 0.000000e+00 : f32
    %15 = vector.broadcast %cst_9 : f32 to vector<256x128xf32>
    %16 = arith.maximumf %14, %15 : vector<256x128xf32>
    %17 = arith.mulf %16, %16 : vector<256x128xf32>
    %18 = arith.truncf %17 : vector<256x128xf32> to vector<256x128xbf16>
    %c0_10 = arith.constant 0 : index
    %c0_11 = arith.constant 0 : index
    %19 = vector.load %arg7[%c0_10, %c0_11] : memref<128x128xbf16, #tpu.memory_space<vmem>>, vector<128x128xbf16>
    %cst_12 = arith.constant dense<0.000000e+00> : vector<256x128xf32>
    %20 = tpu.matmul %18, %19, %cst_12 {dimension_numbers = #tpu.dot_dimension_numbers<[1], [0], [0], [1], [0, 0, 1, 1], [], []>} : vector<256x128xbf16>, vector<128x128xbf16>, vector<256x128xf32> -> vector<256x128xf32>
    %c0_13 = arith.constant 0 : index
    %c0_14 = arith.constant 0 : index
    %21 = vector.load %arg6[%c0_13, %c0_14] : memref<128x128xbf16, #tpu.memory_space<vmem>>, vector<128x128xbf16>
    %cst_15 = arith.constant dense<0.000000e+00> : vector<256x128xf32>
    %22 = tpu.matmul %12, %21, %cst_15 {dimension_numbers = #tpu.dot_dimension_numbers<[1], [0], [0], [1], [0, 0, 1, 1], [], []>} : vector<256x128xbf16>, vector<128x128xbf16>, vector<256x128xf32> -> vector<256x128xf32>
    %23 = arith.negf %22 : vector<256x128xf32>
    %24 = math.exp %23 : vector<256x128xf32>
    %cst_16 = arith.constant 1.000000e+00 : f32
    %25 = vector.broadcast %cst_16 : f32 to vector<256x128xf32>
    %26 = arith.addf %25, %24 : vector<256x128xf32>
    %27 = arith.divf %25, %26 : vector<256x128xf32>
    %28 = arith.mulf %27, %20 : vector<256x128xf32>
    %c0_17 = arith.constant 0 : index
    %c0_18 = arith.constant 0 : index
    %29 = vector.load %arg8[%c0_17, %c0_18] : memref<256x128xf32, #tpu.memory_space<vmem>>, vector<256x128xf32>
    tpu.vector_store %arg8[%c0_17, %c0_18], %28 {strides = array<i32>} : memref<256x128xf32, #tpu.memory_space<vmem>>, vector<256x128xf32>,
    return
  }
  func.func @transform_0(%arg0: i32) -> (i32, i32) {
    %c0_i32 = arith.constant 0 : i32
    %c0_i32_0 = arith.constant 0 : i32
    return %arg0, %c0_i32 : i32, i32
  }
  func.func @transform_1(%arg0: i32) -> (i32, i32) {
    %c0_i32 = arith.constant 0 : i32
    %c0_i32_0 = arith.constant 0 : i32
    return %arg0, %c0_i32 : i32, i32
  }
  func.func @transform_2(%arg0: i32) -> (i32, i32) {
    %c0_i32 = arith.constant 0 : i32
    %c0_i32_0 = arith.constant 0 : i32
    %c0_i32_1 = arith.constant 0 : i32
    return %c0_i32, %c0_i32_0 : i32, i32
  }
  func.func @transform_3(%arg0: i32) -> (i32, i32) {
    %c0_i32 = arith.constant 0 : i32
    %c0_i32_0 = arith.constant 0 : i32
    %c0_i32_1 = arith.constant 0 : i32
    return %c0_i32, %c0_i32_0 : i32, i32
  }
  func.func @transform_4(%arg0: i32) -> (i32, i32) {
    %c0_i32 = arith.constant 0 : i32
    %c0_i32_0 = arith.constant 0 : i32
    %c0_i32_1 = arith.constant 0 : i32
    return %c0_i32, %c0_i32_0 : i32, i32
  }
  func.func @transform_5(%arg0: i32) -> (i32, i32) {
    %c0_i32 = arith.constant 0 : i32
    %c0_i32_0 = arith.constant 0 : i32
    %c0_i32_1 = arith.constant 0 : i32
    return %c0_i32, %c0_i32_0 : i32, i32
  }
  func.func @transform_6(%arg0: i32) -> (i32, i32) {
    %c0_i32 = arith.constant 0 : i32
    %c0_i32_0 = arith.constant 0 : i32
    %c0_i32_1 = arith.constant 0 : i32
    return %c0_i32, %c0_i32_0 : i32, i32
  }
  func.func @transform_7(%arg0: i32) -> (i32, i32) {
    %c0_i32 = arith.constant 0 : i32
    %c0_i32_0 = arith.constant 0 : i32
    return %arg0, %c0_i32 : i32, i32
  }
}

module attributes {stable_mosaic.version = 11 : i64} {
  func.func @channel_mix_kernel(%arg0: i32, %arg1: memref<256x128xf32, #tpu.memory_space<vmem>>, %arg2: memref<256x128xf32, #tpu.memory_space<vmem>>, %arg3: memref<1x128xf32, #tpu.memory_space<vmem>>, %arg4: memref<1x128xf32, #tpu.memory_space<vmem>>, %arg5: memref<128x128xbf16, #tpu.memory_space<vmem>>, %arg6: memref<128x128xbf16, #tpu.memory_space<vmem>>, %arg7: memref<128x128xbf16, #tpu.memory_space<vmem>>, %arg8: memref<256x128xf32, #tpu.memory_space<vmem>>) attributes {dimension_semantics = [#tpu.dimension_semantics<parallel>], iteration_bounds = array<i64: 2>, scalar_prefetch = 0 : i64, scratch_operands = 0 : i64, tpu.core_type = #tpu.core_type<tc>, window_params = [{transform_indices = @transform_0, window_bounds = array<i64: 256, 128>}, {transform_indices = @transform_1, window_bounds = array<i64: 256, 128>}, {pipeline_mode = #tpu.pipeline_mode<synchronous>, transform_indices = @transform_2, window_bounds = array<i64: 1, 128>}, {pipeline_mode = #tpu.pipeline_mode<synchronous>, transform_indices = @transform_3, window_bounds = array<i64: 1, 128>}, {pipeline_mode = #tpu.pipeline_mode<synchronous>, transform_indices = @transform_4, window_bounds = array<i64: 128, 128>}, {pipeline_mode = #tpu.pipeline_mode<synchronous>, transform_indices = @transform_5, window_bounds = array<i64: 128, 128>}, {pipeline_mode = #tpu.pipeline_mode<synchronous>, transform_indices = @transform_6, window_bounds = array<i64: 128, 128>}, {transform_indices = @transform_7, window_bounds = array<i64: 256, 128>}]} {
    %c0 = arith.constant 0 : index
    %c0_0 = arith.constant 0 : index
    %0 = vector.load %arg1[%c0, %c0_0] : memref<256x128xf32, #tpu.memory_space<vmem>>, vector<256x128xf32>
    %c0_1 = arith.constant 0 : index
    %c0_2 = arith.constant 0 : index
    %1 = vector.load %arg2[%c0_1, %c0_2] : memref<256x128xf32, #tpu.memory_space<vmem>>, vector<256x128xf32>
    %c0_3 = arith.constant 0 : index
    %c0_4 = arith.constant 0 : index
    %2 = vector.load %arg3[%c0_3, %c0_4] : memref<1x128xf32, #tpu.memory_space<vmem>>, vector<1x128xf32>
    %c0_5 = arith.constant 0 : index
    %c0_6 = arith.constant 0 : index
    %3 = vector.load %arg4[%c0_5, %c0_6] : memref<1x128xf32, #tpu.memory_space<vmem>>, vector<1x128xf32>
    %4 = arith.subf %0, %1 : vector<256x128xf32>
    %5 = vector.broadcast %2 : vector<1x128xf32> to vector<256x128xf32>
    %6 = arith.mulf %4, %5 : vector<256x128xf32>
    %7 = arith.addf %1, %6 : vector<256x128xf32>
    %8 = arith.truncf %7 : vector<256x128xf32> to vector<256x128xbf16>
    %9 = vector.broadcast %3 : vector<1x128xf32> to vector<256x128xf32>
    %10 = arith.mulf %4, %9 : vector<256x128xf32>
    %11 = arith.addf %1, %10 : vector<256x128xf32>
    %12 = arith.truncf %11 : vector<256x128xf32> to vector<256x128xbf16>
    %c0_7 = arith.constant 0 : index
    %c0_8 = arith.constant 0 : index
    %13 = vector.load %arg5[%c0_7, %c0_8] : memref<128x128xbf16, #tpu.memory_space<vmem>>, vector<128x128xbf16>
    %cst = arith.constant dense<0.000000e+00> : vector<256x128xf32>
    %14 = tpu.matmul %8, %13, %cst {dimension_numbers = #tpu.dot_dimension_numbers<[1], [0], [0], [1], [0, 0, 1, 1], [], []>} : vector<256x128xbf16>, vector<128x128xbf16>, vector<256x128xf32> -> vector<256x128xf32>
    %cst_9 = arith.constant 0.000000e+00 : f32
    %15 = vector.broadcast %cst_9 : f32 to vector<256x128xf32>
    %16 = arith.maximumf %14, %15 : vector<256x128xf32>
    %17 = arith.mulf %16, %16 : vector<256x128xf32>
    %18 = arith.truncf %17 : vector<256x128xf32> to vector<256x128xbf16>
    %c0_10 = arith.constant 0 : index
    %c0_11 = arith.constant 0 : index
    %19 = vector.load %arg7[%c0_10, %c0_11] : memref<128x128xbf16, #tpu.memory_space<vmem>>, vector<128x128xbf16>
    %cst_12 = arith.constant dense<0.000000e+00> : vector<256x128xf32>
    %20 = tpu.matmul %18, %19, %cst_12 {dimension_numbers = #tpu.dot_dimension_numbers<[1], [0], [0], [1], [0, 0, 1, 1], [], []>} : vector<256x128xbf16>, vector<128x128xbf16>, vector<256x128xf32> -> vector<256x128xf32>
    %c0_13 = arith.constant 0 : index
    %c0_14 = arith.constant 0 : index
    %21 = vector.load %arg6[%c0_13, %c0_14] : memref<128x128xbf16, #tpu.memory_space<vmem>>, vector<128x128xbf16>
    %cst_15 = arith.constant dense<0.000000e+00> : vector<256x128xf32>
    %22 = tpu.matmul %12, %21, %cst_15 {dimension_numbers = #tpu.dot_dimension_numbers<[1], [0], [0], [1], [0, 0, 1, 1], [], []>} : vector<256x128xbf16>, vector<128x128xbf16>, vector<256x128xf32> -> vector<256x128xf32>
    %23 = arith.negf %22 : vector<256x128xf32>
    %24 = math.exp %23 : vector<256x128xf32>
    %cst_16 = arith.constant 1.000000e+00 : f32
    %25 = vector.broadcast %cst_16 : f32 to vector<256x128xf32>
    %26 = arith.addf %25, %24 : vector<256x128xf32>
    %27 = arith.divf %25, %26 : vector<256x128xf32>
    %28 = arith.mulf %27, %20 : vector<256x128xf32>
    %c0_17 = arith.constant 0 : index
    %c0_18 = arith.constant 0 : index
    %29 = vector.load %arg8[%c0_17, %c0_18] : memref<256x128xf32, #tpu.memory_space<vmem>>, vector<256x128xf32>
    tpu.vector_store %arg8[%c0_17, %c0_18], %28 {strides = array<i32>} : memref<256x128xf32, #tpu.memory_space<vmem>>, vector<256x128xf32>,
    return
  }
  func.func @transform_0(%arg0: i32) -> (i32, i32) {
    %c0_i32 = arith.constant 0 : i32
    %c0_i32_0 = arith.constant 0 : i32
    return %arg0, %c0_i32 : i32, i32
  }
  func.func @transform_1(%arg0: i32) -> (i32, i32) {
    %c0_i32 = arith.constant 0 : i32
    %c0_i32_0 = arith.constant 0 : i32
    return %arg0, %c0_i32 : i32, i32
  }
  func.func @transform_2(%arg0: i32) -> (i32, i32) {
    %c0_i32 = arith.constant 0 : i32
    %c0_i32_0 = arith.constant 0 : i32
    %c0_i32_1 = arith.constant 0 : i32
    return %c0_i32, %c0_i32_0 : i32, i32
  }
  func.func @transform_3(%arg0: i32) -> (i32, i32) {
    %c0_i32 = arith.constant 0 : i32
    %c0_i32_0 = arith.constant 0 : i32
    %c0_i32_1 = arith.constant 0 : i32
    return %c0_i32, %c0_i32_0 : i32, i32
  }
  func.func @transform_4(%arg0: i32) -> (i32, i32) {
    %c0_i32 = arith.constant 0 : i32
    %c0_i32_0 = arith.constant 0 : i32
    %c0_i32_1 = arith.constant 0 : i32
    return %c0_i32, %c0_i32_0 : i32, i32
  }
  func.func @transform_5(%arg0: i32) -> (i32, i32) {
    %c0_i32 = arith.constant 0 : i32
    %c0_i32_0 = arith.constant 0 : i32
    %c0_i32_1 = arith.constant 0 : i32
    return %c0_i32, %c0_i32_0 : i32, i32
  }
  func.func @transform_6(%arg0: i32) -> (i32, i32) {
    %c0_i32 = arith.constant 0 : i32
    %c0_i32_0 = arith.constant 0 : i32
    %c0_i32_1 = arith.constant 0 : i32
    return %c0_i32, %c0_i32_0 : i32, i32
  }
  func.func @transform_7(%arg0: i32) -> (i32, i32) {
    %c0_i32 = arith.constant 0 : i32
    %c0_i32_0 = arith.constant 0 : i32
    return %arg0, %c0_i32 : i32, i32
  }
}

</mosaic_0001>

<llo_original>
// kernel: tpu_custom_call.1
$region0: #{tpu_custom_call.1}
  #allocation0 [shape = 'u32[]', space=smem, size = 0x4, offset = 0x4, fixed_abs, tag = 'smem constant byte address 0x4 - core index']
  #allocation1 [shape = 'u32[144,128]{1,0:T(1,128)}', space=vmem, size = 0x12000, scoped, tag = 'internal scratch']
  %s0 = inlined_call_operand.hbm [shape: f32[512,128], index: 0, kind: input, shape index: {}]
  %s1 = inlined_call_operand.hbm [shape: f32[512,128], index: 1, kind: input, shape index: {}]
  %s2 = inlined_call_operand.vmem [shape: f32[1,128], index: 2, kind: input, shape index: {}]
  %s3 = inlined_call_operand.vmem [shape: f32[1,128], index: 3, kind: input, shape index: {}]
  %s4 = inlined_call_operand.hbm [shape: bf16[128,128], index: 4, kind: input, shape index: {}]
  %s5 = inlined_call_operand.hbm [shape: bf16[128,128], index: 5, kind: input, shape index: {}]
  %s6 = inlined_call_operand.hbm [shape: bf16[128,128], index: 6, kind: input, shape index: {}]
  %s7 = inlined_call_operand.hbm [shape: f32[512,128], index: 7, kind: output, shape index: {}]
  %s8 = sld [smem:[#allocation0]]
  $region81: #{tpu_custom_call.1} parent=0
    _
  %s10 = ssub.s32 1, %s8
  %s11 = scalar_select 0, %s10, %s8
  $region1: #{tpu_custom_call.1} parent=0
    #allocation2 [shape = 'u8[262144]{0}', space=vmem, size = 0x40000, scoped, tag = 'input window, operand 0']
    #allocation3 [shape = 's32[2]{0}', space=sflag, size = 0x8, scoped, tag = 'scoped memory for tpu_custom_call.1']
    #allocation4 [shape = 's32[2]{0}', space=sflag, size = 0x8, scoped, tag = 'scoped memory for tpu_custom_call.1']
    #allocation5 [shape = 'u8[262144]{0}', space=vmem, size = 0x40000, scoped, tag = 'input window, operand 1']
    #allocation6 [shape = 's32[2]{0}', space=sflag, size = 0x8, scoped, tag = 'scoped memory for tpu_custom_call.1']
    #allocation7 [shape = 'u8[32768]{0}', space=vmem, size = 0x8000, scoped, tag = 'input window, operand 4, single buffered']
    #allocation8 [shape = 'u8[32768]{0}', space=vmem, size = 0x8000, scoped, tag = 'input window, operand 5, single buffered']
    #allocation9 [shape = 's32[1]{0}', space=sflag, size = 0x4, scoped, tag = 'scoped memory for tpu_custom_call.1']
    #allocation10 [shape = 'u8[32768]{0}', space=vmem, size = 0x8000, scoped, tag = 'input window, operand 6, single buffered']
    #allocation11 [shape = 'u8[262144]{0}', space=vmem, size = 0x40000, scoped, tag = 'output window, operand 0']
    %12 = vsyncpa [#allocation3], 0
    %s13 = scalar_lea.sflag [#allocation3], 1
    %14 = vsyncpa %s13, 0
    %15 = vsyncpa [#allocation6], 0
    %s16 = scalar_lea.sflag [#allocation6], 1
    %17 = vsyncpa %s16, 0
    %18 = vsyncpa [#allocation9], 0
    %19 = vsyncpa [#allocation4], 0
    %s20 = scalar_lea.sflag [#allocation4], 1
    %21 = vsyncpa %s20, 0
    loop: start=0, step=1, limit=4
    $region2: #{tpu_custom_call.1} parent=1 // loop_pre_header
      _
    $region3: #{tpu_custom_call.1} parent=1 // loop_header
      %s23 = sphi 0, %s27
      %p24 = scmp.ge.s32.totalorder %s23, 4
      %s33 = sphi 0, %s35
      %s36 = sphi 0, %s33
      %s37 = sphi 0, %s36
      %s53 = sphi 0, %s37
      %s59 = sphi 0, %s61
      %s62 = sphi 0, %s59
      %s63 = sphi 0, %s62
      %s79 = sphi 0, %s63
      %s83 = sphi 0, %s83
      %s85 = sphi 0, %s83
      %s86 = sphi 0, %s85
      %s100 = sphi 0, %s86
      %s104 = sphi 0, %s104
      %s106 = sphi 0, %s104
      %s107 = sphi 0, %s106
      %s121 = sphi 0, %s107
      %s125 = sphi 0, %s125
      %s127 = sphi 0, %s125
      %s128 = sphi 0, %s127
      %s142 = sphi 0, %s128
      %s146 = sphi 0, %s146
      %s148 = sphi 0, %s146
      %s149 = sphi 0, %s148
      %s163 = sphi 0, %s149
      %s167 = sphi 0, %s167
      %s169 = sphi 0, %s167
      %s170 = sphi 0, %s169
      %s184 = sphi 0, %s170
      %s190 = sphi 0, %s192
      %s193 = sphi 0, %s190
      %s194 = sphi 0, %s193
      %s210 = sphi 0, %s194
    $region4: #{tpu_custom_call.1} parent=1 // loop_header_branch
      %26 = sbr.rel (%p24) target = $region8
    $region5: #{tpu_custom_call.1} parent=1 // loop_body
      %s28 = ssub.s32 %s23, 1
      %s29 = ssub.s32 %s23, 2
      %s30 = sadd.s32 %s23, 1
      %s31 = ssub.s32 %s23, %s30
      %p32 = scmp.eq.s32.totalorder %s31, 0
      %s34 = sadd.s32 %s33, 1
      %s35 = scalar_select %p32, %s33, %s34
      %p38 = pneg %p32
      %p39 = scmp.eq.s32.totalorder %s23, 1
      %p40 = por %p38, %p39
      %p41 = scmp.ne.s32.totalorder %s33, %s36
      %p42 = scmp.eq.s32.totalorder %s23, 0
      %p43 = por %p41, %p42
      %p44 = scmp.ne.s32.totalorder %s33, %s36
      %p45 = scmp.eq.s32.totalorder %s28, 1
      %p46 = por %p44, %p45
      %p47 = scmp.ne.s32.totalorder %s36, %s37
      %p48 = scmp.eq.s32.totalorder %s28, 0
      %p49 = por %p47, %p48
      %p50 = scmp.ne.s32.totalorder %s36, %s37
      %p51 = scmp.eq.s32.totalorder %s29, 1
      %p52 = por %p50, %p51
      %p54 = scmp.ne.s32.totalorder %s37, %s53
      %p55 = scmp.eq.s32.totalorder %s29, 0
      %p56 = por %p54, %p55
      %s57 = ssub.s32 %s23, %s30
      %p58 = scmp.eq.s32.totalorder %s57, 0
      %s60 = sadd.s32 %s59, 1
      %s61 = scalar_select %p58, %s59, %s60
      %p64 = pneg %p58
      %p65 = scmp.eq.s32.totalorder %s23, 1
      %p66 = por %p64, %p65
      %p67 = scmp.ne.s32.totalorder %s59, %s62
      %p68 = scmp.eq.s32.totalorder %s23, 0
      %p69 = por %p67, %p68
      %p70 = scmp.ne.s32.totalorder %s59, %s62
      %p71 = scmp.eq.s32.totalorder %s28, 1
      %p72 = por %p70, %p71
      %p73 = scmp.ne.s32.totalorder %s62, %s63
      %p74 = scmp.eq.s32.totalorder %s28, 0
      %p75 = por %p73, %p74
      %p76 = scmp.ne.s32.totalorder %s62, %s63
      %p77 = scmp.eq.s32.totalorder %s29, 1
      %p78 = por %p76, %p77
      %p80 = scmp.ne.s32.totalorder %s63, %s79
      %p81 = scmp.eq.s32.totalorder %s29, 0
      %p82 = por %p80, %p81
      %s84 = sadd.s32 %s83, 1
      %p87 = scmp.eq.s32.totalorder %s23, 1
      %p88 = scmp.ne.s32.totalorder %s83, %s85
      %p89 = scmp.eq.s32.totalorder %s23, 0
      %p90 = por %p88, %p89
      %p91 = scmp.ne.s32.totalorder %s83, %s85
      %p92 = scmp.eq.s32.totalorder %s28, 1
      %p93 = por %p91, %p92
      %p94 = scmp.ne.s32.totalorder %s85, %s86
      %p95 = scmp.eq.s32.totalorder %s28, 0
      %p96 = por %p94, %p95
      %p97 = scmp.ne.s32.totalorder %s85, %s86
      %p98 = scmp.eq.s32.totalorder %s29, 1
      %p99 = por %p97, %p98
      %p101 = scmp.ne.s32.totalorder %s86, %s100
      %p102 = scmp.eq.s32.totalorder %s29, 0
      %p103 = por %p101, %p102
      %s105 = sadd.s32 %s104, 1
      %p108 = scmp.eq.s32.totalorder %s23, 1
      %p109 = scmp.ne.s32.totalorder %s104, %s106
      %p110 = scmp.eq.s32.totalorder %s23, 0
      %p111 = por %p109, %p110
      %p112 = scmp.ne.s32.totalorder %s104, %s106
      %p113 = scmp.eq.s32.totalorder %s28, 1
      %p114 = por %p112, %p113
      %p115 = scmp.ne.s32.totalorder %s106, %s107
      %p116 = scmp.eq.s32.totalorder %s28, 0
      %p117 = por %p115, %p116
      %p118 = scmp.ne.s32.totalorder %s106, %s107
      %p119 = scmp.eq.s32.totalorder %s29, 1
      %p120 = por %p118, %p119
      %p122 = scmp.ne.s32.totalorder %s107, %s121
      %p123 = scmp.eq.s32.totalorder %s29, 0
      %p124 = por %p122, %p123
      %s126 = sadd.s32 %s125, 1
      %p129 = scmp.eq.s32.totalorder %s23, 1
      %p130 = scmp.ne.s32.totalorder %s125, %s127
      %p131 = scmp.eq.s32.totalorder %s23, 0
      %p132 = por %p130, %p131
      %p133 = scmp.ne.s32.totalorder %s125, %s127
      %p134 = scmp.eq.s32.totalorder %s28, 1
      %p135 = por %p133, %p134
      %p136 = scmp.ne.s32.totalorder %s127, %s128
      %p137 = scmp.eq.s32.totalorder %s28, 0
      %p138 = por %p136, %p137
      %p139 = scmp.ne.s32.totalorder %s127, %s128
      %p140 = scmp.eq.s32.totalorder %s29, 1
      %p141 = por %p139, %p140
      %p143 = scmp.ne.s32.totalorder %s128, %s142
      %p144 = scmp.eq.s32.totalorder %s29, 0
      %p145 = por %p143, %p144
      %s147 = sadd.s32 %s146, 1
      %p150 = scmp.eq.s32.totalorder %s23, 1
      %p151 = scmp.ne.s32.totalorder %s146, %s148
      %p152 = scmp.eq.s32.totalorder %s23, 0
      %p153 = por %p151, %p152
      %p154 = scmp.ne.s32.totalorder %s146, %s148
      %p155 = scmp.eq.s32.totalorder %s28, 1
      %p156 = por %p154, %p155
      %p157 = scmp.ne.s32.totalorder %s148, %s149
      %p158 = scmp.eq.s32.totalorder %s28, 0
      %p159 = por %p157, %p158
      %p160 = scmp.ne.s32.totalorder %s148, %s149
      %p161 = scmp.eq.s32.totalorder %s29, 1
      %p162 = por %p160, %p161
      %p164 = scmp.ne.s32.totalorder %s149, %s163
      %p165 = scmp.eq.s32.totalorder %s29, 0
      %p166 = por %p164, %p165
      %s168 = sadd.s32 %s167, 1
      %p171 = scmp.eq.s32.totalorder %s23, 1
      %p172 = scmp.ne.s32.totalorder %s167, %s169
      %p173 = scmp.eq.s32.totalorder %s23, 0
      %p174 = por %p172, %p173
      %p175 = scmp.ne.s32.totalorder %s167, %s169
      %p176 = scmp.eq.s32.totalorder %s28, 1
      %p177 = por %p175, %p176
      %p178 = scmp.ne.s32.totalorder %s169, %s170
      %p179 = scmp.eq.s32.totalorder %s28, 0
      %p180 = por %p178, %p179
      %p181 = scmp.ne.s32.totalorder %s169, %s170
      %p182 = scmp.eq.s32.totalorder %s29, 1
      %p183 = por %p181, %p182
      %p185 = scmp.ne.s32.totalorder %s170, %s184
      %p186 = scmp.eq.s32.totalorder %s29, 0
      %p187 = por %p185, %p186
      %s188 = ssub.s32 %s23, %s30
      %p189 = scmp.eq.s32.totalorder %s188, 0
      %s191 = sadd.s32 %s190, 1
      %s192 = scalar_select %p189, %s190, %s191
      %p195 = pneg %p189
      %p196 = scmp.eq.s32.totalorder %s23, 1
      %p197 = por %p195, %p196
      %p198 = scmp.ne.s32.totalorder %s190, %s193
      %p199 = scmp.eq.s32.totalorder %s23, 0
      %p200 = por %p198, %p199
      %p201 = scmp.ne.s32.totalorder %s190, %s193
      %p202 = scmp.eq.s32.totalorder %s28, 1
      %p203 = por %p201, %p202
      %p204 = scmp.ne.s32.totalorder %s193, %s194
      %p205 = scmp.eq.s32.totalorder %s28, 0
      %p206 = por %p204, %p205
      %p207 = scmp.ne.s32.totalorder %s193, %s194
      %p208 = scmp.eq.s32.totalorder %s29, 1
      %p209 = por %p207, %p208
      %p211 = scmp.ne.s32.totalorder %s194, %s210
      %p212 = scmp.eq.s32.totalorder %s29, 0
      %p213 = por %p211, %p212
      %p214 = scmp.le.s32.totalorder 1, %s23
      %p215 = scmp.lt.s32.totalorder %s23, 3
      %p216 = pnand %p214, %p215
      %p217 = pneg %p216
      // Predicated region
      $region9: #{tpu_custom_call.1} parent=5 // pred_check
        _
      $region10: #{tpu_custom_call.1} parent=5 // pred_check_branch
        %219 = sbr.rel (%p216) target = $region12
      $region11: #{tpu_custom_call.1} parent=5 // pred_region
        %s220 = ssub.s32 %s23, 1
        // Predicated region
        $region13: #{tpu_custom_call.1} parent=11 // pred_check
          %p221 = pneg %p96
        $region14: #{tpu_custom_call.1} parent=11 // pred_check_branch
          %223 = sbr.rel (%p221) target = $region16
        $region15: #{tpu_custom_call.1} parent=11 // pred_region
          _
        $region16: #{tpu_custom_call.1} parent=11 // pred_fallthru
          _
        // Predicated region
        $region17: #{tpu_custom_call.1} parent=11 // pred_check
          %p224 = pneg %p117
        $region18: #{tpu_custom_call.1} parent=11 // pred_check_branch
          %226 = sbr.rel (%p224) target = $region20
        $region19: #{tpu_custom_call.1} parent=11 // pred_region
          _
        $region20: #{tpu_custom_call.1} parent=11 // pred_fallthru
          _
        // Predicated region
        $region21: #{tpu_custom_call.1} parent=11 // pred_check
          %p227 = pneg %p138
        $region22: #{tpu_custom_call.1} parent=11 // pred_check_branch
          %229 = sbr.rel (%p227) target = $region24
        $region23: #{tpu_custom_call.1} parent=11 // pred_region
          %s231 = ssub.s32 1024, 1024
          %232 = vsyncadd [#allocation6], %s231
          %s233 = sshll.u32 [#allocation7], 4
          %s234 = int_to_ptr.vmem [resolvable:$true] %s233
          %239 = dma.hbm_to_vmem [thread:$0]  %s4, 1024, %s234, [#allocation6], 64, 64, 4
        $region24: #{tpu_custom_call.1} parent=11 // pred_fallthru
          _
        // Predicated region
        $region25: #{tpu_custom_call.1} parent=11 // pred_check
          %p240 = pneg %p159
        $region26: #{tpu_custom_call.1} parent=11 // pred_check_branch
          %242 = sbr.rel (%p240) target = $region28
        $region27: #{tpu_custom_call.1} parent=11 // pred_region
          %s244 = ssub.s32 1024, 1024
          %245 = vsyncadd [#allocation9], %s244
          %s246 = sshll.u32 [#allocation8], 4
          %s247 = int_to_ptr.vmem [resolvable:$true] %s246
          %252 = dma.hbm_to_vmem [thread:$0]  %s5, 1024, %s247, [#allocation9], 64, 64, 4
        $region28: #{tpu_custom_call.1} parent=11 // pred_fallthru
          _
        // Predicated region
        $region29: #{tpu_custom_call.1} parent=11 // pred_check
          %p253 = pneg %p180
        $region30: #{tpu_custom_call.1} parent=11 // pred_check_branch
          %255 = sbr.rel (%p253) target = $region32
        $region31: #{tpu_custom_call.1} parent=11 // pred_region
          %s257 = ssub.s32 1024, 1024
          %258 = vsyncadd [#allocation9], %s257
          %s259 = sshll.u32 [#allocation10], 4
          %s260 = int_to_ptr.vmem [resolvable:$true] %s259
          %265 = dma.hbm_to_vmem [thread:$0]  %s6, 1024, %s260, [#allocation9], 64, 64, 4
        $region32: #{tpu_custom_call.1} parent=11 // pred_fallthru
          _
      $region12: #{tpu_custom_call.1} parent=5 // pred_fallthru
        _
      %p266 = scmp.lt.s32.totalorder %s23, 2
      // Predicated region
      $region33: #{tpu_custom_call.1} parent=5 // pred_check
        %p267 = pneg %p266
      $region34: #{tpu_custom_call.1} parent=5 // pred_check_branch
        %269 = sbr.rel (%p267) target = $region36
      $region35: #{tpu_custom_call.1} parent=5 // pred_region
        // Predicated region
        $region37: #{tpu_custom_call.1} parent=35 // pred_check
          %p270 = pneg %p43
        $region38: #{tpu_custom_call.1} parent=35 // pred_check_branch
          %272 = sbr.rel (%p270) target = $region40
        $region39: #{tpu_custom_call.1} parent=35 // pred_region
          %s273 = sand.u32 %s33, 1
          %s274 = scalar_lea.sflag [#allocation3], %s273
          %s275 = sand.u32 %s33, 1
          %s276 = smul.addr %s275, 256
          %s277 = scalar_lea.vmem [#allocation2], %s276
          %s278 = smul.u32 32, %s23
          %s280 = ssub.s32 4096, 4096
          %281 = vsyncadd %s274, %s280
          %s282 = smul.addr %s278, 128
          %s283 = scalar_lea.hbm %s0, %s282
          %s284 = sshll.u32 %s277, 4
          %s285 = int_to_ptr.vmem [resolvable:$true] %s284
          %290 = dma.hbm_to_vmem [thread:$0]  %s283, 4096, %s285, %s274, 128, 128, 8
        $region40: #{tpu_custom_call.1} parent=35 // pred_fallthru
          _
        // Predicated region
        $region41: #{tpu_custom_call.1} parent=35 // pred_check
          %p291 = pneg %p69
        $region42: #{tpu_custom_call.1} parent=35 // pred_check_branch
          %293 = sbr.rel (%p291) target = $region44
        $region43: #{tpu_custom_call.1} parent=35 // pred_region
          %s294 = sand.u32 %s23, 1
          %s295 = scalar_lea.sflag [#allocation6], %s294
          %s296 = sand.u32 %s59, 1
          %s297 = smul.addr %s296, 256
          %s298 = scalar_lea.vmem [#allocation5], %s297
          %s299 = smul.u32 32, %s23
          %s301 = ssub.s32 4096, 4096
          %302 = vsyncadd %s295, %s301
          %s303 = smul.addr %s299, 128
          %s304 = scalar_lea.hbm %s1, %s303
          %s305 = sshll.u32 %s298, 4
          %s306 = int_to_ptr.vmem [resolvable:$true] %s305
          %311 = dma.hbm_to_vmem [thread:$0]  %s304, 4096, %s306, %s295, 128, 128, 8
        $region44: #{tpu_custom_call.1} parent=35 // pred_fallthru
          _
      $region36: #{tpu_custom_call.1} parent=5 // pred_fallthru
        _
      %p312 = scmp.le.s32.totalorder 1, %s23
      %p313 = scmp.lt.s32.totalorder %s23, 3
      %p314 = pnand %p312, %p313
      %p315 = pneg %p314
      // Predicated region
      $region45: #{tpu_custom_call.1} parent=5 // pred_check
        _
      $region46: #{tpu_custom_call.1} parent=5 // pred_check_branch
        %317 = sbr.rel (%p314) target = $region48
      $region47: #{tpu_custom_call.1} parent=5 // pred_region
        %s318 = ssub.s32 %s23, 1
        %s319 = sand.u32 %s36, 1
        %s320 = scalar_lea.sflag [#allocation3], %s319
        %s321 = sand.u32 %s36, 1
        %s322 = smul.addr %s321, 256
        %s323 = scalar_lea.vmem [#allocation2], %s322
        // Predicated region
        $region49: #{tpu_custom_call.1} parent=47 // pred_check
          %p324 = pneg %p49
        $region50: #{tpu_custom_call.1} parent=47 // pred_check_branch
          %326 = sbr.rel (%p324) target = $region52
        $region51: #{tpu_custom_call.1} parent=47 // pred_region
          %327 = dma.done %s320, 4096
        $region52: #{tpu_custom_call.1} parent=47 // pred_fallthru
          _
        %s328 = sand.u32 %s28, 1
        %s329 = scalar_lea.sflag [#allocation6], %s328
        %s330 = sand.u32 %s62, 1
        %s331 = smul.addr %s330, 256
        %s332 = scalar_lea.vmem [#allocation5], %s331
        // Predicated region
        $region53: #{tpu_custom_call.1} parent=47 // pred_check
          %p333 = pneg %p75
        $region54: #{tpu_custom_call.1} parent=47 // pred_check_branch
          %335 = sbr.rel (%p333) target = $region56
        $region55: #{tpu_custom_call.1} parent=47 // pred_region
          %336 = dma.done %s329, 4096
        $region56: #{tpu_custom_call.1} parent=47 // pred_fallthru
          _
        // Predicated region
        $region57: #{tpu_custom_call.1} parent=47 // pred_check
          %p337 = pneg %p138
        $region58: #{tpu_custom_call.1} parent=47 // pred_check_branch
          %339 = sbr.rel (%p337) target = $region60
        $region59: #{tpu_custom_call.1} parent=47 // pred_region
          %340 = dma.done [#allocation6], 1024
        $region60: #{tpu_custom_call.1} parent=47 // pred_fallthru
          _
        // Predicated region
        $region61: #{tpu_custom_call.1} parent=47 // pred_check
          %p341 = pneg %p159
        $region62: #{tpu_custom_call.1} parent=47 // pred_check_branch
          %343 = sbr.rel (%p341) target = $region64
        $region63: #{tpu_custom_call.1} parent=47 // pred_region
          %344 = dma.done [#allocation9], 1024
        $region64: #{tpu_custom_call.1} parent=47 // pred_fallthru
          _
        // Predicated region
        $region65: #{tpu_custom_call.1} parent=47 // pred_check
          %p345 = pneg %p180
        $region66: #{tpu_custom_call.1} parent=47 // pred_check_branch
          %347 = sbr.rel (%p345) target = $region68
        $region67: #{tpu_custom_call.1} parent=47 // pred_region
          %348 = dma.done [#allocation9], 1024
        $region68: #{tpu_custom_call.1} parent=47 // pred_fallthru
          _
        %s349 = sand.u32 %s36, 1
        %s350 = scalar_lea.sflag [#allocation3], %s349
        %s351 = sand.u32 %s36, 1
        %s352 = smul.addr %s351, 256
        %s353 = scalar_lea.vmem [#allocation2], %s352
        %p354 = pneg %p49
        %p355 = pneg %p46
        %s356 = sand.u32 %s28, 1
        %s357 = scalar_lea.sflag [#allocation6], %s356
        %s358 = sand.u32 %s62, 1
        %s359 = smul.addr %s358, 256
        %s360 = scalar_lea.vmem [#allocation5], %s359
        %p361 = pneg %p75
        %p362 = pneg %p72
        %p363 = pneg %p96
        %p364 = pneg %p93
        %p365 = pneg %p117
        %p366 = pneg %p114
        %p367 = pneg %p138
        %p368 = pneg %p135
        %p369 = pneg %p159
        %p370 = pneg %p156
        %p371 = pneg %p180
        %p372 = pneg %p177
        %p373 = pneg %p206
        %p374 = pneg %p203
        %s375 = sand.u32 %s193, 1
        %s376 = scalar_lea.sflag [#allocation4], %s375
        %s377 = sand.u32 %s193, 1
        %s378 = smul.addr %s377, 256
        %s379 = scalar_lea.vmem [#allocation11], %s378
        %s380 = smul.u32 32, %s28
        %s381 = smul.u32 32, %s28
        %s382 = smul.u32 32, %s28
        %v384 = vld [vmem:[%s323] sm:$0xff]
        %v385 = vld [vmem:[%s323 + $0x8] sm:$0xff]
        %v386 = vld [vmem:[%s323 + $0x10] sm:$0xff]
        %v387 = vld [vmem:[%s323 + $0x18] sm:$0xff]
        %v388 = vld [vmem:[%s323 + $0x20] sm:$0xff]
        %v389 = vld [vmem:[%s323 + $0x28] sm:$0xff]
        %v390 = vld [vmem:[%s323 + $0x30] sm:$0xff]
        %v391 = vld [vmem:[%s323 + $0x38] sm:$0xff]
        %v392 = vld [vmem:[%s323 + $0x40] sm:$0xff]
        %v393 = vld [vmem:[%s323 + $0x48] sm:$0xff]
        %v394 = vld [vmem:[%s323 + $0x50] sm:$0xff]
        %v395 = vld [vmem:[%s323 + $0x58] sm:$0xff]
        %v396 = vld [vmem:[%s323 + $0x60] sm:$0xff]
        %v397 = vld [vmem:[%s323 + $0x68] sm:$0xff]
        %v398 = vld [vmem:[%s323 + $0x70] sm:$0xff]
        %v399 = vld [vmem:[%s323 + $0x78] sm:$0xff]
        %v400 = vld [vmem:[%s323 + $0x80] sm:$0xff]
        %v401 = vld [vmem:[%s323 + $0x88] sm:$0xff]
        %v402 = vld [vmem:[%s323 + $0x90] sm:$0xff]
        %v403 = vld [vmem:[%s323 + $0x98] sm:$0xff]
        %v404 = vld [vmem:[%s323 + $0xa0] sm:$0xff]
        %v405 = vld [vmem:[%s323 + $0xa8] sm:$0xff]
        %v406 = vld [vmem:[%s323 + $0xb0] sm:$0xff]
        %v407 = vld [vmem:[%s323 + $0xb8] sm:$0xff]
        %v408 = vld [vmem:[%s323 + $0xc0] sm:$0xff]
        %v409 = vld [vmem:[%s323 + $0xc8] sm:$0xff]
        %v410 = vld [vmem:[%s323 + $0xd0] sm:$0xff]
        %v411 = vld [vmem:[%s323 + $0xd8] sm:$0xff]
        %v412 = vld [vmem:[%s323 + $0xe0] sm:$0xff]
        %v413 = vld [vmem:[%s323 + $0xe8] sm:$0xff]
        %v414 = vld [vmem:[%s323 + $0xf0] sm:$0xff]
        %v415 = vld [vmem:[%s323 + $0xf8] sm:$0xff]
        %v416 = vld [vmem:[%s332] sm:$0xff]
        %v417 = vld [vmem:[%s332 + $0x8] sm:$0xff]
        %v418 = vld [vmem:[%s332 + $0x10] sm:$0xff]
        %v419 = vld [vmem:[%s332 + $0x18] sm:$0xff]
        %v420 = vld [vmem:[%s332 + $0x20] sm:$0xff]
        %v421 = vld [vmem:[%s332 + $0x28] sm:$0xff]
        %v422 = vld [vmem:[%s332 + $0x30] sm:$0xff]
        %v423 = vld [vmem:[%s332 + $0x38] sm:$0xff]
        %v424 = vld [vmem:[%s332 + $0x40] sm:$0xff]
        %v425 = vld [vmem:[%s332 + $0x48] sm:$0xff]
        %v426 = vld [vmem:[%s332 + $0x50] sm:$0xff]
        %v427 = vld [vmem:[%s332 + $0x58] sm:$0xff]
        %v428 = vld [vmem:[%s332 + $0x60] sm:$0xff]
        %v429 = vld [vmem:[%s332 + $0x68] sm:$0xff]
        %v430 = vld [vmem:[%s332 + $0x70] sm:$0xff]
        %v431 = vld [vmem:[%s332 + $0x78] sm:$0xff]
        %v432 = vld [vmem:[%s332 + $0x80] sm:$0xff]
        %v433 = vld [vmem:[%s332 + $0x88] sm:$0xff]
        %v434 = vld [vmem:[%s332 + $0x90] sm:$0xff]
        %v435 = vld [vmem:[%s332 + $0x98] sm:$0xff]
        %v436 = vld [vmem:[%s332 + $0xa0] sm:$0xff]
        %v437 = vld [vmem:[%s332 + $0xa8] sm:$0xff]
        %v438 = vld [vmem:[%s332 + $0xb0] sm:$0xff]
        %v439 = vld [vmem:[%s332 + $0xb8] sm:$0xff]
        %v440 = vld [vmem:[%s332 + $0xc0] sm:$0xff]
        %v441 = vld [vmem:[%s332 + $0xc8] sm:$0xff]
        %v442 = vld [vmem:[%s332 + $0xd0] sm:$0xff]
        %v443 = vld [vmem:[%s332 + $0xd8] sm:$0xff]
        %v444 = vld [vmem:[%s332 + $0xe0] sm:$0xff]
        %v445 = vld [vmem:[%s332 + $0xe8] sm:$0xff]
        %v446 = vld [vmem:[%s332 + $0xf0] sm:$0xff]
        %v447 = vld [vmem:[%s332 + $0xf8] sm:$0xff]
        %v448 = vld [vmem:[%s2] sm:$0x1]
        %v449 = vld [vmem:[%s3] sm:$0x1]
        %v450 = vsub.f32 %v384, %v416
        %v451 = vsub.f32 %v385, %v417
        %v452 = vsub.f32 %v386, %v418
        %v453 = vsub.f32 %v387, %v419
        %v454 = vsub.f32 %v388, %v420
        %v455 = vsub.f32 %v389, %v421
        %v456 = vsub.f32 %v390, %v422
        %v457 = vsub.f32 %v391, %v423
        %v458 = vsub.f32 %v392, %v424
        %v459 = vsub.f32 %v393, %v425
        %v460 = vsub.f32 %v394, %v426
        %v461 = vsub.f32 %v395, %v427
        %v462 = vsub.f32 %v396, %v428
        %v463 = vsub.f32 %v397, %v429
        %v464 = vsub.f32 %v398, %v430
        %v465 = vsub.f32 %v399, %v431
        %v466 = vsub.f32 %v400, %v432
        %v467 = vsub.f32 %v401, %v433
        %v468 = vsub.f32 %v402, %v434
        %v469 = vsub.f32 %v403, %v435
        %v470 = vsub.f32 %v404, %v436
        %v471 = vsub.f32 %v405, %v437
        %v472 = vsub.f32 %v406, %v438
        %v473 = vsub.f32 %v407, %v439
        %v474 = vsub.f32 %v408, %v440
        %v475 = vsub.f32 %v409, %v441
        %v476 = vsub.f32 %v410, %v442
        %v477 = vsub.f32 %v411, %v443
        %v478 = vsub.f32 %v412, %v444
        %v479 = vsub.f32 %v413, %v445
        %v480 = vsub.f32 %v414, %v446
        %v481 = vsub.f32 %v415, %v447
        %v483 = vlaneseq
        %v484 = vshrl.u32 %v483, 7
        %v485 = vsub.s32 0, %v484
        %v486 = vrot.slane %v448, %v485
        %v488 = vmul.f32 %v450, %v486
        %v489 = vmul.f32 %v451, %v486
        %v490 = vmul.f32 %v452, %v486
        %v491 = vmul.f32 %v453, %v486
        %v492 = vmul.f32 %v454, %v486
        %v493 = vmul.f32 %v455, %v486
        %v494 = vmul.f32 %v456, %v486
        %v495 = vmul.f32 %v457, %v486
        %v496 = vmul.f32 %v458, %v486
        %v497 = vmul.f32 %v459, %v486
        %v498 = vmul.f32 %v460, %v486
        %v499 = vmul.f32 %v461, %v486
        %v500 = vmul.f32 %v462, %v486
        %v501 = vmul.f32 %v463, %v486
        %v502 = vmul.f32 %v464, %v486
        %v503 = vmul.f32 %v465, %v486
        %v504 = vmul.f32 %v466, %v486
        %v505 = vmul.f32 %v467, %v486
        %v506 = vmul.f32 %v468, %v486
        %v507 = vmul.f32 %v469, %v486
        %v508 = vmul.f32 %v470, %v486
        %v509 = vmul.f32 %v471, %v486
        %v510 = vmul.f32 %v472, %v486
        %v511 = vmul.f32 %v473, %v486
        %v512 = vmul.f32 %v474, %v486
        %v513 = vmul.f32 %v475, %v486
        %v514 = vmul.f32 %v476, %v486
        %v515 = vmul.f32 %v477, %v486
        %v516 = vmul.f32 %v478, %v486
        %v517 = vmul.f32 %v479, %v486
        %v518 = vmul.f32 %v480, %v486
        %v519 = vmul.f32 %v481, %v486
        %v520 = vadd.f32 %v416, %v488
        %v521 = vadd.f32 %v417, %v489
        %v522 = vadd.f32 %v418, %v490
        %v523 = vadd.f32 %v419, %v491
        %v524 = vadd.f32 %v420, %v492
        %v525 = vadd.f32 %v421, %v493
        %v526 = vadd.f32 %v422, %v494
        %v527 = vadd.f32 %v423, %v495
        %v528 = vadd.f32 %v424, %v496
        %v529 = vadd.f32 %v425, %v497
        %v530 = vadd.f32 %v426, %v498
        %v531 = vadd.f32 %v427, %v499
        %v532 = vadd.f32 %v428, %v500
        %v533 = vadd.f32 %v429, %v501
        %v534 = vadd.f32 %v430, %v502
        %v535 = vadd.f32 %v431, %v503
        %v536 = vadd.f32 %v432, %v504
        %v537 = vadd.f32 %v433, %v505
        %v538 = vadd.f32 %v434, %v506
        %v539 = vadd.f32 %v435, %v507
        %v540 = vadd.f32 %v436, %v508
        %v541 = vadd.f32 %v437, %v509
        %v542 = vadd.f32 %v438, %v510
        %v543 = vadd.f32 %v439, %v511
        %v544 = vadd.f32 %v440, %v512
        %v545 = vadd.f32 %v441, %v513
        %v546 = vadd.f32 %v442, %v514
        %v547 = vadd.f32 %v443, %v515
        %v548 = vadd.f32 %v444, %v516
        %v549 = vadd.f32 %v445, %v517
        %v550 = vadd.f32 %v446, %v518
        %v551 = vadd.f32 %v447, %v519
        %v552 = vpack.c.bf16 %v521, %v520
        %v553 = vpack.c.bf16 %v523, %v522
        %v554 = vpack.c.bf16 %v525, %v524
        %v555 = vpack.c.bf16 %v527, %v526
        %v556 = vpack.c.bf16 %v529, %v528
        %v557 = vpack.c.bf16 %v531, %v530
        %v558 = vpack.c.bf16 %v533, %v532
        %v559 = vpack.c.bf16 %v535, %v534
        %v560 = vpack.c.bf16 %v537, %v536
        %v561 = vpack.c.bf16 %v539, %v538
        %v562 = vpack.c.bf16 %v541, %v540
        %v563 = vpack.c.bf16 %v543, %v542
        %v564 = vpack.c.bf16 %v545, %v544
        %v565 = vpack.c.bf16 %v547, %v546
        %v566 = vpack.c.bf16 %v549, %v548
        %v567 = vpack.c.bf16 %v551, %v550
        %v569 = vlaneseq
        %v570 = vshrl.u32 %v569, 7
        %v571 = vsub.s32 0, %v570
        %v572 = vrot.slane %v449, %v571
        %v574 = vmul.f32 %v450, %v572
        %v575 = vmul.f32 %v451, %v572
        %v576 = vmul.f32 %v452, %v572
        %v577 = vmul.f32 %v453, %v572
        %v578 = vmul.f32 %v454, %v572
        %v579 = vmul.f32 %v455, %v572
        %v580 = vmul.f32 %v456, %v572
        %v581 = vmul.f32 %v457, %v572
        %v582 = vmul.f32 %v458, %v572
        %v583 = vmul.f32 %v459, %v572
        %v584 = vmul.f32 %v460, %v572
        %v585 = vmul.f32 %v461, %v572
        %v586 = vmul.f32 %v462, %v572
        %v587 = vmul.f32 %v463, %v572
        %v588 = vmul.f32 %v464, %v572
        %v589 = vmul.f32 %v465, %v572
        %v590 = vmul.f32 %v466, %v572
        %v591 = vmul.f32 %v467, %v572
        %v592 = vmul.f32 %v468, %v572
        %v593 = vmul.f32 %v469, %v572
        %v594 = vmul.f32 %v470, %v572
        %v595 = vmul.f32 %v471, %v572
        %v596 = vmul.f32 %v472, %v572
        %v597 = vmul.f32 %v473, %v572
        %v598 = vmul.f32 %v474, %v572
        %v599 = vmul.f32 %v475, %v572
        %v600 = vmul.f32 %v476, %v572
        %v601 = vmul.f32 %v477, %v572
        %v602 = vmul.f32 %v478, %v572
        %v603 = vmul.f32 %v479, %v572
        %v604 = vmul.f32 %v480, %v572
        %v605 = vmul.f32 %v481, %v572
        %v606 = vadd.f32 %v416, %v574
        %v607 = vadd.f32 %v417, %v575
        %v608 = vadd.f32 %v418, %v576
        %v609 = vadd.f32 %v419, %v577
        %v610 = vadd.f32 %v420, %v578
        %v611 = vadd.f32 %v421, %v579
        %v612 = vadd.f32 %v422, %v580
        %v613 = vadd.f32 %v423, %v581
        %v614 = vadd.f32 %v424, %v582
        %v615 = vadd.f32 %v425, %v583
        %v616 = vadd.f32 %v426, %v584
        %v617 = vadd.f32 %v427, %v585
        %v618 = vadd.f32 %v428, %v586
        %v619 = vadd.f32 %v429, %v587
        %v620 = vadd.f32 %v430, %v588
        %v621 = vadd.f32 %v431, %v589
        %v622 = vadd.f32 %v432, %v590
        %v623 = vadd.f32 %v433, %v591
        %v624 = vadd.f32 %v434, %v592
        %v625 = vadd.f32 %v435, %v593
        %v626 = vadd.f32 %v436, %v594
        %v627 = vadd.f32 %v437, %v595
        %v628 = vadd.f32 %v438, %v596
        %v629 = vadd.f32 %v439, %v597
        %v630 = vadd.f32 %v440, %v598
        %v631 = vadd.f32 %v441, %v599
        %v632 = vadd.f32 %v442, %v600
        %v633 = vadd.f32 %v443, %v601
        %v634 = vadd.f32 %v444, %v602
        %v635 = vadd.f32 %v445, %v603
        %v636 = vadd.f32 %v446, %v604
        %v637 = vadd.f32 %v447, %v605
        %v638 = vpack.c.bf16 %v607, %v606
        %v639 = vpack.c.bf16 %v609, %v608
        %v640 = vpack.c.bf16 %v611, %v610
        %v641 = vpack.c.bf16 %v613, %v612
        %v642 = vpack.c.bf16 %v615, %v614
        %v643 = vpack.c.bf16 %v617, %v616
        %v644 = vpack.c.bf16 %v619, %v618
        %v645 = vpack.c.bf16 %v621, %v620
        %v646 = vpack.c.bf16 %v623, %v622
        %v647 = vpack.c.bf16 %v625, %v624
        %v648 = vpack.c.bf16 %v627, %v626
        %v649 = vpack.c.bf16 %v629, %v628
        %v650 = vpack.c.bf16 %v631, %v630
        %v651 = vpack.c.bf16 %v633, %v632
        %v652 = vpack.c.bf16 %v635, %v634
        %v653 = vpack.c.bf16 %v637, %v636
        %v654 = vld [vmem:[#allocation7] sm:$0xf]
        %v655 = vld [vmem:[#allocation7 + $0x4] sm:$0xf]
        %v656 = vld [vmem:[#allocation7 + $0x8] sm:$0xf]
        %v657 = vld [vmem:[#allocation7 + $0xc] sm:$0xf]
        %v658 = vld [vmem:[#allocation7 + $0x10] sm:$0xf]
        %v659 = vld [vmem:[#allocation7 + $0x14] sm:$0xf]
        %v660 = vld [vmem:[#allocation7 + $0x18] sm:$0xf]
        %v661 = vld [vmem:[#allocation7 + $0x1c] sm:$0xf]
        %v662 = vld [vmem:[#allocation7 + $0x20] sm:$0xf]
        %v663 = vld [vmem:[#allocation7 + $0x24] sm:$0xf]
        %v664 = vld [vmem:[#allocation7 + $0x28] sm:$0xf]
        %v665 = vld [vmem:[#allocation7 + $0x2c] sm:$0xf]
        %v666 = vld [vmem:[#allocation7 + $0x30] sm:$0xf]
        %v667 = vld [vmem:[#allocation7 + $0x34] sm:$0xf]
        %v668 = vld [vmem:[#allocation7 + $0x38] sm:$0xf]
        %v669 = vld [vmem:[#allocation7 + $0x3c] sm:$0xf]
        %v686 = vunpack.c.l.b16 %v654
        %v687 = vunpack.c.l.b16 %v655
        %v688 = vunpack.c.l.b16 %v656
        %v689 = vunpack.c.l.b16 %v657
        %v690 = vunpack.c.l.b16 %v658
        %v691 = vunpack.c.l.b16 %v659
        %v692 = vunpack.c.l.b16 %v660
        %v693 = vunpack.c.l.b16 %v661
        %v694 = vunpack.c.l.b16 %v662
        %v695 = vunpack.c.l.b16 %v663
        %v696 = vunpack.c.l.b16 %v664
        %v697 = vunpack.c.l.b16 %v665
        %v698 = vunpack.c.l.b16 %v666
        %v699 = vunpack.c.l.b16 %v667
        %v700 = vunpack.c.l.b16 %v668
        %v701 = vunpack.c.l.b16 %v669
        %v702 = vpack.c.b16 %v687, %v686
        %v703 = vpack.c.b16 %v689, %v688
        %v704 = vpack.c.b16 %v691, %v690
        %v705 = vpack.c.b16 %v693, %v692
        %v706 = vpack.c.b16 %v695, %v694
        %v707 = vpack.c.b16 %v697, %v696
        %v708 = vpack.c.b16 %v699, %v698
        %v709 = vpack.c.b16 %v701, %v700
        %718 = vmatprep.subr.bf16.mxu0 0
        %719 = vmatpush1.bf16.msra.mxu0 %v702
        %720 = vmatprep.subr.bf16.mxu0 0
        %721 = vmatpush1.bf16.msra.mxu0 %v703
        %722 = vmatprep.subr.bf16.mxu0 0
        %723 = vmatpush1.bf16.msra.mxu0 %v704
        %724 = vmatprep.subr.bf16.mxu0 0
        %725 = vmatpush1.bf16.msra.mxu0 %v705
        %726 = vmatprep.subr.bf16.mxu0 0
        %727 = vmatpush1.bf16.msra.mxu0 %v706
        %728 = vmatprep.subr.bf16.mxu0 0
        %729 = vmatpush1.bf16.msra.mxu0 %v707
        %730 = vmatprep.subr.bf16.mxu0 0
        %731 = vmatpush1.bf16.msra.mxu0 %v708
        %732 = vmatprep.subr.bf16.mxu0 0
        %733 = vmatpush1.bf16.msra.mxu0 %v709
        %734 = vmatprep.subr.bf16.mxu0 0
        %735 = vmatpush1.bf16.msra.mxu0 0
        %736 = vmatprep.subr.bf16.mxu0 0
        %737 = vmatpush1.bf16.msra.mxu0 0
        %738 = vmatprep.subr.bf16.mxu0 0
        %739 = vmatpush1.bf16.msra.mxu0 0
        %740 = vmatprep.subr.bf16.mxu0 0
        %741 = vmatpush1.bf16.msra.mxu0 0
        %742 = vmatprep.subr.bf16.mxu0 0
        %743 = vmatpush1.bf16.msra.mxu0 0
        %744 = vmatprep.subr.bf16.mxu0 0
        %745 = vmatpush1.bf16.msra.mxu0 0
        %746 = vmatprep.subr.bf16.mxu0 0
        %747 = vmatpush1.bf16.msra.mxu0 0
        %748 = vmatprep.subr.bf16.mxu0 0
        %749 = vmatpush1.bf16.msra.mxu0 0
        %750 = vmatprep.mubr.bf16.mxu0 0
        %751 = vmatmul.mubr.bf16.gmra.mrb[0].mxu0 %v552
        %v752 = vpop.f32.mrb[0].mxu0
        %v753 = vadd.f32 0.0, %v752
        %v754 = vpop.f32.mrb[0].mxu0
        %v755 = vpop.f32.mrb[0].mxu0
        %v756 = vadd.f32 0.0, %v755
        %v757 = vpop.f32.mrb[0].mxu0
        %758 = vmatprep.mubr.bf16.mxu0 0
        %759 = vmatmul.mubr.bf16.gmra.mrb[0].mxu0 %v553
        %v760 = vpop.f32.mrb[0].mxu0
        %v761 = vadd.f32 0.0, %v760
        %v762 = vpop.f32.mrb[0].mxu0
        %v763 = vpop.f32.mrb[0].mxu0
        %v764 = vadd.f32 0.0, %v763
        %v765 = vpop.f32.mrb[0].mxu0
        %766 = vmatprep.mubr.bf16.mxu0 0
        %767 = vmatmul.mubr.bf16.gmra.mrb[0].mxu0 %v554
        %v768 = vpop.f32.mrb[0].mxu0
        %v769 = vadd.f32 0.0, %v768
        %v770 = vpop.f32.mrb[0].mxu0
        %v771 = vpop.f32.mrb[0].mxu0
        %v772 = vadd.f32 0.0, %v771
        %v773 = vpop.f32.mrb[0].mxu0
        %774 = vmatprep.mubr.bf16.mxu0 0
        %775 = vmatmul.mubr.bf16.gmra.mrb[0].mxu0 %v555
        %v776 = vpop.f32.mrb[0].mxu0
        %v777 = vadd.f32 0.0, %v776
        %v778 = vpop.f32.mrb[0].mxu0
        %v779 = vpop.f32.mrb[0].mxu0
        %v780 = vadd.f32 0.0, %v779
        %v781 = vpop.f32.mrb[0].mxu0
        %782 = vmatprep.mubr.bf16.mxu0 0
        %783 = vmatmul.mubr.bf16.gmra.mrb[0].mxu0 %v556
        %v784 = vpop.f32.mrb[0].mxu0
        %v785 = vadd.f32 0.0, %v784
        %v786 = vpop.f32.mrb[0].mxu0
        %v787 = vpop.f32.mrb[0].mxu0
        %v788 = vadd.f32 0.0, %v787
        %v789 = vpop.f32.mrb[0].mxu0
        %790 = vmatprep.mubr.bf16.mxu0 0
        %791 = vmatmul.mubr.bf16.gmra.mrb[0].mxu0 %v557
        %v792 = vpop.f32.mrb[0].mxu0
        %v793 = vadd.f32 0.0, %v792
        %v794 = vpop.f32.mrb[0].mxu0
        %v795 = vpop.f32.mrb[0].mxu0
        %v796 = vadd.f32 0.0, %v795
        %v797 = vpop.f32.mrb[0].mxu0
        %798 = vmatprep.mubr.bf16.mxu0 0
        %799 = vmatmul.mubr.bf16.gmra.mrb[0].mxu0 %v558
        %v800 = vpop.f32.mrb[0].mxu0
        %v801 = vadd.f32 0.0, %v800
        %v802 = vpop.f32.mrb[0].mxu0
        %v803 = vpop.f32.mrb[0].mxu0
        %v804 = vadd.f32 0.0, %v803
        %v805 = vpop.f32.mrb[0].mxu0
        %806 = vmatprep.mubr.bf16.mxu0 0
        %807 = vmatmul.mubr.bf16.gmra.mrb[0].mxu0 %v559
        %v808 = vpop.f32.mrb[0].mxu0
        %v809 = vadd.f32 0.0, %v808
        %v810 = vpop.f32.mrb[0].mxu0
        %v811 = vpop.f32.mrb[0].mxu0
        %v812 = vadd.f32 0.0, %v811
        %v813 = vpop.f32.mrb[0].mxu0
        %814 = vmatprep.mubr.bf16.mxu0 0
        %815 = vmatmul.mubr.bf16.gmra.mrb[0].mxu0 %v560
        %v816 = vpop.f32.mrb[0].mxu0
        %v817 = vadd.f32 0.0, %v816
        %v818 = vpop.f32.mrb[0].mxu0
        %v819 = vpop.f32.mrb[0].mxu0
        %v820 = vadd.f32 0.0, %v819
        %v821 = vpop.f32.mrb[0].mxu0
        %822 = vmatprep.mubr.bf16.mxu0 0
        %823 = vmatmul.mubr.bf16.gmra.mrb[0].mxu0 %v561
        %v824 = vpop.f32.mrb[0].mxu0
        %v825 = vadd.f32 0.0, %v824
        %v826 = vpop.f32.mrb[0].mxu0
        %v827 = vpop.f32.mrb[0].mxu0
        %v828 = vadd.f32 0.0, %v827
        %v829 = vpop.f32.mrb[0].mxu0
        %830 = vmatprep.mubr.bf16.mxu0 0
        %831 = vmatmul.mubr.bf16.gmra.mrb[0].mxu0 %v562
        %v832 = vpop.f32.mrb[0].mxu0
        %v833 = vadd.f32 0.0, %v832
        %v834 = vpop.f32.mrb[0].mxu0
        %v835 = vpop.f32.mrb[0].mxu0
        %v836 = vadd.f32 0.0, %v835
        %v837 = vpop.f32.mrb[0].mxu0
        %838 = vmatprep.mubr.bf16.mxu0 0
        %839 = vmatmul.mubr.bf16.gmra.mrb[0].mxu0 %v563
        %v840 = vpop.f32.mrb[0].mxu0
        %v841 = vadd.f32 0.0, %v840
        %v842 = vpop.f32.mrb[0].mxu0
        %v843 = vpop.f32.mrb[0].mxu0
        %v844 = vadd.f32 0.0, %v843
        %v845 = vpop.f32.mrb[0].mxu0
        %846 = vmatprep.mubr.bf16.mxu0 0
        %847 = vmatmul.mubr.bf16.gmra.mrb[0].mxu0 %v564
        %v848 = vpop.f32.mrb[0].mxu0
        %v849 = vadd.f32 0.0, %v848
        %v850 = vpop.f32.mrb[0].mxu0
        %v851 = vpop.f32.mrb[0].mxu0
        %v852 = vadd.f32 0.0, %v851
        %v853 = vpop.f32.mrb[0].mxu0
        %854 = vmatprep.mubr.bf16.mxu0 0
        %855 = vmatmul.mubr.bf16.gmra.mrb[0].mxu0 %v565
        %v856 = vpop.f32.mrb[0].mxu0
        %v857 = vadd.f32 0.0, %v856
        %v858 = vpop.f32.mrb[0].mxu0
        %v859 = vpop.f32.mrb[0].mxu0
        %v860 = vadd.f32 0.0, %v859
        %v861 = vpop.f32.mrb[0].mxu0
        %862 = vmatprep.mubr.bf16.mxu0 0
        %863 = vmatmul.mubr.bf16.gmra.mrb[0].mxu0 %v566
        %v864 = vpop.f32.mrb[0].mxu0
        %v865 = vadd.f32 0.0, %v864
        %v866 = vpop.f32.mrb[0].mxu0
        %v867 = vpop.f32.mrb[0].mxu0
        %v868 = vadd.f32 0.0, %v867
        %v869 = vpop.f32.mrb[0].mxu0
        %870 = vmatprep.mubr.bf16.mxu0 0
        %871 = vmatmul.mubr.bf16.gmra.mrb[0].mxu0 %v567
        %v872 = vpop.f32.mrb[0].mxu0
        %v873 = vadd.f32 0.0, %v872
        %v874 = vpop.f32.mrb[0].mxu0
        %v875 = vpop.f32.mrb[0].mxu0
        %v876 = vadd.f32 0.0, %v875
        %v877 = vpop.f32.mrb[0].mxu0
        %878 = vdwg.mxu0
        %v879 = vmax.f32 %v753, 0.0
        %v880 = vmax.f32 %v756, 0.0
        %v881 = vmax.f32 %v761, 0.0
        %v882 = vmax.f32 %v764, 0.0
        %v883 = vmax.f32 %v769, 0.0
        %v884 = vmax.f32 %v772, 0.0
        %v885 = vmax.f32 %v777, 0.0
        %v886 = vmax.f32 %v780, 0.0
        %v887 = vmax.f32 %v785, 0.0
        %v888 = vmax.f32 %v788, 0.0
        %v889 = vmax.f32 %v793, 0.0
        %v890 = vmax.f32 %v796, 0.0
        %v891 = vmax.f32 %v801, 0.0
        %v892 = vmax.f32 %v804, 0.0
        %v893 = vmax.f32 %v809, 0.0
        %v894 = vmax.f32 %v812, 0.0
        %v895 = vmax.f32 %v817, 0.0
        %v896 = vmax.f32 %v820, 0.0
        %v897 = vmax.f32 %v825, 0.0
        %v898 = vmax.f32 %v828, 0.0
        %v899 = vmax.f32 %v833, 0.0
        %v900 = vmax.f32 %v836, 0.0
        %v901 = vmax.f32 %v841, 0.0
        %v902 = vmax.f32 %v844, 0.0
        %v903 = vmax.f32 %v849, 0.0
        %v904 = vmax.f32 %v852, 0.0
        %v905 = vmax.f32 %v857, 0.0
        %v906 = vmax.f32 %v860, 0.0
        %v907 = vmax.f32 %v865, 0.0
        %v908 = vmax.f32 %v868, 0.0
        %v909 = vmax.f32 %v873, 0.0
        %v910 = vmax.f32 %v876, 0.0
        %v911 = vmul.f32 %v879, %v879
        %v912 = vmul.f32 %v880, %v880
        %v913 = vmul.f32 %v881, %v881
        %v914 = vmul.f32 %v882, %v882
        %v915 = vmul.f32 %v883, %v883
        %v916 = vmul.f32 %v884, %v884
        %v917 = vmul.f32 %v885, %v885
        %v918 = vmul.f32 %v886, %v886
        %v919 = vmul.f32 %v887, %v887
        %v920 = vmul.f32 %v888, %v888
        %v921 = vmul.f32 %v889, %v889
        %v922 = vmul.f32 %v890, %v890
        %v923 = vmul.f32 %v891, %v891
        %v924 = vmul.f32 %v892, %v892
        %v925 = vmul.f32 %v893, %v893
        %v926 = vmul.f32 %v894, %v894
        %v927 = vmul.f32 %v895, %v895
        %v928 = vmul.f32 %v896, %v896
        %v929 = vmul.f32 %v897, %v897
        %v930 = vmul.f32 %v898, %v898
        %v931 = vmul.f32 %v899, %v899
        %v932 = vmul.f32 %v900, %v900
        %v933 = vmul.f32 %v901, %v901
        %v934 = vmul.f32 %v902, %v902
        %v935 = vmul.f32 %v903, %v903
        %v936 = vmul.f32 %v904, %v904
        %v937 = vmul.f32 %v905, %v905
        %v938 = vmul.f32 %v906, %v906
        %v939 = vmul.f32 %v907, %v907
        %v940 = vmul.f32 %v908, %v908
        %v941 = vmul.f32 %v909, %v909
        %v942 = vmul.f32 %v910, %v910
        %v943 = vpack.c.bf16 %v912, %v911
        %v944 = vpack.c.bf16 %v914, %v913
        %v945 = vpack.c.bf16 %v916, %v915
        %v946 = vpack.c.bf16 %v918, %v917
        %v947 = vpack.c.bf16 %v920, %v919
        %v948 = vpack.c.bf16 %v922, %v921
        %v949 = vpack.c.bf16 %v924, %v923
        %v950 = vpack.c.bf16 %v926, %v925
        %v951 = vpack.c.bf16 %v928, %v927
        %v952 = vpack.c.bf16 %v930, %v929
        %v953 = vpack.c.bf16 %v932, %v931
        %v954 = vpack.c.bf16 %v934, %v933
        %v955 = vpack.c.bf16 %v936, %v935
        %v956 = vpack.c.bf16 %v938, %v937
        %v957 = vpack.c.bf16 %v940, %v939
        %v958 = vpack.c.bf16 %v942, %v941
        %v959 = vld [vmem:[#allocation10] sm:$0xf]
        %v960 = vld [vmem:[#allocation10 + $0x4] sm:$0xf]
        %v961 = vld [vmem:[#allocation10 + $0x8] sm:$0xf]
        %v962 = vld [vmem:[#allocation10 + $0xc] sm:$0xf]
        %v963 = vld [vmem:[#allocation10 + $0x10] sm:$0xf]
        %v964 = vld [vmem:[#allocation10 + $0x14] sm:$0xf]
        %v965 = vld [vmem:[#allocation10 + $0x18] sm:$0xf]
        %v966 = vld [vmem:[#allocation10 + $0x1c] sm:$0xf]
        %v967 = vld [vmem:[#allocation10 + $0x20] sm:$0xf]
        %v968 = vld [vmem:[#allocation10 + $0x24] sm:$0xf]
        %v969 = vld [vmem:[#allocation10 + $0x28] sm:$0xf]
        %v970 = vld [vmem:[#allocation10 + $0x2c] sm:$0xf]
        %v971 = vld [vmem:[#allocation10 + $0x30] sm:$0xf]
        %v972 = vld [vmem:[#allocation10 + $0x34] sm:$0xf]
        %v973 = vld [vmem:[#allocation10 + $0x38] sm:$0xf]
        %v974 = vld [vmem:[#allocation10 + $0x3c] sm:$0xf]
        %v991 = vunpack.c.l.b16 %v959
        %v992 = vunpack.c.l.b16 %v960
        %v993 = vunpack.c.l.b16 %v961
        %v994 = vunpack.c.l.b16 %v962
        %v995 = vunpack.c.l.b16 %v963
        %v996 = vunpack.c.l.b16 %v964
        %v997 = vunpack.c.l.b16 %v965
        %v998 = vunpack.c.l.b16 %v966
        %v999 = vunpack.c.l.b16 %v967
        %v1000 = vunpack.c.l.b16 %v968
        %v1001 = vunpack.c.l.b16 %v969
        %v1002 = vunpack.c.l.b16 %v970
        %v1003 = vunpack.c.l.b16 %v971
        %v1004 = vunpack.c.l.b16 %v972
        %v1005 = vunpack.c.l.b16 %v973
        %v1006 = vunpack.c.l.b16 %v974
        %v1007 = vpack.c.b16 %v992, %v991
        %v1008 = vpack.c.b16 %v994, %v993
        %v1009 = vpack.c.b16 %v996, %v995
        %v1010 = vpack.c.b16 %v998, %v997
        %v1011 = vpack.c.b16 %v1000, %v999
        %v1012 = vpack.c.b16 %v1002, %v1001
        %v1013 = vpack.c.b16 %v1004, %v1003
        %v1014 = vpack.c.b16 %v1006, %v1005
        %1023 = vmatprep.subr.bf16.mxu0 0
        %1024 = vmatpush1.bf16.msra.mxu0 %v1007
        %1025 = vmatprep.subr.bf16.mxu0 0
        %1026 = vmatpush1.bf16.msra.mxu0 %v1008
        %1027 = vmatprep.subr.bf16.mxu0 0
        %1028 = vmatpush1.bf16.msra.mxu0 %v1009
        %1029 = vmatprep.subr.bf16.mxu0 0
        %1030 = vmatpush1.bf16.msra.mxu0 %v1010
        %1031 = vmatprep.subr.bf16.mxu0 0
        %1032 = vmatpush1.bf16.msra.mxu0 %v1011
        %1033 = vmatprep.subr.bf16.mxu0 0
        %1034 = vmatpush1.bf16.msra.mxu0 %v1012
        %1035 = vmatprep.subr.bf16.mxu0 0
        %1036 = vmatpush1.bf16.msra.mxu0 %v1013
        %1037 = vmatprep.subr.bf16.mxu0 0
        %1038 = vmatpush1.bf16.msra.mxu0 %v1014
        %1039 = vmatprep.subr.bf16.mxu0 0
        %1040 = vmatpush1.bf16.msra.mxu0 0
        %1041 = vmatprep.subr.bf16.mxu0 0
        %1042 = vmatpush1.bf16.msra.mxu0 0
        %1043 = vmatprep.subr.bf16.mxu0 0
        %1044 = vmatpush1.bf16.msra.mxu0 0
        %1045 = vmatprep.subr.bf16.mxu0 0
        %1046 = vmatpush1.bf16.msra.mxu0 0
        %1047 = vmatprep.subr.bf16.mxu0 0
        %1048 = vmatpush1.bf16.msra.mxu0 0
        %1049 = vmatprep.subr.bf16.mxu0 0
        %1050 = vmatpush1.bf16.msra.mxu0 0
        %1051 = vmatprep.subr.bf16.mxu0 0
        %1052 = vmatpush1.bf16.msra.mxu0 0
        %1053 = vmatprep.subr.bf16.mxu0 0
        %1054 = vmatpush1.bf16.msra.mxu0 0
        %1055 = vmatprep.mubr.bf16.mxu0 0
        %1056 = vmatmul.mubr.bf16.gmra.mrb[0].mxu0 %v943
        %v1057 = vpop.f32.mrb[0].mxu0
        %v1058 = vadd.f32 0.0, %v1057
        %v1059 = vpop.f32.mrb[0].mxu0
        %v1060 = vpop.f32.mrb[0].mxu0
        %v1061 = vadd.f32 0.0, %v1060
        %v1062 = vpop.f32.mrb[0].mxu0
        %1063 = vmatprep.mubr.bf16.mxu0 0
        %1064 = vmatmul.mubr.bf16.gmra.mrb[0].mxu0 %v944
        %v1065 = vpop.f32.mrb[0].mxu0
        %v1066 = vadd.f32 0.0, %v1065
        %v1067 = vpop.f32.mrb[0].mxu0
        %v1068 = vpop.f32.mrb[0].mxu0
        %v1069 = vadd.f32 0.0, %v1068
        %v1070 = vpop.f32.mrb[0].mxu0
        %1071 = vmatprep.mubr.bf16.mxu0 0
        %1072 = vmatmul.mubr.bf16.gmra.mrb[0].mxu0 %v945
        %v1073 = vpop.f32.mrb[0].mxu0
        %v1074 = vadd.f32 0.0, %v1073
        %v1075 = vpop.f32.mrb[0].mxu0
        %v1076 = vpop.f32.mrb[0].mxu0
        %v1077 = vadd.f32 0.0, %v1076
        %v1078 = vpop.f32.mrb[0].mxu0
        %1079 = vmatprep.mubr.bf16.mxu0 0
        %1080 = vmatmul.mubr.bf16.gmra.mrb[0].mxu0 %v946
        %v1081 = vpop.f32.mrb[0].mxu0
        %v1082 = vadd.f32 0.0, %v1081
        %v1083 = vpop.f32.mrb[0].mxu0
        %v1084 = vpop.f32.mrb[0].mxu0
        %v1085 = vadd.f32 0.0, %v1084
        %v1086 = vpop.f32.mrb[0].mxu0
        %1087 = vmatprep.mubr.bf16.mxu0 0
        %1088 = vmatmul.mubr.bf16.gmra.mrb[0].mxu0 %v947
        %v1089 = vpop.f32.mrb[0].mxu0
        %v1090 = vadd.f32 0.0, %v1089
        %v1091 = vpop.f32.mrb[0].mxu0
        %v1092 = vpop.f32.mrb[0].mxu0
        %v1093 = vadd.f32 0.0, %v1092
        %v1094 = vpop.f32.mrb[0].mxu0
        %1095 = vmatprep.mubr.bf16.mxu0 0
        %1096 = vmatmul.mubr.bf16.gmra.mrb[0].mxu0 %v948
        %v1097 = vpop.f32.mrb[0].mxu0
        %v1098 = vadd.f32 0.0, %v1097
        %v1099 = vpop.f32.mrb[0].mxu0
        %v1100 = vpop.f32.mrb[0].mxu0
        %v1101 = vadd.f32 0.0, %v1100
        %v1102 = vpop.f32.mrb[0].mxu0
        %1103 = vmatprep.mubr.bf16.mxu0 0
        %1104 = vmatmul.mubr.bf16.gmra.mrb[0].mxu0 %v949
        %v1105 = vpop.f32.mrb[0].mxu0
        %v1106 = vadd.f32 0.0, %v1105
        %v1107 = vpop.f32.mrb[0].mxu0
        %v1108 = vpop.f32.mrb[0].mxu0
        %v1109 = vadd.f32 0.0, %v1108
        %v1110 = vpop.f32.mrb[0].mxu0
        %1111 = vmatprep.mubr.bf16.mxu0 0
        %1112 = vmatmul.mubr.bf16.gmra.mrb[0].mxu0 %v950
        %v1113 = vpop.f32.mrb[0].mxu0
        %v1114 = vadd.f32 0.0, %v1113
        %v1115 = vpop.f32.mrb[0].mxu0
        %v1116 = vpop.f32.mrb[0].mxu0
        %v1117 = vadd.f32 0.0, %v1116
        %v1118 = vpop.f32.mrb[0].mxu0
        %1119 = vmatprep.mubr.bf16.mxu0 0
        %1120 = vmatmul.mubr.bf16.gmra.mrb[0].mxu0 %v951
        %v1121 = vpop.f32.mrb[0].mxu0
        %v1122 = vadd.f32 0.0, %v1121
        %v1123 = vpop.f32.mrb[0].mxu0
        %v1124 = vpop.f32.mrb[0].mxu0
        %v1125 = vadd.f32 0.0, %v1124
        %v1126 = vpop.f32.mrb[0].mxu0
        %1127 = vmatprep.mubr.bf16.mxu0 0
        %1128 = vmatmul.mubr.bf16.gmra.mrb[0].mxu0 %v952
        %v1129 = vpop.f32.mrb[0].mxu0
        %v1130 = vadd.f32 0.0, %v1129
        %v1131 = vpop.f32.mrb[0].mxu0
        %v1132 = vpop.f32.mrb[0].mxu0
        %v1133 = vadd.f32 0.0, %v1132
        %v1134 = vpop.f32.mrb[0].mxu0
        %1135 = vmatprep.mubr.bf16.mxu0 0
        %1136 = vmatmul.mubr.bf16.gmra.mrb[0].mxu0 %v953
        %v1137 = vpop.f32.mrb[0].mxu0
        %v1138 = vadd.f32 0.0, %v1137
        %v1139 = vpop.f32.mrb[0].mxu0
        %v1140 = vpop.f32.mrb[0].mxu0
        %v1141 = vadd.f32 0.0, %v1140
        %v1142 = vpop.f32.mrb[0].mxu0
        %1143 = vmatprep.mubr.bf16.mxu0 0
        %1144 = vmatmul.mubr.bf16.gmra.mrb[0].mxu0 %v954
        %v1145 = vpop.f32.mrb[0].mxu0
        %v1146 = vadd.f32 0.0, %v1145
        %v1147 = vpop.f32.mrb[0].mxu0
        %v1148 = vpop.f32.mrb[0].mxu0
        %v1149 = vadd.f32 0.0, %v1148
        %v1150 = vpop.f32.mrb[0].mxu0
        %1151 = vmatprep.mubr.bf16.mxu0 0
        %1152 = vmatmul.mubr.bf16.gmra.mrb[0].mxu0 %v955
        %v1153 = vpop.f32.mrb[0].mxu0
        %v1154 = vadd.f32 0.0, %v1153
        %v1155 = vpop.f32.mrb[0].mxu0
        %v1156 = vpop.f32.mrb[0].mxu0
        %v1157 = vadd.f32 0.0, %v1156
        %v1158 = vpop.f32.mrb[0].mxu0
        %1159 = vmatprep.mubr.bf16.mxu0 0
        %1160 = vmatmul.mubr.bf16.gmra.mrb[0].mxu0 %v956
        %v1161 = vpop.f32.mrb[0].mxu0
        %v1162 = vadd.f32 0.0, %v1161
        %v1163 = vpop.f32.mrb[0].mxu0
        %v1164 = vpop.f32.mrb[0].mxu0
        %v1165 = vadd.f32 0.0, %v1164
        %v1166 = vpop.f32.mrb[0].mxu0
        %1167 = vmatprep.mubr.bf16.mxu0 0
        %1168 = vmatmul.mubr.bf16.gmra.mrb[0].mxu0 %v957
        %v1169 = vpop.f32.mrb[0].mxu0
        %v1170 = vadd.f32 0.0, %v1169
        %v1171 = vpop.f32.mrb[0].mxu0
        %v1172 = vpop.f32.mrb[0].mxu0
        %v1173 = vadd.f32 0.0, %v1172
        %v1174 = vpop.f32.mrb[0].mxu0
        %1175 = vmatprep.mubr.bf16.mxu0 0
        %1176 = vmatmul.mubr.bf16.gmra.mrb[0].mxu0 %v958
        %v1177 = vpop.f32.mrb[0].mxu0
        %v1178 = vadd.f32 0.0, %v1177
        %v1179 = vpop.f32.mrb[0].mxu0
        %v1180 = vpop.f32.mrb[0].mxu0
        %v1181 = vadd.f32 0.0, %v1180
        %v1182 = vpop.f32.mrb[0].mxu0
        %1183 = vdwg.mxu0
        %v1184 = vld [vmem:[#allocation8] sm:$0xf]
        %v1185 = vld [vmem:[#allocation8 + $0x4] sm:$0xf]
        %v1186 = vld [vmem:[#allocation8 + $0x8] sm:$0xf]
        %v1187 = vld [vmem:[#allocation8 + $0xc] sm:$0xf]
        %v1188 = vld [vmem:[#allocation8 + $0x10] sm:$0xf]
        %v1189 = vld [vmem:[#allocation8 + $0x14] sm:$0xf]
        %v1190 = vld [vmem:[#allocation8 + $0x18] sm:$0xf]
        %v1191 = vld [vmem:[#allocation8 + $0x1c] sm:$0xf]
        %v1192 = vld [vmem:[#allocation8 + $0x20] sm:$0xf]
        %v1193 = vld [vmem:[#allocation8 + $0x24] sm:$0xf]
        %v1194 = vld [vmem:[#allocation8 + $0x28] sm:$0xf]
        %v1195 = vld [vmem:[#allocation8 + $0x2c] sm:$0xf]
        %v1196 = vld [vmem:[#allocation8 + $0x30] sm:$0xf]
        %v1197 = vld [vmem:[#allocation8 + $0x34] sm:$0xf]
        %v1198 = vld [vmem:[#allocation8 + $0x38] sm:$0xf]
        %v1199 = vld [vmem:[#allocation8 + $0x3c] sm:$0xf]
        %v1216 = vunpack.c.l.b16 %v1184
        %v1217 = vunpack.c.l.b16 %v1185
        %v1218 = vunpack.c.l.b16 %v1186
        %v1219 = vunpack.c.l.b16 %v1187
        %v1220 = vunpack.c.l.b16 %v1188
        %v1221 = vunpack.c.l.b16 %v1189
        %v1222 = vunpack.c.l.b16 %v1190
        %v1223 = vunpack.c.l.b16 %v1191
        %v1224 = vunpack.c.l.b16 %v1192
        %v1225 = vunpack.c.l.b16 %v1193
        %v1226 = vunpack.c.l.b16 %v1194
        %v1227 = vunpack.c.l.b16 %v1195
        %v1228 = vunpack.c.l.b16 %v1196
        %v1229 = vunpack.c.l.b16 %v1197
        %v1230 = vunpack.c.l.b16 %v1198
        %v1231 = vunpack.c.l.b16 %v1199
        %v1232 = vpack.c.b16 %v1217, %v1216
        %v1233 = vpack.c.b16 %v1219, %v1218
        %v1234 = vpack.c.b16 %v1221, %v1220
        %v1235 = vpack.c.b16 %v1223, %v1222
        %v1236 = vpack.c.b16 %v1225, %v1224
        %v1237 = vpack.c.b16 %v1227, %v1226
        %v1238 = vpack.c.b16 %v1229, %v1228
        %v1239 = vpack.c.b16 %v1231, %v1230
        %1248 = vmatprep.subr.bf16.mxu0 0
        %1249 = vmatpush1.bf16.msra.mxu0 %v1232
        %1250 = vmatprep.subr.bf16.mxu0 0
        %1251 = vmatpush1.bf16.msra.mxu0 %v1233
        %1252 = vmatprep.subr.bf16.mxu0 0
        %1253 = vmatpush1.bf16.msra.mxu0 %v1234
        %1254 = vmatprep.subr.bf16.mxu0 0
        %1255 = vmatpush1.bf16.msra.mxu0 %v1235
        %1256 = vmatprep.subr.bf16.mxu0 0
        %1257 = vmatpush1.bf16.msra.mxu0 %v1236
        %1258 = vmatprep.subr.bf16.mxu0 0
        %1259 = vmatpush1.bf16.msra.mxu0 %v1237
        %1260 = vmatprep.subr.bf16.mxu0 0
        %1261 = vmatpush1.bf16.msra.mxu0 %v1238
        %1262 = vmatprep.subr.bf16.mxu0 0
        %1263 = vmatpush1.bf16.msra.mxu0 %v1239
        %1264 = vmatprep.subr.bf16.mxu0 0
        %1265 = vmatpush1.bf16.msra.mxu0 0
        %1266 = vmatprep.subr.bf16.mxu0 0
        %1267 = vmatpush1.bf16.msra.mxu0 0
        %1268 = vmatprep.subr.bf16.mxu0 0
        %1269 = vmatpush1.bf16.msra.mxu0 0
        %1270 = vmatprep.subr.bf16.mxu0 0
        %1271 = vmatpush1.bf16.msra.mxu0 0
        %1272 = vmatprep.subr.bf16.mxu0 0
        %1273 = vmatpush1.bf16.msra.mxu0 0
        %1274 = vmatprep.subr.bf16.mxu0 0
        %1275 = vmatpush1.bf16.msra.mxu0 0
        %1276 = vmatprep.subr.bf16.mxu0 0
        %1277 = vmatpush1.bf16.msra.mxu0 0
        %1278 = vmatprep.subr.bf16.mxu0 0
        %1279 = vmatpush1.bf16.msra.mxu0 0
        %1280 = vmatprep.mubr.bf16.mxu0 0
        %1281 = vmatmul.mubr.bf16.gmra.mrb[0].mxu0 %v638
        %v1282 = vpop.f32.mrb[0].mxu0
        %v1283 = vadd.f32 0.0, %v1282
        %v1284 = vpop.f32.mrb[0].mxu0
        %v1285 = vpop.f32.mrb[0].mxu0
        %v1286 = vadd.f32 0.0, %v1285
        %v1287 = vpop.f32.mrb[0].mxu0
        %1288 = vmatprep.mubr.bf16.mxu0 0
        %1289 = vmatmul.mubr.bf16.gmra.mrb[0].mxu0 %v639
        %v1290 = vpop.f32.mrb[0].mxu0
        %v1291 = vadd.f32 0.0, %v1290
        %v1292 = vpop.f32.mrb[0].mxu0
        %v1293 = vpop.f32.mrb[0].mxu0
        %v1294 = vadd.f32 0.0, %v1293
        %v1295 = vpop.f32.mrb[0].mxu0
        %1296 = vmatprep.mubr.bf16.mxu0 0
        %1297 = vmatmul.mubr.bf16.gmra.mrb[0].mxu0 %v640
        %v1298 = vpop.f32.mrb[0].mxu0
        %v1299 = vadd.f32 0.0, %v1298
        %v1300 = vpop.f32.mrb[0].mxu0
        %v1301 = vpop.f32.mrb[0].mxu0
        %v1302 = vadd.f32 0.0, %v1301
        %v1303 = vpop.f32.mrb[0].mxu0
        %1304 = vmatprep.mubr.bf16.mxu0 0
        %1305 = vmatmul.mubr.bf16.gmra.mrb[0].mxu0 %v641
        %v1306 = vpop.f32.mrb[0].mxu0
        %v1307 = vadd.f32 0.0, %v1306
        %v1308 = vpop.f32.mrb[0].mxu0
        %v1309 = vpop.f32.mrb[0].mxu0
        %v1310 = vadd.f32 0.0, %v1309
        %v1311 = vpop.f32.mrb[0].mxu0
        %1312 = vmatprep.mubr.bf16.mxu0 0
        %1313 = vmatmul.mubr.bf16.gmra.mrb[0].mxu0 %v642
        %v1314 = vpop.f32.mrb[0].mxu0
        %v1315 = vadd.f32 0.0, %v1314
        %v1316 = vpop.f32.mrb[0].mxu0
        %v1317 = vpop.f32.mrb[0].mxu0
        %v1318 = vadd.f32 0.0, %v1317
        %v1319 = vpop.f32.mrb[0].mxu0
        %1320 = vmatprep.mubr.bf16.mxu0 0
        %1321 = vmatmul.mubr.bf16.gmra.mrb[0].mxu0 %v643
        %v1322 = vpop.f32.mrb[0].mxu0
        %v1323 = vadd.f32 0.0, %v1322
        %v1324 = vpop.f32.mrb[0].mxu0
        %v1325 = vpop.f32.mrb[0].mxu0
        %v1326 = vadd.f32 0.0, %v1325
        %v1327 = vpop.f32.mrb[0].mxu0
        %1328 = vmatprep.mubr.bf16.mxu0 0
        %1329 = vmatmul.mubr.bf16.gmra.mrb[0].mxu0 %v644
        %v1330 = vpop.f32.mrb[0].mxu0
        %v1331 = vadd.f32 0.0, %v1330
        %v1332 = vpop.f32.mrb[0].mxu0
        %v1333 = vpop.f32.mrb[0].mxu0
        %v1334 = vadd.f32 0.0, %v1333
        %v1335 = vpop.f32.mrb[0].mxu0
        %1336 = vmatprep.mubr.bf16.mxu0 0
        %1337 = vmatmul.mubr.bf16.gmra.mrb[0].mxu0 %v645
        %v1338 = vpop.f32.mrb[0].mxu0
        %v1339 = vadd.f32 0.0, %v1338
        %v1340 = vpop.f32.mrb[0].mxu0
        %v1341 = vpop.f32.mrb[0].mxu0
        %v1342 = vadd.f32 0.0, %v1341
        %v1343 = vpop.f32.mrb[0].mxu0
        %1344 = vmatprep.mubr.bf16.mxu0 0
        %1345 = vmatmul.mubr.bf16.gmra.mrb[0].mxu0 %v646
        %v1346 = vpop.f32.mrb[0].mxu0
        %v1347 = vadd.f32 0.0, %v1346
        %v1348 = vpop.f32.mrb[0].mxu0
        %v1349 = vpop.f32.mrb[0].mxu0
        %v1350 = vadd.f32 0.0, %v1349
        %v1351 = vpop.f32.mrb[0].mxu0
        %1352 = vmatprep.mubr.bf16.mxu0 0
        %1353 = vmatmul.mubr.bf16.gmra.mrb[0].mxu0 %v647
        %v1354 = vpop.f32.mrb[0].mxu0
        %v1355 = vadd.f32 0.0, %v1354
        %v1356 = vpop.f32.mrb[0].mxu0
        %v1357 = vpop.f32.mrb[0].mxu0
        %v1358 = vadd.f32 0.0, %v1357
        %v1359 = vpop.f32.mrb[0].mxu0
        %1360 = vmatprep.mubr.bf16.mxu0 0
        %1361 = vmatmul.mubr.bf16.gmra.mrb[0].mxu0 %v648
        %v1362 = vpop.f32.mrb[0].mxu0
        %v1363 = vadd.f32 0.0, %v1362
        %v1364 = vpop.f32.mrb[0].mxu0
        %v1365 = vpop.f32.mrb[0].mxu0
        %v1366 = vadd.f32 0.0, %v1365
        %v1367 = vpop.f32.mrb[0].mxu0
        %1368 = vmatprep.mubr.bf16.mxu0 0
        %1369 = vmatmul.mubr.bf16.gmra.mrb[0].mxu0 %v649
        %v1370 = vpop.f32.mrb[0].mxu0
        %v1371 = vadd.f32 0.0, %v1370
        %v1372 = vpop.f32.mrb[0].mxu0
        %v1373 = vpop.f32.mrb[0].mxu0
        %v1374 = vadd.f32 0.0, %v1373
        %v1375 = vpop.f32.mrb[0].mxu0
        %1376 = vmatprep.mubr.bf16.mxu0 0
        %1377 = vmatmul.mubr.bf16.gmra.mrb[0].mxu0 %v650
        %v1378 = vpop.f32.mrb[0].mxu0
        %v1379 = vadd.f32 0.0, %v1378
        %v1380 = vpop.f32.mrb[0].mxu0
        %v1381 = vpop.f32.mrb[0].mxu0
        %v1382 = vadd.f32 0.0, %v1381
        %v1383 = vpop.f32.mrb[0].mxu0
        %1384 = vmatprep.mubr.bf16.mxu0 0
        %1385 = vmatmul.mubr.bf16.gmra.mrb[0].mxu0 %v651
        %v1386 = vpop.f32.mrb[0].mxu0
        %v1387 = vadd.f32 0.0, %v1386
        %v1388 = vpop.f32.mrb[0].mxu0
        %v1389 = vpop.f32.mrb[0].mxu0
        %v1390 = vadd.f32 0.0, %v1389
        %v1391 = vpop.f32.mrb[0].mxu0
        %1392 = vmatprep.mubr.bf16.mxu0 0
        %1393 = vmatmul.mubr.bf16.gmra.mrb[0].mxu0 %v652
        %v1394 = vpop.f32.mrb[0].mxu0
        %v1395 = vadd.f32 0.0, %v1394
        %v1396 = vpop.f32.mrb[0].mxu0
        %v1397 = vpop.f32.mrb[0].mxu0
        %v1398 = vadd.f32 0.0, %v1397
        %v1399 = vpop.f32.mrb[0].mxu0
        %1400 = vmatprep.mubr.bf16.mxu0 0
        %1401 = vmatmul.mubr.bf16.gmra.mrb[0].mxu0 %v653
        %v1402 = vpop.f32.mrb[0].mxu0
        %v1403 = vadd.f32 0.0, %v1402
        %v1404 = vpop.f32.mrb[0].mxu0
        %v1405 = vpop.f32.mrb[0].mxu0
        %v1406 = vadd.f32 0.0, %v1405
        %v1407 = vpop.f32.mrb[0].mxu0
        %1408 = vdwg.mxu0
        %v1409 = vxor.u32 %v1283, 2147483648
        %v1410 = vxor.u32 %v1286, 2147483648
        %v1411 = vxor.u32 %v1291, 2147483648
        %v1412 = vxor.u32 %v1294, 2147483648
        %v1413 = vxor.u32 %v1299, 2147483648
        %v1414 = vxor.u32 %v1302, 2147483648
        %v1415 = vxor.u32 %v1307, 2147483648
        %v1416 = vxor.u32 %v1310, 2147483648
        %v1417 = vxor.u32 %v1315, 2147483648
        %v1418 = vxor.u32 %v1318, 2147483648
        %v1419 = vxor.u32 %v1323, 2147483648
        %v1420 = vxor.u32 %v1326, 2147483648
        %v1421 = vxor.u32 %v1331, 2147483648
        %v1422 = vxor.u32 %v1334, 2147483648
        %v1423 = vxor.u32 %v1339, 2147483648
        %v1424 = vxor.u32 %v1342, 2147483648
        %v1425 = vxor.u32 %v1347, 2147483648
        %v1426 = vxor.u32 %v1350, 2147483648
        %v1427 = vxor.u32 %v1355, 2147483648
        %v1428 = vxor.u32 %v1358, 2147483648
        %v1429 = vxor.u32 %v1363, 2147483648
        %v1430 = vxor.u32 %v1366, 2147483648
        %v1431 = vxor.u32 %v1371, 2147483648
        %v1432 = vxor.u32 %v1374, 2147483648
        %v1433 = vxor.u32 %v1379, 2147483648
        %v1434 = vxor.u32 %v1382, 2147483648
        %v1435 = vxor.u32 %v1387, 2147483648
        %v1436 = vxor.u32 %v1390, 2147483648
        %v1437 = vxor.u32 %v1395, 2147483648
        %v1438 = vxor.u32 %v1398, 2147483648
        %v1439 = vxor.u32 %v1403, 2147483648
        %v1440 = vxor.u32 %v1406, 2147483648
        %v1441 = vmul.f32 %v1409, 1.442695
        %v1442 = vpow.pop %v1441
        %v1443 = vmul.f32 %v1410, 1.442695
        %v1444 = vpow.pop %v1443
        %v1445 = vmul.f32 %v1411, 1.442695
        %v1446 = vpow.pop %v1445
        %v1447 = vmul.f32 %v1412, 1.442695
        %v1448 = vpow.pop %v1447
        %v1449 = vmul.f32 %v1413, 1.442695
        %v1450 = vpow.pop %v1449
        %v1451 = vmul.f32 %v1414, 1.442695
        %v1452 = vpow.pop %v1451
        %v1453 = vmul.f32 %v1415, 1.442695
        %v1454 = vpow.pop %v1453
        %v1455 = vmul.f32 %v1416, 1.442695
        %v1456 = vpow.pop %v1455
        %v1457 = vmul.f32 %v1417, 1.442695
        %v1458 = vpow.pop %v1457
        %v1459 = vmul.f32 %v1418, 1.442695
        %v1460 = vpow.pop %v1459
        %v1461 = vmul.f32 %v1419, 1.442695
        %v1462 = vpow.pop %v1461
        %v1463 = vmul.f32 %v1420, 1.442695
        %v1464 = vpow.pop %v1463
        %v1465 = vmul.f32 %v1421, 1.442695
        %v1466 = vpow.pop %v1465
        %v1467 = vmul.f32 %v1422, 1.442695
        %v1468 = vpow.pop %v1467
        %v1469 = vmul.f32 %v1423, 1.442695
        %v1470 = vpow.pop %v1469
        %v1471 = vmul.f32 %v1424, 1.442695
        %v1472 = vpow.pop %v1471
        %v1473 = vmul.f32 %v1425, 1.442695
        %v1474 = vpow.pop %v1473
        %v1475 = vmul.f32 %v1426, 1.442695
        %v1476 = vpow.pop %v1475
        %v1477 = vmul.f32 %v1427, 1.442695
        %v1478 = vpow.pop %v1477
        %v1479 = vmul.f32 %v1428, 1.442695
        %v1480 = vpow.pop %v1479
        %v1481 = vmul.f32 %v1429, 1.442695
        %v1482 = vpow.pop %v1481
        %v1483 = vmul.f32 %v1430, 1.442695
        %v1484 = vpow.pop %v1483
        %v1485 = vmul.f32 %v1431, 1.442695
        %v1486 = vpow.pop %v1485
        %v1487 = vmul.f32 %v1432, 1.442695
        %v1488 = vpow.pop %v1487
        %v1489 = vmul.f32 %v1433, 1.442695
        %v1490 = vpow.pop %v1489
        %v1491 = vmul.f32 %v1434, 1.442695
        %v1492 = vpow.pop %v1491
        %v1493 = vmul.f32 %v1435, 1.442695
        %v1494 = vpow.pop %v1493
        %v1495 = vmul.f32 %v1436, 1.442695
        %v1496 = vpow.pop %v1495
        %v1497 = vmul.f32 %v1437, 1.442695
        %v1498 = vpow.pop %v1497
        %v1499 = vmul.f32 %v1438, 1.442695
        %v1500 = vpow.pop %v1499
        %v1501 = vmul.f32 %v1439, 1.442695
        %v1502 = vpow.pop %v1501
        %v1503 = vmul.f32 %v1440, 1.442695
        %v1504 = vpow.pop %v1503
        %v1505 = vadd.f32 %v1442, 1.0
        %v1506 = vadd.f32 %v1444, 1.0
        %v1507 = vadd.f32 %v1446, 1.0
        %v1508 = vadd.f32 %v1448, 1.0
        %v1509 = vadd.f32 %v1450, 1.0
        %v1510 = vadd.f32 %v1452, 1.0
        %v1511 = vadd.f32 %v1454, 1.0
        %v1512 = vadd.f32 %v1456, 1.0
        %v1513 = vadd.f32 %v1458, 1.0
        %v1514 = vadd.f32 %v1460, 1.0
        %v1515 = vadd.f32 %v1462, 1.0
        %v1516 = vadd.f32 %v1464, 1.0
        %v1517 = vadd.f32 %v1466, 1.0
        %v1518 = vadd.f32 %v1468, 1.0
        %v1519 = vadd.f32 %v1470, 1.0
        %v1520 = vadd.f32 %v1472, 1.0
        %v1521 = vadd.f32 %v1474, 1.0
        %v1522 = vadd.f32 %v1476, 1.0
        %v1523 = vadd.f32 %v1478, 1.0
        %v1524 = vadd.f32 %v1480, 1.0
        %v1525 = vadd.f32 %v1482, 1.0
        %v1526 = vadd.f32 %v1484, 1.0
        %v1527 = vadd.f32 %v1486, 1.0
        %v1528 = vadd.f32 %v1488, 1.0
        %v1529 = vadd.f32 %v1490, 1.0
        %v1530 = vadd.f32 %v1492, 1.0
        %v1531 = vadd.f32 %v1494, 1.0
        %v1532 = vadd.f32 %v1496, 1.0
        %v1533 = vadd.f32 %v1498, 1.0
        %v1534 = vadd.f32 %v1500, 1.0
        %v1535 = vadd.f32 %v1502, 1.0
        %v1536 = vadd.f32 %v1504, 1.0
        %v1537 = vrcp.pop %v1505
        %v1538 = vmul.f32 1.0, %v1537
        %v1539 = vrcp.pop %v1506
        %v1540 = vmul.f32 1.0, %v1539
        %v1541 = vrcp.pop %v1507
        %v1542 = vmul.f32 1.0, %v1541
        %v1543 = vrcp.pop %v1508
        %v1544 = vmul.f32 1.0, %v1543
        %v1545 = vrcp.pop %v1509
        %v1546 = vmul.f32 1.0, %v1545
        %v1547 = vrcp.pop %v1510
        %v1548 = vmul.f32 1.0, %v1547
        %v1549 = vrcp.pop %v1511
        %v1550 = vmul.f32 1.0, %v1549
        %v1551 = vrcp.pop %v1512
        %v1552 = vmul.f32 1.0, %v1551
        %v1553 = vrcp.pop %v1513
        %v1554 = vmul.f32 1.0, %v1553
        %v1555 = vrcp.pop %v1514
        %v1556 = vmul.f32 1.0, %v1555
        %v1557 = vrcp.pop %v1515
        %v1558 = vmul.f32 1.0, %v1557
        %v1559 = vrcp.pop %v1516
        %v1560 = vmul.f32 1.0, %v1559
        %v1561 = vrcp.pop %v1517
        %v1562 = vmul.f32 1.0, %v1561
        %v1563 = vrcp.pop %v1518
        %v1564 = vmul.f32 1.0, %v1563
        %v1565 = vrcp.pop %v1519
        %v1566 = vmul.f32 1.0, %v1565
        %v1567 = vrcp.pop %v1520
        %v1568 = vmul.f32 1.0, %v1567
        %v1569 = vrcp.pop %v1521
        %v1570 = vmul.f32 1.0, %v1569
        %v1571 = vrcp.pop %v1522
        %v1572 = vmul.f32 1.0, %v1571
        %v1573 = vrcp.pop %v1523
        %v1574 = vmul.f32 1.0, %v1573
        %v1575 = vrcp.pop %v1524
        %v1576 = vmul.f32 1.0, %v1575
        %v1577 = vrcp.pop %v1525
        %v1578 = vmul.f32 1.0, %v1577
        %v1579 = vrcp.pop %v1526
        %v1580 = vmul.f32 1.0, %v1579
        %v1581 = vrcp.pop %v1527
        %v1582 = vmul.f32 1.0, %v1581
        %v1583 = vrcp.pop %v1528
        %v1584 = vmul.f32 1.0, %v1583
        %v1585 = vrcp.pop %v1529
        %v1586 = vmul.f32 1.0, %v1585
        %v1587 = vrcp.pop %v1530
        %v1588 = vmul.f32 1.0, %v1587
        %v1589 = vrcp.pop %v1531
        %v1590 = vmul.f32 1.0, %v1589
        %v1591 = vrcp.pop %v1532
        %v1592 = vmul.f32 1.0, %v1591
        %v1593 = vrcp.pop %v1533
        %v1594 = vmul.f32 1.0, %v1593
        %v1595 = vrcp.pop %v1534
        %v1596 = vmul.f32 1.0, %v1595
        %v1597 = vrcp.pop %v1535
        %v1598 = vmul.f32 1.0, %v1597
        %v1599 = vrcp.pop %v1536
        %v1600 = vmul.f32 1.0, %v1599
        %v1601 = vmul.f32 %v1538, %v1058
        %v1602 = vmul.f32 %v1540, %v1061
        %v1603 = vmul.f32 %v1542, %v1066
        %v1604 = vmul.f32 %v1544, %v1069
        %v1605 = vmul.f32 %v1546, %v1074
        %v1606 = vmul.f32 %v1548, %v1077
        %v1607 = vmul.f32 %v1550, %v1082
        %v1608 = vmul.f32 %v1552, %v1085
        %v1609 = vmul.f32 %v1554, %v1090
        %v1610 = vmul.f32 %v1556, %v1093
        %v1611 = vmul.f32 %v1558, %v1098
        %v1612 = vmul.f32 %v1560, %v1101
        %v1613 = vmul.f32 %v1562, %v1106
        %v1614 = vmul.f32 %v1564, %v1109
        %v1615 = vmul.f32 %v1566, %v1114
        %v1616 = vmul.f32 %v1568, %v1117
        %v1617 = vmul.f32 %v1570, %v1122
        %v1618 = vmul.f32 %v1572, %v1125
        %v1619 = vmul.f32 %v1574, %v1130
        %v1620 = vmul.f32 %v1576, %v1133
        %v1621 = vmul.f32 %v1578, %v1138
        %v1622 = vmul.f32 %v1580, %v1141
        %v1623 = vmul.f32 %v1582, %v1146
        %v1624 = vmul.f32 %v1584, %v1149
        %v1625 = vmul.f32 %v1586, %v1154
        %v1626 = vmul.f32 %v1588, %v1157
        %v1627 = vmul.f32 %v1590, %v1162
        %v1628 = vmul.f32 %v1592, %v1165
        %v1629 = vmul.f32 %v1594, %v1170
        %v1630 = vmul.f32 %v1596, %v1173
        %v1631 = vmul.f32 %v1598, %v1178
        %v1632 = vmul.f32 %v1600, %v1181
        %1633 = vst [vmem:[%s379] sm:$0xff] %v1601
        %1634 = vst [vmem:[%s379 + $0x8] sm:$0xff] %v1602
        %1635 = vst [vmem:[%s379 + $0x10] sm:$0xff] %v1603
        %1636 = vst [vmem:[%s379 + $0x18] sm:$0xff] %v1604
        %1637 = vst [vmem:[%s379 + $0x20] sm:$0xff] %v1605
        %1638 = vst [vmem:[%s379 + $0x28] sm:$0xff] %v1606
        %1639 = vst [vmem:[%s379 + $0x30] sm:$0xff] %v1607
        %1640 = vst [vmem:[%s379 + $0x38] sm:$0xff] %v1608
        %1641 = vst [vmem:[%s379 + $0x40] sm:$0xff] %v1609
        %1642 = vst [vmem:[%s379 + $0x48] sm:$0xff] %v1610
        %1643 = vst [vmem:[%s379 + $0x50] sm:$0xff] %v1611
        %1644 = vst [vmem:[%s379 + $0x58] sm:$0xff] %v1612
        %1645 = vst [vmem:[%s379 + $0x60] sm:$0xff] %v1613
        %1646 = vst [vmem:[%s379 + $0x68] sm:$0xff] %v1614
        %1647 = vst [vmem:[%s379 + $0x70] sm:$0xff] %v1615
        %1648 = vst [vmem:[%s379 + $0x78] sm:$0xff] %v1616
        %1649 = vst [vmem:[%s379 + $0x80] sm:$0xff] %v1617
        %1650 = vst [vmem:[%s379 + $0x88] sm:$0xff] %v1618
        %1651 = vst [vmem:[%s379 + $0x90] sm:$0xff] %v1619
        %1652 = vst [vmem:[%s379 + $0x98] sm:$0xff] %v1620
        %1653 = vst [vmem:[%s379 + $0xa0] sm:$0xff] %v1621
        %1654 = vst [vmem:[%s379 + $0xa8] sm:$0xff] %v1622
        %1655 = vst [vmem:[%s379 + $0xb0] sm:$0xff] %v1623
        %1656 = vst [vmem:[%s379 + $0xb8] sm:$0xff] %v1624
        %1657 = vst [vmem:[%s379 + $0xc0] sm:$0xff] %v1625
        %1658 = vst [vmem:[%s379 + $0xc8] sm:$0xff] %v1626
        %1659 = vst [vmem:[%s379 + $0xd0] sm:$0xff] %v1627
        %1660 = vst [vmem:[%s379 + $0xd8] sm:$0xff] %v1628
        %1661 = vst [vmem:[%s379 + $0xe0] sm:$0xff] %v1629
        %1662 = vst [vmem:[%s379 + $0xe8] sm:$0xff] %v1630
        %1663 = vst [vmem:[%s379 + $0xf0] sm:$0xff] %v1631
        %1664 = vst [vmem:[%s379 + $0xf8] sm:$0xff] %v1632
        %s1665 = sand.u32 %s193, 1
        %s1666 = scalar_lea.sflag [#allocation4], %s1665
        %s1667 = sand.u32 %s193, 1
        %s1668 = smul.addr %s1667, 256
        %s1669 = scalar_lea.vmem [#allocation11], %s1668
        // Predicated region
        $region69: #{tpu_custom_call.1} parent=47 // pred_check
          %p1670 = pneg %p203
        $region70: #{tpu_custom_call.1} parent=47 // pred_check_branch
          %1672 = sbr.rel (%p1670) target = $region72
        $region71: #{tpu_custom_call.1} parent=47 // pred_region
          %s1673 = smul.u32 32, %s28
          %s1675 = ssub.s32 4096, 4096
          %1676 = vsyncadd %s1666, %s1675
          %s1677 = smul.addr %s1673, 128
          %s1678 = scalar_lea.hbm %s7, %s1677
          %s1679 = sshll.u32 %s1669, 4
          %s1680 = int_to_ptr.vmem [resolvable:$true] %s1679
          %1685 = dma.vmem_to_hbm [thread:$0]  %s1680, 4096, %s1678, %s1666, 128, 128, 8
        $region72: #{tpu_custom_call.1} parent=47 // pred_fallthru
          _
      $region48: #{tpu_custom_call.1} parent=5 // pred_fallthru
        _
      %p1686 = scmp.le.s32.totalorder 2, %s23
      // Predicated region
      $region73: #{tpu_custom_call.1} parent=5 // pred_check
        %p1687 = pneg %p1686
      $region74: #{tpu_custom_call.1} parent=5 // pred_check_branch
        %1689 = sbr.rel (%p1687) target = $region76
      $region75: #{tpu_custom_call.1} parent=5 // pred_region
        %s1690 = ssub.s32 %s23, 2
        // Predicated region
        $region77: #{tpu_custom_call.1} parent=75 // pred_check
          %p1691 = pneg %p209
        $region78: #{tpu_custom_call.1} parent=75 // pred_check_branch
          %1693 = sbr.rel (%p1691) target = $region80
        $region79: #{tpu_custom_call.1} parent=75 // pred_region
          %s1694 = sand.u32 %s194, 1
          %s1695 = scalar_lea.sflag [#allocation4], %s1694
          %s1696 = sand.u32 %s194, 1
          %s1697 = smul.addr %s1696, 256
          %s1698 = scalar_lea.vmem [#allocation11], %s1697
          %1699 = dma.done %s1695, 4096
        $region80: #{tpu_custom_call.1} parent=75 // pred_fallthru
          _
      $region76: #{tpu_custom_call.1} parent=5 // pred_fallthru
        _
    $region6: #{tpu_custom_call.1} parent=1 // loop_footer
      %s27 = sadd.s32 1, %s23
    $region7: #{tpu_custom_call.1} parent=1 // loop_footer_branch
      %22 = sbr.rel target = $region3
    $region8: #{tpu_custom_call.1} parent=1 // loop_exit
      _
    %1700 = vsyncpa [#allocation3], 1
    %s1701 = scalar_lea.sflag [#allocation3], 1
    %1702 = vsyncpa %s1701, 1
    %1703 = vsyncpa [#allocation6], 1
    %s1704 = scalar_lea.sflag [#allocation6], 1
    %1705 = vsyncpa %s1704, 1
    %1706 = vsyncpa [#allocation9], 1
    %1707 = vsyncpa [#allocation4], 1
    %s1708 = scalar_lea.sflag [#allocation4], 1
    %1709 = vsyncpa %s1708, 1

// kernel: tpu_custom_call.1
$region0: #{tpu_custom_call.1}
  #allocation0 [shape = 'u32[]', space=smem, size = 0x4, offset = 0x4, fixed_abs, tag = 'smem constant byte address 0x4 - core index']
  #allocation1 [shape = 'u32[144,128]{1,0:T(1,128)}', space=vmem, size = 0x12000, scoped, tag = 'internal scratch']
  %s0 = inlined_call_operand.hbm [shape: f32[512,128], index: 0, kind: input, shape index: {}]
  %s1 = inlined_call_operand.hbm [shape: f32[512,128], index: 1, kind: input, shape index: {}]
  %s2 = inlined_call_operand.vmem [shape: f32[1,128], index: 2, kind: input, shape index: {}]
  %s3 = inlined_call_operand.vmem [shape: f32[1,128], index: 3, kind: input, shape index: {}]
  %s4 = inlined_call_operand.hbm [shape: bf16[128,128], index: 4, kind: input, shape index: {}]
  %s5 = inlined_call_operand.hbm [shape: bf16[128,128], index: 5, kind: input, shape index: {}]
  %s6 = inlined_call_operand.hbm [shape: bf16[128,128], index: 6, kind: input, shape index: {}]
  %s7 = inlined_call_operand.hbm [shape: f32[512,128], index: 7, kind: output, shape index: {}]
  %s8 = sld [smem:[#allocation0]]
  $region81: #{tpu_custom_call.1} parent=0
    _
  %s10 = ssub.s32 1, %s8
  %s11 = scalar_select 0, %s10, %s8
  $region1: #{tpu_custom_call.1} parent=0
    #allocation2 [shape = 'u8[262144]{0}', space=vmem, size = 0x40000, scoped, tag = 'input window, operand 0']
    #allocation3 [shape = 's32[2]{0}', space=sflag, size = 0x8, scoped, tag = 'scoped memory for tpu_custom_call.1']
    #allocation4 [shape = 's32[2]{0}', space=sflag, size = 0x8, scoped, tag = 'scoped memory for tpu_custom_call.1']
    #allocation5 [shape = 'u8[262144]{0}', space=vmem, size = 0x40000, scoped, tag = 'input window, operand 1']
    #allocation6 [shape = 's32[2]{0}', space=sflag, size = 0x8, scoped, tag = 'scoped memory for tpu_custom_call.1']
    #allocation7 [shape = 'u8[32768]{0}', space=vmem, size = 0x8000, scoped, tag = 'input window, operand 4, single buffered']
    #allocation8 [shape = 'u8[32768]{0}', space=vmem, size = 0x8000, scoped, tag = 'input window, operand 5, single buffered']
    #allocation9 [shape = 's32[1]{0}', space=sflag, size = 0x4, scoped, tag = 'scoped memory for tpu_custom_call.1']
    #allocation10 [shape = 'u8[32768]{0}', space=vmem, size = 0x8000, scoped, tag = 'input window, operand 6, single buffered']
    #allocation11 [shape = 'u8[262144]{0}', space=vmem, size = 0x40000, scoped, tag = 'output window, operand 0']
    %12 = vsyncpa [#allocation3], 0
    %s13 = scalar_lea.sflag [#allocation3], 1
    %14 = vsyncpa %s13, 0
    %15 = vsyncpa [#allocation6], 0
    %s16 = scalar_lea.sflag [#allocation6], 1
    %17 = vsyncpa %s16, 0
    %18 = vsyncpa [#allocation9], 0
    %19 = vsyncpa [#allocation4], 0
    %s20 = scalar_lea.sflag [#allocation4], 1
    %21 = vsyncpa %s20, 0
    loop: start=0, step=1, limit=4
    $region2: #{tpu_custom_call.1} parent=1 // loop_pre_header
      _
    $region3: #{tpu_custom_call.1} parent=1 // loop_header
      %s23 = sphi 0, %s27
      %p24 = scmp.ge.s32.totalorder %s23, 4
      %s33 = sphi 0, %s35
      %s36 = sphi 0, %s33
      %s37 = sphi 0, %s36
      %s53 = sphi 0, %s37
      %s59 = sphi 0, %s61
      %s62 = sphi 0, %s59
      %s63 = sphi 0, %s62
      %s79 = sphi 0, %s63
      %s83 = sphi 0, %s83
      %s85 = sphi 0, %s83
      %s86 = sphi 0, %s85
      %s100 = sphi 0, %s86
      %s104 = sphi 0, %s104
      %s106 = sphi 0, %s104
      %s107 = sphi 0, %s106
      %s121 = sphi 0, %s107
      %s125 = sphi 0, %s125
      %s127 = sphi 0, %s125
      %s128 = sphi 0, %s127
      %s142 = sphi 0, %s128
      %s146 = sphi 0, %s146
      %s148 = sphi 0, %s146
      %s149 = sphi 0, %s148
      %s163 = sphi 0, %s149
      %s167 = sphi 0, %s167
      %s169 = sphi 0, %s167
      %s170 = sphi 0, %s169
      %s184 = sphi 0, %s170
      %s190 = sphi 0, %s192
      %s193 = sphi 0, %s190
      %s194 = sphi 0, %s193
      %s210 = sphi 0, %s194
    $region4: #{tpu_custom_call.1} parent=1 // loop_header_branch
      %26 = sbr.rel (%p24) target = $region8
    $region5: #{tpu_custom_call.1} parent=1 // loop_body
      %s28 = ssub.s32 %s23, 1
      %s29 = ssub.s32 %s23, 2
      %s30 = sadd.s32 %s23, 1
      %s31 = ssub.s32 %s23, %s30
      %p32 = scmp.eq.s32.totalorder %s31, 0
      %s34 = sadd.s32 %s33, 1
      %s35 = scalar_select %p32, %s33, %s34
      %p38 = pneg %p32
      %p39 = scmp.eq.s32.totalorder %s23, 1
      %p40 = por %p38, %p39
      %p41 = scmp.ne.s32.totalorder %s33, %s36
      %p42 = scmp.eq.s32.totalorder %s23, 0
      %p43 = por %p41, %p42
      %p44 = scmp.ne.s32.totalorder %s33, %s36
      %p45 = scmp.eq.s32.totalorder %s28, 1
      %p46 = por %p44, %p45
      %p47 = scmp.ne.s32.totalorder %s36, %s37
      %p48 = scmp.eq.s32.totalorder %s28, 0
      %p49 = por %p47, %p48
      %p50 = scmp.ne.s32.totalorder %s36, %s37
      %p51 = scmp.eq.s32.totalorder %s29, 1
      %p52 = por %p50, %p51
      %p54 = scmp.ne.s32.totalorder %s37, %s53
      %p55 = scmp.eq.s32.totalorder %s29, 0
      %p56 = por %p54, %p55
      %s57 = ssub.s32 %s23, %s30
      %p58 = scmp.eq.s32.totalorder %s57, 0
      %s60 = sadd.s32 %s59, 1
      %s61 = scalar_select %p58, %s59, %s60
      %p64 = pneg %p58
      %p65 = scmp.eq.s32.totalorder %s23, 1
      %p66 = por %p64, %p65
      %p67 = scmp.ne.s32.totalorder %s59, %s62
      %p68 = scmp.eq.s32.totalorder %s23, 0
      %p69 = por %p67, %p68
      %p70 = scmp.ne.s32.totalorder %s59, %s62
      %p71 = scmp.eq.s32.totalorder %s28, 1
      %p72 = por %p70, %p71
      %p73 = scmp.ne.s32.totalorder %s62, %s63
      %p74 = scmp.eq.s32.totalorder %s28, 0
      %p75 = por %p73, %p74
      %p76 = scmp.ne.s32.totalorder %s62, %s63
      %p77 = scmp.eq.s32.totalorder %s29, 1
      %p78 = por %p76, %p77
      %p80 = scmp.ne.s32.totalorder %s63, %s79
      %p81 = scmp.eq.s32.totalorder %s29, 0
      %p82 = por %p80, %p81
      %s84 = sadd.s32 %s83, 1
      %p87 = scmp.eq.s32.totalorder %s23, 1
      %p88 = scmp.ne.s32.totalorder %s83, %s85
      %p89 = scmp.eq.s32.totalorder %s23, 0
      %p90 = por %p88, %p89
      %p91 = scmp.ne.s32.totalorder %s83, %s85
      %p92 = scmp.eq.s32.totalorder %s28, 1
      %p93 = por %p91, %p92
      %p94 = scmp.ne.s32.totalorder %s85, %s86
      %p95 = scmp.eq.s32.totalorder %s28, 0
      %p96 = por %p94, %p95
      %p97 = scmp.ne.s32.totalorder %s85, %s86
      %p98 = scmp.eq.s32.totalorder %s29, 1
      %p99 = por %p97, %p98
      %p101 = scmp.ne.s32.totalorder %s86, %s100
      %p102 = scmp.eq.s32.totalorder %s29, 0
      %p103 = por %p101, %p102
      %s105 = sadd.s32 %s104, 1
      %p108 = scmp.eq.s32.totalorder %s23, 1
      %p109 = scmp.ne.s32.totalorder %s104, %s106
      %p110 = scmp.eq.s32.totalorder %s23, 0
      %p111 = por %p109, %p110
      %p112 = scmp.ne.s32.totalorder %s104, %s106
      %p113 = scmp.eq.s32.totalorder %s28, 1
      %p114 = por %p112, %p113
      %p115 = scmp.ne.s32.totalorder %s106, %s107
      %p116 = scmp.eq.s32.totalorder %s28, 0
      %p117 = por %p115, %p116
      %p118 = scmp.ne.s32.totalorder %s106, %s107
      %p119 = scmp.eq.s32.totalorder %s29, 1
      %p120 = por %p118, %p119
      %p122 = scmp.ne.s32.totalorder %s107, %s121
      %p123 = scmp.eq.s32.totalorder %s29, 0
      %p124 = por %p122, %p123
      %s126 = sadd.s32 %s125, 1
      %p129 = scmp.eq.s32.totalorder %s23, 1
      %p130 = scmp.ne.s32.totalorder %s125, %s127
      %p131 = scmp.eq.s32.totalorder %s23, 0
      %p132 = por %p130, %p131
      %p133 = scmp.ne.s32.totalorder %s125, %s127
      %p134 = scmp.eq.s32.totalorder %s28, 1
      %p135 = por %p133, %p134
      %p136 = scmp.ne.s32.totalorder %s127, %s128
      %p137 = scmp.eq.s32.totalorder %s28, 0
      %p138 = por %p136, %p137
      %p139 = scmp.ne.s32.totalorder %s127, %s128
      %p140 = scmp.eq.s32.totalorder %s29, 1
      %p141 = por %p139, %p140
      %p143 = scmp.ne.s32.totalorder %s128, %s142
      %p144 = scmp.eq.s32.totalorder %s29, 0
      %p145 = por %p143, %p144
      %s147 = sadd.s32 %s146, 1
      %p150 = scmp.eq.s32.totalorder %s23, 1
      %p151 = scmp.ne.s32.totalorder %s146, %s148
      %p152 = scmp.eq.s32.totalorder %s23, 0
      %p153 = por %p151, %p152
      %p154 = scmp.ne.s32.totalorder %s146, %s148
      %p155 = scmp.eq.s32.totalorder %s28, 1
      %p156 = por %p154, %p155
      %p157 = scmp.ne.s32.totalorder %s148, %s149
      %p158 = scmp.eq.s32.totalorder %s28, 0
      %p159 = por %p157, %p158
      %p160 = scmp.ne.s32.totalorder %s148, %s149
      %p161 = scmp.eq.s32.totalorder %s29, 1
      %p162 = por %p160, %p161
      %p164 = scmp.ne.s32.totalorder %s149, %s163
      %p165 = scmp.eq.s32.totalorder %s29, 0
      %p166 = por %p164, %p165
      %s168 = sadd.s32 %s167, 1
      %p171 = scmp.eq.s32.totalorder %s23, 1
      %p172 = scmp.ne.s32.totalorder %s167, %s169
      %p173 = scmp.eq.s32.totalorder %s23, 0
      %p174 = por %p172, %p173
      %p175 = scmp.ne.s32.totalorder %s167, %s169
      %p176 = scmp.eq.s32.totalorder %s28, 1
      %p177 = por %p175, %p176
      %p178 = scmp.ne.s32.totalorder %s169, %s170
      %p179 = scmp.eq.s32.totalorder %s28, 0
      %p180 = por %p178, %p179
      %p181 = scmp.ne.s32.totalorder %s169, %s170
      %p182 = scmp.eq.s32.totalorder %s29, 1
      %p183 = por %p181, %p182
      %p185 = scmp.ne.s32.totalorder %s170, %s184
      %p186 = scmp.eq.s32.totalorder %s29, 0
      %p187 = por %p185, %p186
      %s188 = ssub.s32 %s23, %s30
      %p189 = scmp.eq.s32.totalorder %s188, 0
      %s191 = sadd.s32 %s190, 1
      %s192 = scalar_select %p189, %s190, %s191
      %p195 = pneg %p189
      %p196 = scmp.eq.s32.totalorder %s23, 1
      %p197 = por %p195, %p196
      %p198 = scmp.ne.s32.totalorder %s190, %s193
      %p199 = scmp.eq.s32.totalorder %s23, 0
      %p200 = por %p198, %p199
      %p201 = scmp.ne.s32.totalorder %s190, %s193
      %p202 = scmp.eq.s32.totalorder %s28, 1
      %p203 = por %p201, %p202
      %p204 = scmp.ne.s32.totalorder %s193, %s194
      %p205 = scmp.eq.s32.totalorder %s28, 0
      %p206 = por %p204, %p205
      %p207 = scmp.ne.s32.totalorder %s193, %s194
      %p208 = scmp.eq.s32.totalorder %s29, 1
      %p209 = por %p207, %p208
      %p211 = scmp.ne.s32.totalorder %s194, %s210
      %p212 = scmp.eq.s32.totalorder %s29, 0
      %p213 = por %p211, %p212
      %p214 = scmp.le.s32.totalorder 1, %s23
      %p215 = scmp.lt.s32.totalorder %s23, 3
      %p216 = pnand %p214, %p215
      %p217 = pneg %p216
      // Predicated region
      $region9: #{tpu_custom_call.1} parent=5 // pred_check
        _
      $region10: #{tpu_custom_call.1} parent=5 // pred_check_branch
        %219 = sbr.rel (%p216) target = $region12
      $region11: #{tpu_custom_call.1} parent=5 // pred_region
        %s220 = ssub.s32 %s23, 1
        // Predicated region
        $region13: #{tpu_custom_call.1} parent=11 // pred_check
          %p221 = pneg %p96
        $region14: #{tpu_custom_call.1} parent=11 // pred_check_branch
          %223 = sbr.rel (%p221) target = $region16
        $region15: #{tpu_custom_call.1} parent=11 // pred_region
          _
        $region16: #{tpu_custom_call.1} parent=11 // pred_fallthru
          _
        // Predicated region
        $region17: #{tpu_custom_call.1} parent=11 // pred_check
          %p224 = pneg %p117
        $region18: #{tpu_custom_call.1} parent=11 // pred_check_branch
          %226 = sbr.rel (%p224) target = $region20
        $region19: #{tpu_custom_call.1} parent=11 // pred_region
          _
        $region20: #{tpu_custom_call.1} parent=11 // pred_fallthru
          _
        // Predicated region
        $region21: #{tpu_custom_call.1} parent=11 // pred_check
          %p227 = pneg %p138
        $region22: #{tpu_custom_call.1} parent=11 // pred_check_branch
          %229 = sbr.rel (%p227) target = $region24
        $region23: #{tpu_custom_call.1} parent=11 // pred_region
          %s231 = ssub.s32 1024, 1024
          %232 = vsyncadd [#allocation6], %s231
          %s233 = sshll.u32 [#allocation7], 4
          %s234 = int_to_ptr.vmem [resolvable:$true] %s233
          %239 = dma.hbm_to_vmem [thread:$0]  %s4, 1024, %s234, [#allocation6], 64, 64, 4
        $region24: #{tpu_custom_call.1} parent=11 // pred_fallthru
          _
        // Predicated region
        $region25: #{tpu_custom_call.1} parent=11 // pred_check
          %p240 = pneg %p159
        $region26: #{tpu_custom_call.1} parent=11 // pred_check_branch
          %242 = sbr.rel (%p240) target = $region28
        $region27: #{tpu_custom_call.1} parent=11 // pred_region
          %s244 = ssub.s32 1024, 1024
          %245 = vsyncadd [#allocation9], %s244
          %s246 = sshll.u32 [#allocation8], 4
          %s247 = int_to_ptr.vmem [resolvable:$true] %s246
          %252 = dma.hbm_to_vmem [thread:$0]  %s5, 1024, %s247, [#allocation9], 64, 64, 4
        $region28: #{tpu_custom_call.1} parent=11 // pred_fallthru
          _
        // Predicated region
        $region29: #{tpu_custom_call.1} parent=11 // pred_check
          %p253 = pneg %p180
        $region30: #{tpu_custom_call.1} parent=11 // pred_check_branch
          %255 = sbr.rel (%p253) target = $region32
        $region31: #{tpu_custom_call.1} parent=11 // pred_region
          %s257 = ssub.s32 1024, 1024
          %258 = vsyncadd [#allocation9], %s257
          %s259 = sshll.u32 [#allocation10], 4
          %s260 = int_to_ptr.vmem [resolvable:$true] %s259
          %265 = dma.hbm_to_vmem [thread:$0]  %s6, 1024, %s260, [#allocation9], 64, 64, 4
        $region32: #{tpu_custom_call.1} parent=11 // pred_fallthru
          _
      $region12: #{tpu_custom_call.1} parent=5 // pred_fallthru
        _
      %p266 = scmp.lt.s32.totalorder %s23, 2
      // Predicated region
      $region33: #{tpu_custom_call.1} parent=5 // pred_check
        %p267 = pneg %p266
      $region34: #{tpu_custom_call.1} parent=5 // pred_check_branch
        %269 = sbr.rel (%p267) target = $region36
      $region35: #{tpu_custom_call.1} parent=5 // pred_region
        // Predicated region
        $region37: #{tpu_custom_call.1} parent=35 // pred_check
          %p270 = pneg %p43
        $region38: #{tpu_custom_call.1} parent=35 // pred_check_branch
          %272 = sbr.rel (%p270) target = $region40
        $region39: #{tpu_custom_call.1} parent=35 // pred_region
          %s273 = sand.u32 %s33, 1
          %s274 = scalar_lea.sflag [#allocation3], %s273
          %s275 = sand.u32 %s33, 1
          %s276 = smul.addr %s275, 256
          %s277 = scalar_lea.vmem [#allocation2], %s276
          %s278 = smul.u32 32, %s23
          %s280 = ssub.s32 4096, 4096
          %281 = vsyncadd %s274, %s280
          %s282 = smul.addr %s278, 128
          %s283 = scalar_lea.hbm %s0, %s282
          %s284 = sshll.u32 %s277, 4
          %s285 = int_to_ptr.vmem [resolvable:$true] %s284
          %290 = dma.hbm_to_vmem [thread:$0]  %s283, 4096, %s285, %s274, 128, 128, 8
        $region40: #{tpu_custom_call.1} parent=35 // pred_fallthru
          _
        // Predicated region
        $region41: #{tpu_custom_call.1} parent=35 // pred_check
          %p291 = pneg %p69
        $region42: #{tpu_custom_call.1} parent=35 // pred_check_branch
          %293 = sbr.rel (%p291) target = $region44
        $region43: #{tpu_custom_call.1} parent=35 // pred_region
          %s294 = sand.u32 %s23, 1
          %s295 = scalar_lea.sflag [#allocation6], %s294
          %s296 = sand.u32 %s59, 1
          %s297 = smul.addr %s296, 256
          %s298 = scalar_lea.vmem [#allocation5], %s297
          %s299 = smul.u32 32, %s23
          %s301 = ssub.s32 4096, 4096
          %302 = vsyncadd %s295, %s301
          %s303 = smul.addr %s299, 128
          %s304 = scalar_lea.hbm %s1, %s303
          %s305 = sshll.u32 %s298, 4
          %s306 = int_to_ptr.vmem [resolvable:$true] %s305
          %311 = dma.hbm_to_vmem [thread:$0]  %s304, 4096, %s306, %s295, 128, 128, 8
        $region44: #{tpu_custom_call.1} parent=35 // pred_fallthru
          _
      $region36: #{tpu_custom_call.1} parent=5 // pred_fallthru
        _
      %p312 = scmp.le.s32.totalorder 1, %s23
      %p313 = scmp.lt.s32.totalorder %s23, 3
      %p314 = pnand %p312, %p313
      %p315 = pneg %p314
      // Predicated region
      $region45: #{tpu_custom_call.1} parent=5 // pred_check
        _
      $region46: #{tpu_custom_call.1} parent=5 // pred_check_branch
        %317 = sbr.rel (%p314) target = $region48
      $region47: #{tpu_custom_call.1} parent=5 // pred_region
        %s318 = ssub.s32 %s23, 1
        %s319 = sand.u32 %s36, 1
        %s320 = scalar_lea.sflag [#allocation3], %s319
        %s321 = sand.u32 %s36, 1
        %s322 = smul.addr %s321, 256
        %s323 = scalar_lea.vmem [#allocation2], %s322
        // Predicated region
        $region49: #{tpu_custom_call.1} parent=47 // pred_check
          %p324 = pneg %p49
        $region50: #{tpu_custom_call.1} parent=47 // pred_check_branch
          %326 = sbr.rel (%p324) target = $region52
        $region51: #{tpu_custom_call.1} parent=47 // pred_region
          %327 = dma.done %s320, 4096
        $region52: #{tpu_custom_call.1} parent=47 // pred_fallthru
          _
        %s328 = sand.u32 %s28, 1
        %s329 = scalar_lea.sflag [#allocation6], %s328
        %s330 = sand.u32 %s62, 1
        %s331 = smul.addr %s330, 256
        %s332 = scalar_lea.vmem [#allocation5], %s331
        // Predicated region
        $region53: #{tpu_custom_call.1} parent=47 // pred_check
          %p333 = pneg %p75
        $region54: #{tpu_custom_call.1} parent=47 // pred_check_branch
          %335 = sbr.rel (%p333) target = $region56
        $region55: #{tpu_custom_call.1} parent=47 // pred_region
          %336 = dma.done %s329, 4096
        $region56: #{tpu_custom_call.1} parent=47 // pred_fallthru
          _
        // Predicated region
        $region57: #{tpu_custom_call.1} parent=47 // pred_check
          %p337 = pneg %p138
        $region58: #{tpu_custom_call.1} parent=47 // pred_check_branch
          %339 = sbr.rel (%p337) target = $region60
        $region59: #{tpu_custom_call.1} parent=47 // pred_region
          %340 = dma.done [#allocation6], 1024
        $region60: #{tpu_custom_call.1} parent=47 // pred_fallthru
          _
        // Predicated region
        $region61: #{tpu_custom_call.1} parent=47 // pred_check
          %p341 = pneg %p159
        $region62: #{tpu_custom_call.1} parent=47 // pred_check_branch
          %343 = sbr.rel (%p341) target = $region64
        $region63: #{tpu_custom_call.1} parent=47 // pred_region
          %344 = dma.done [#allocation9], 1024
        $region64: #{tpu_custom_call.1} parent=47 // pred_fallthru
          _
        // Predicated region
        $region65: #{tpu_custom_call.1} parent=47 // pred_check
          %p345 = pneg %p180
        $region66: #{tpu_custom_call.1} parent=47 // pred_check_branch
          %347 = sbr.rel (%p345) target = $region68
        $region67: #{tpu_custom_call.1} parent=47 // pred_region
          %348 = dma.done [#allocation9], 1024
        $region68: #{tpu_custom_call.1} parent=47 // pred_fallthru
          _
        %s349 = sand.u32 %s36, 1
        %s350 = scalar_lea.sflag [#allocation3], %s349
        %s351 = sand.u32 %s36, 1
        %s352 = smul.addr %s351, 256
        %s353 = scalar_lea.vmem [#allocation2], %s352
        %p354 = pneg %p49
        %p355 = pneg %p46
        %s356 = sand.u32 %s28, 1
        %s357 = scalar_lea.sflag [#allocation6], %s356
        %s358 = sand.u32 %s62, 1
        %s359 = smul.addr %s358, 256
        %s360 = scalar_lea.vmem [#allocation5], %s359
        %p361 = pneg %p75
        %p362 = pneg %p72
        %p363 = pneg %p96
        %p364 = pneg %p93
        %p365 = pneg %p117
        %p366 = pneg %p114
        %p367 = pneg %p138
        %p368 = pneg %p135
        %p369 = pneg %p159
        %p370 = pneg %p156
        %p371 = pneg %p180
        %p372 = pneg %p177
        %p373 = pneg %p206
        %p374 = pneg %p203
        %s375 = sand.u32 %s193, 1
        %s376 = scalar_lea.sflag [#allocation4], %s375
        %s377 = sand.u32 %s193, 1
        %s378 = smul.addr %s377, 256
        %s379 = scalar_lea.vmem [#allocation11], %s378
        %s380 = smul.u32 32, %s28
        %s381 = smul.u32 32, %s28
        %s382 = smul.u32 32, %s28
        %v384 = vld [vmem:[%s323] sm:$0xff]
        %v385 = vld [vmem:[%s323 + $0x8] sm:$0xff]
        %v386 = vld [vmem:[%s323 + $0x10] sm:$0xff]
        %v387 = vld [vmem:[%s323 + $0x18] sm:$0xff]
        %v388 = vld [vmem:[%s323 + $0x20] sm:$0xff]
        %v389 = vld [vmem:[%s323 + $0x28] sm:$0xff]
        %v390 = vld [vmem:[%s323 + $0x30] sm:$0xff]
        %v391 = vld [vmem:[%s323 + $0x38] sm:$0xff]
        %v392 = vld [vmem:[%s323 + $0x40] sm:$0xff]
        %v393 = vld [vmem:[%s323 + $0x48] sm:$0xff]
        %v394 = vld [vmem:[%s323 + $0x50] sm:$0xff]
        %v395 = vld [vmem:[%s323 + $0x58] sm:$0xff]
        %v396 = vld [vmem:[%s323 + $0x60] sm:$0xff]
        %v397 = vld [vmem:[%s323 + $0x68] sm:$0xff]
        %v398 = vld [vmem:[%s323 + $0x70] sm:$0xff]
        %v399 = vld [vmem:[%s323 + $0x78] sm:$0xff]
        %v400 = vld [vmem:[%s323 + $0x80] sm:$0xff]
        %v401 = vld [vmem:[%s323 + $0x88] sm:$0xff]
        %v402 = vld [vmem:[%s323 + $0x90] sm:$0xff]
        %v403 = vld [vmem:[%s323 + $0x98] sm:$0xff]
        %v404 = vld [vmem:[%s323 + $0xa0] sm:$0xff]
        %v405 = vld [vmem:[%s323 + $0xa8] sm:$0xff]
        %v406 = vld [vmem:[%s323 + $0xb0] sm:$0xff]
        %v407 = vld [vmem:[%s323 + $0xb8] sm:$0xff]
        %v408 = vld [vmem:[%s323 + $0xc0] sm:$0xff]
        %v409 = vld [vmem:[%s323 + $0xc8] sm:$0xff]
        %v410 = vld [vmem:[%s323 + $0xd0] sm:$0xff]
        %v411 = vld [vmem:[%s323 + $0xd8] sm:$0xff]
        %v412 = vld [vmem:[%s323 + $0xe0] sm:$0xff]
        %v413 = vld [vmem:[%s323 + $0xe8] sm:$0xff]
        %v414 = vld [vmem:[%s323 + $0xf0] sm:$0xff]
        %v415 = vld [vmem:[%s323 + $0xf8] sm:$0xff]
        %v416 = vld [vmem:[%s332] sm:$0xff]
        %v417 = vld [vmem:[%s332 + $0x8] sm:$0xff]
        %v418 = vld [vmem:[%s332 + $0x10] sm:$0xff]
        %v419 = vld [vmem:[%s332 + $0x18] sm:$0xff]
        %v420 = vld [vmem:[%s332 + $0x20] sm:$0xff]
        %v421 = vld [vmem:[%s332 + $0x28] sm:$0xff]
        %v422 = vld [vmem:[%s332 + $0x30] sm:$0xff]
        %v423 = vld [vmem:[%s332 + $0x38] sm:$0xff]
        %v424 = vld [vmem:[%s332 + $0x40] sm:$0xff]
        %v425 = vld [vmem:[%s332 + $0x48] sm:$0xff]
        %v426 = vld [vmem:[%s332 + $0x50] sm:$0xff]
        %v427 = vld [vmem:[%s332 + $0x58] sm:$0xff]
        %v428 = vld [vmem:[%s332 + $0x60] sm:$0xff]
        %v429 = vld [vmem:[%s332 + $0x68] sm:$0xff]
        %v430 = vld [vmem:[%s332 + $0x70] sm:$0xff]
        %v431 = vld [vmem:[%s332 + $0x78] sm:$0xff]
        %v432 = vld [vmem:[%s332 + $0x80] sm:$0xff]
        %v433 = vld [vmem:[%s332 + $0x88] sm:$0xff]
        %v434 = vld [vmem:[%s332 + $0x90] sm:$0xff]
        %v435 = vld [vmem:[%s332 + $0x98] sm:$0xff]
        %v436 = vld [vmem:[%s332 + $0xa0] sm:$0xff]
        %v437 = vld [vmem:[%s332 + $0xa8] sm:$0xff]
        %v438 = vld [vmem:[%s332 + $0xb0] sm:$0xff]
        %v439 = vld [vmem:[%s332 + $0xb8] sm:$0xff]
        %v440 = vld [vmem:[%s332 + $0xc0] sm:$0xff]
        %v441 = vld [vmem:[%s332 + $0xc8] sm:$0xff]
        %v442 = vld [vmem:[%s332 + $0xd0] sm:$0xff]
        %v443 = vld [vmem:[%s332 + $0xd8] sm:$0xff]
        %v444 = vld [vmem:[%s332 + $0xe0] sm:$0xff]
        %v445 = vld [vmem:[%s332 + $0xe8] sm:$0xff]
        %v446 = vld [vmem:[%s332 + $0xf0] sm:$0xff]
        %v447 = vld [vmem:[%s332 + $0xf8] sm:$0xff]
        %v448 = vld [vmem:[%s2] sm:$0x1]
        %v449 = vld [vmem:[%s3] sm:$0x1]
        %v450 = vsub.f32 %v384, %v416
        %v451 = vsub.f32 %v385, %v417
        %v452 = vsub.f32 %v386, %v418
        %v453 = vsub.f32 %v387, %v419
        %v454 = vsub.f32 %v388, %v420
        %v455 = vsub.f32 %v389, %v421
        %v456 = vsub.f32 %v390, %v422
        %v457 = vsub.f32 %v391, %v423
        %v458 = vsub.f32 %v392, %v424
        %v459 = vsub.f32 %v393, %v425
        %v460 = vsub.f32 %v394, %v426
        %v461 = vsub.f32 %v395, %v427
        %v462 = vsub.f32 %v396, %v428
        %v463 = vsub.f32 %v397, %v429
        %v464 = vsub.f32 %v398, %v430
        %v465 = vsub.f32 %v399, %v431
        %v466 = vsub.f32 %v400, %v432
        %v467 = vsub.f32 %v401, %v433
        %v468 = vsub.f32 %v402, %v434
        %v469 = vsub.f32 %v403, %v435
        %v470 = vsub.f32 %v404, %v436
        %v471 = vsub.f32 %v405, %v437
        %v472 = vsub.f32 %v406, %v438
        %v473 = vsub.f32 %v407, %v439
        %v474 = vsub.f32 %v408, %v440
        %v475 = vsub.f32 %v409, %v441
        %v476 = vsub.f32 %v410, %v442
        %v477 = vsub.f32 %v411, %v443
        %v478 = vsub.f32 %v412, %v444
        %v479 = vsub.f32 %v413, %v445
        %v480 = vsub.f32 %v414, %v446
        %v481 = vsub.f32 %v415, %v447
        %v483 = vlaneseq
        %v484 = vshrl.u32 %v483, 7
        %v485 = vsub.s32 0, %v484
        %v486 = vrot.slane %v448, %v485
        %v488 = vmul.f32 %v450, %v486
        %v489 = vmul.f32 %v451, %v486
        %v490 = vmul.f32 %v452, %v486
        %v491 = vmul.f32 %v453, %v486
        %v492 = vmul.f32 %v454, %v486
        %v493 = vmul.f32 %v455, %v486
        %v494 = vmul.f32 %v456, %v486
        %v495 = vmul.f32 %v457, %v486
        %v496 = vmul.f32 %v458, %v486
        %v497 = vmul.f32 %v459, %v486
        %v498 = vmul.f32 %v460, %v486
        %v499 = vmul.f32 %v461, %v486
        %v500 = vmul.f32 %v462, %v486
        %v501 = vmul.f32 %v463, %v486
        %v502 = vmul.f32 %v464, %v486
        %v503 = vmul.f32 %v465, %v486
        %v504 = vmul.f32 %v466, %v486
        %v505 = vmul.f32 %v467, %v486
        %v506 = vmul.f32 %v468, %v486
        %v507 = vmul.f32 %v469, %v486
        %v508 = vmul.f32 %v470, %v486
        %v509 = vmul.f32 %v471, %v486
        %v510 = vmul.f32 %v472, %v486
        %v511 = vmul.f32 %v473, %v486
        %v512 = vmul.f32 %v474, %v486
        %v513 = vmul.f32 %v475, %v486
        %v514 = vmul.f32 %v476, %v486
        %v515 = vmul.f32 %v477, %v486
        %v516 = vmul.f32 %v478, %v486
        %v517 = vmul.f32 %v479, %v486
        %v518 = vmul.f32 %v480, %v486
        %v519 = vmul.f32 %v481, %v486
        %v520 = vadd.f32 %v416, %v488
        %v521 = vadd.f32 %v417, %v489
        %v522 = vadd.f32 %v418, %v490
        %v523 = vadd.f32 %v419, %v491
        %v524 = vadd.f32 %v420, %v492
        %v525 = vadd.f32 %v421, %v493
        %v526 = vadd.f32 %v422, %v494
        %v527 = vadd.f32 %v423, %v495
        %v528 = vadd.f32 %v424, %v496
        %v529 = vadd.f32 %v425, %v497
        %v530 = vadd.f32 %v426, %v498
        %v531 = vadd.f32 %v427, %v499
        %v532 = vadd.f32 %v428, %v500
        %v533 = vadd.f32 %v429, %v501
        %v534 = vadd.f32 %v430, %v502
        %v535 = vadd.f32 %v431, %v503
        %v536 = vadd.f32 %v432, %v504
        %v537 = vadd.f32 %v433, %v505
        %v538 = vadd.f32 %v434, %v506
        %v539 = vadd.f32 %v435, %v507
        %v540 = vadd.f32 %v436, %v508
        %v541 = vadd.f32 %v437, %v509
        %v542 = vadd.f32 %v438, %v510
        %v543 = vadd.f32 %v439, %v511
        %v544 = vadd.f32 %v440, %v512
        %v545 = vadd.f32 %v441, %v513
        %v546 = vadd.f32 %v442, %v514
        %v547 = vadd.f32 %v443, %v515
        %v548 = vadd.f32 %v444, %v516
        %v549 = vadd.f32 %v445, %v517
        %v550 = vadd.f32 %v446, %v518
        %v551 = vadd.f32 %v447, %v519
        %v552 = vpack.c.bf16 %v521, %v520
        %v553 = vpack.c.bf16 %v523, %v522
        %v554 = vpack.c.bf16 %v525, %v524
        %v555 = vpack.c.bf16 %v527, %v526
        %v556 = vpack.c.bf16 %v529, %v528
        %v557 = vpack.c.bf16 %v531, %v530
        %v558 = vpack.c.bf16 %v533, %v532
        %v559 = vpack.c.bf16 %v535, %v534
        %v560 = vpack.c.bf16 %v537, %v536
        %v561 = vpack.c.bf16 %v539, %v538
        %v562 = vpack.c.bf16 %v541, %v540
        %v563 = vpack.c.bf16 %v543, %v542
        %v564 = vpack.c.bf16 %v545, %v544
        %v565 = vpack.c.bf16 %v547, %v546
        %v566 = vpack.c.bf16 %v549, %v548
        %v567 = vpack.c.bf16 %v551, %v550
        %v569 = vlaneseq
        %v570 = vshrl.u32 %v569, 7
        %v571 = vsub.s32 0, %v570
        %v572 = vrot.slane %v449, %v571
        %v574 = vmul.f32 %v450, %v572
        %v575 = vmul.f32 %v451, %v572
        %v576 = vmul.f32 %v452, %v572
        %v577 = vmul.f32 %v453, %v572
        %v578 = vmul.f32 %v454, %v572
        %v579 = vmul.f32 %v455, %v572
        %v580 = vmul.f32 %v456, %v572
        %v581 = vmul.f32 %v457, %v572
        %v582 = vmul.f32 %v458, %v572
        %v583 = vmul.f32 %v459, %v572
        %v584 = vmul.f32 %v460, %v572
        %v585 = vmul.f32 %v461, %v572
        %v586 = vmul.f32 %v462, %v572
        %v587 = vmul.f32 %v463, %v572
        %v588 = vmul.f32 %v464, %v572
        %v589 = vmul.f32 %v465, %v572
        %v590 = vmul.f32 %v466, %v572
        %v591 = vmul.f32 %v467, %v572
        %v592 = vmul.f32 %v468, %v572
        %v593 = vmul.f32 %v469, %v572
        %v594 = vmul.f32 %v470, %v572
        %v595 = vmul.f32 %v471, %v572
        %v596 = vmul.f32 %v472, %v572
        %v597 = vmul.f32 %v473, %v572
        %v598 = vmul.f32 %v474, %v572
        %v599 = vmul.f32 %v475, %v572
        %v600 = vmul.f32 %v476, %v572
        %v601 = vmul.f32 %v477, %v572
        %v602 = vmul.f32 %v478, %v572
        %v603 = vmul.f32 %v479, %v572
        %v604 = vmul.f32 %v480, %v572
        %v605 = vmul.f32 %v481, %v572
        %v606 = vadd.f32 %v416, %v574
        %v607 = vadd.f32 %v417, %v575
        %v608 = vadd.f32 %v418, %v576
        %v609 = vadd.f32 %v419, %v577
        %v610 = vadd.f32 %v420, %v578
        %v611 = vadd.f32 %v421, %v579
        %v612 = vadd.f32 %v422, %v580
        %v613 = vadd.f32 %v423, %v581
        %v614 = vadd.f32 %v424, %v582
        %v615 = vadd.f32 %v425, %v583
        %v616 = vadd.f32 %v426, %v584
        %v617 = vadd.f32 %v427, %v585
        %v618 = vadd.f32 %v428, %v586
        %v619 = vadd.f32 %v429, %v587
        %v620 = vadd.f32 %v430, %v588
        %v621 = vadd.f32 %v431, %v589
        %v622 = vadd.f32 %v432, %v590
        %v623 = vadd.f32 %v433, %v591
        %v624 = vadd.f32 %v434, %v592
        %v625 = vadd.f32 %v435, %v593
        %v626 = vadd.f32 %v436, %v594
        %v627 = vadd.f32 %v437, %v595
        %v628 = vadd.f32 %v438, %v596
        %v629 = vadd.f32 %v439, %v597
        %v630 = vadd.f32 %v440, %v598
        %v631 = vadd.f32 %v441, %v599
        %v632 = vadd.f32 %v442, %v600
        %v633 = vadd.f32 %v443, %v601
        %v634 = vadd.f32 %v444, %v602
        %v635 = vadd.f32 %v445, %v603
        %v636 = vadd.f32 %v446, %v604
        %v637 = vadd.f32 %v447, %v605
        %v638 = vpack.c.bf16 %v607, %v606
        %v639 = vpack.c.bf16 %v609, %v608
        %v640 = vpack.c.bf16 %v611, %v610
        %v641 = vpack.c.bf16 %v613, %v612
        %v642 = vpack.c.bf16 %v615, %v614
        %v643 = vpack.c.bf16 %v617, %v616
        %v644 = vpack.c.bf16 %v619, %v618
        %v645 = vpack.c.bf16 %v621, %v620
        %v646 = vpack.c.bf16 %v623, %v622
        %v647 = vpack.c.bf16 %v625, %v624
        %v648 = vpack.c.bf16 %v627, %v626
        %v649 = vpack.c.bf16 %v629, %v628
        %v650 = vpack.c.bf16 %v631, %v630
        %v651 = vpack.c.bf16 %v633, %v632
        %v652 = vpack.c.bf16 %v635, %v634
        %v653 = vpack.c.bf16 %v637, %v636
        %v654 = vld [vmem:[#allocation7] sm:$0xf]
        %v655 = vld [vmem:[#allocation7 + $0x4] sm:$0xf]
        %v656 = vld [vmem:[#allocation7 + $0x8] sm:$0xf]
        %v657 = vld [vmem:[#allocation7 + $0xc] sm:$0xf]
        %v658 = vld [vmem:[#allocation7 + $0x10] sm:$0xf]
        %v659 = vld [vmem:[#allocation7 + $0x14] sm:$0xf]
        %v660 = vld [vmem:[#allocation7 + $0x18] sm:$0xf]
        %v661 = vld [vmem:[#allocation7 + $0x1c] sm:$0xf]
        %v662 = vld [vmem:[#allocation7 + $0x20] sm:$0xf]
        %v663 = vld [vmem:[#allocation7 + $0x24] sm:$0xf]
        %v664 = vld [vmem:[#allocation7 + $0x28] sm:$0xf]
        %v665 = vld [vmem:[#allocation7 + $0x2c] sm:$0xf]
        %v666 = vld [vmem:[#allocation7 + $0x30] sm:$0xf]
        %v667 = vld [vmem:[#allocation7 + $0x34] sm:$0xf]
        %v668 = vld [vmem:[#allocation7 + $0x38] sm:$0xf]
        %v669 = vld [vmem:[#allocation7 + $0x3c] sm:$0xf]
        %v686 = vunpack.c.l.b16 %v654
        %v687 = vunpack.c.l.b16 %v655
        %v688 = vunpack.c.l.b16 %v656
        %v689 = vunpack.c.l.b16 %v657
        %v690 = vunpack.c.l.b16 %v658
        %v691 = vunpack.c.l.b16 %v659
        %v692 = vunpack.c.l.b16 %v660
        %v693 = vunpack.c.l.b16 %v661
        %v694 = vunpack.c.l.b16 %v662
        %v695 = vunpack.c.l.b16 %v663
        %v696 = vunpack.c.l.b16 %v664
        %v697 = vunpack.c.l.b16 %v665
        %v698 = vunpack.c.l.b16 %v666
        %v699 = vunpack.c.l.b16 %v667
        %v700 = vunpack.c.l.b16 %v668
        %v701 = vunpack.c.l.b16 %v669
        %v702 = vpack.c.b16 %v687, %v686
        %v703 = vpack.c.b16 %v689, %v688
        %v704 = vpack.c.b16 %v691, %v690
        %v705 = vpack.c.b16 %v693, %v692
        %v706 = vpack.c.b16 %v695, %v694
        %v707 = vpack.c.b16 %v697, %v696
        %v708 = vpack.c.b16 %v699, %v698
        %v709 = vpack.c.b16 %v701, %v700
        %718 = vmatprep.subr.bf16.mxu0 0
        %719 = vmatpush1.bf16.msra.mxu0 %v702
        %720 = vmatprep.subr.bf16.mxu0 0
        %721 = vmatpush1.bf16.msra.mxu0 %v703
        %722 = vmatprep.subr.bf16.mxu0 0
        %723 = vmatpush1.bf16.msra.mxu0 %v704
        %724 = vmatprep.subr.bf16.mxu0 0
        %725 = vmatpush1.bf16.msra.mxu0 %v705
        %726 = vmatprep.subr.bf16.mxu0 0
        %727 = vmatpush1.bf16.msra.mxu0 %v706
        %728 = vmatprep.subr.bf16.mxu0 0
        %729 = vmatpush1.bf16.msra.mxu0 %v707
        %730 = vmatprep.subr.bf16.mxu0 0
        %731 = vmatpush1.bf16.msra.mxu0 %v708
        %732 = vmatprep.subr.bf16.mxu0 0
        %733 = vmatpush1.bf16.msra.mxu0 %v709
        %734 = vmatprep.subr.bf16.mxu0 0
        %735 = vmatpush1.bf16.msra.mxu0 0
        %736 = vmatprep.subr.bf16.mxu0 0
        %737 = vmatpush1.bf16.msra.mxu0 0
        %738 = vmatprep.subr.bf16.mxu0 0
        %739 = vmatpush1.bf16.msra.mxu0 0
        %740 = vmatprep.subr.bf16.mxu0 0
        %741 = vmatpush1.bf16.msra.mxu0 0
        %742 = vmatprep.subr.bf16.mxu0 0
        %743 = vmatpush1.bf16.msra.mxu0 0
        %744 = vmatprep.subr.bf16.mxu0 0
        %745 = vmatpush1.bf16.msra.mxu0 0
        %746 = vmatprep.subr.bf16.mxu0 0
        %747 = vmatpush1.bf16.msra.mxu0 0
        %748 = vmatprep.subr.bf16.mxu0 0
        %749 = vmatpush1.bf16.msra.mxu0 0
        %750 = vmatprep.mubr.bf16.mxu0 0
        %751 = vmatmul.mubr.bf16.gmra.mrb[0].mxu0 %v552
        %v752 = vpop.f32.mrb[0].mxu0
        %v753 = vadd.f32 0.0, %v752
        %v754 = vpop.f32.mrb[0].mxu0
        %v755 = vpop.f32.mrb[0].mxu0
        %v756 = vadd.f32 0.0, %v755
        %v757 = vpop.f32.mrb[0].mxu0
        %758 = vmatprep.mubr.bf16.mxu0 0
        %759 = vmatmul.mubr.bf16.gmra.mrb[0].mxu0 %v553
        %v760 = vpop.f32.mrb[0].mxu0
        %v761 = vadd.f32 0.0, %v760
        %v762 = vpop.f32.mrb[0].mxu0
        %v763 = vpop.f32.mrb[0].mxu0
        %v764 = vadd.f32 0.0, %v763
        %v765 = vpop.f32.mrb[0].mxu0
        %766 = vmatprep.mubr.bf16.mxu0 0
        %767 = vmatmul.mubr.bf16.gmra.mrb[0].mxu0 %v554
        %v768 = vpop.f32.mrb[0].mxu0
        %v769 = vadd.f32 0.0, %v768
        %v770 = vpop.f32.mrb[0].mxu0
        %v771 = vpop.f32.mrb[0].mxu0
        %v772 = vadd.f32 0.0, %v771
        %v773 = vpop.f32.mrb[0].mxu0
        %774 = vmatprep.mubr.bf16.mxu0 0
        %775 = vmatmul.mubr.bf16.gmra.mrb[0].mxu0 %v555
        %v776 = vpop.f32.mrb[0].mxu0
        %v777 = vadd.f32 0.0, %v776
        %v778 = vpop.f32.mrb[0].mxu0
        %v779 = vpop.f32.mrb[0].mxu0
        %v780 = vadd.f32 0.0, %v779
        %v781 = vpop.f32.mrb[0].mxu0
        %782 = vmatprep.mubr.bf16.mxu0 0
        %783 = vmatmul.mubr.bf16.gmra.mrb[0].mxu0 %v556
        %v784 = vpop.f32.mrb[0].mxu0
        %v785 = vadd.f32 0.0, %v784
        %v786 = vpop.f32.mrb[0].mxu0
        %v787 = vpop.f32.mrb[0].mxu0
        %v788 = vadd.f32 0.0, %v787
        %v789 = vpop.f32.mrb[0].mxu0
        %790 = vmatprep.mubr.bf16.mxu0 0
        %791 = vmatmul.mubr.bf16.gmra.mrb[0].mxu0 %v557
        %v792 = vpop.f32.mrb[0].mxu0
        %v793 = vadd.f32 0.0, %v792
        %v794 = vpop.f32.mrb[0].mxu0
        %v795 = vpop.f32.mrb[0].mxu0
        %v796 = vadd.f32 0.0, %v795
        %v797 = vpop.f32.mrb[0].mxu0
        %798 = vmatprep.mubr.bf16.mxu0 0
        %799 = vmatmul.mubr.bf16.gmra.mrb[0].mxu0 %v558
        %v800 = vpop.f32.mrb[0].mxu0
        %v801 = vadd.f32 0.0, %v800
        %v802 = vpop.f32.mrb[0].mxu0
        %v803 = vpop.f32.mrb[0].mxu0
        %v804 = vadd.f32 0.0, %v803
        %v805 = vpop.f32.mrb[0].mxu0
        %806 = vmatprep.mubr.bf16.mxu0 0
        %807 = vmatmul.mubr.bf16.gmra.mrb[0].mxu0 %v559
        %v808 = vpop.f32.mrb[0].mxu0
        %v809 = vadd.f32 0.0, %v808
        %v810 = vpop.f32.mrb[0].mxu0
        %v811 = vpop.f32.mrb[0].mxu0
        %v812 = vadd.f32 0.0, %v811
        %v813 = vpop.f32.mrb[0].mxu0
        %814 = vmatprep.mubr.bf16.mxu0 0
        %815 = vmatmul.mubr.bf16.gmra.mrb[0].mxu0 %v560
        %v816 = vpop.f32.mrb[0].mxu0
        %v817 = vadd.f32 0.0, %v816
        %v818 = vpop.f32.mrb[0].mxu0
        %v819 = vpop.f32.mrb[0].mxu0
        %v820 = vadd.f32 0.0, %v819
        %v821 = vpop.f32.mrb[0].mxu0
        %822 = vmatprep.mubr.bf16.mxu0 0
        %823 = vmatmul.mubr.bf16.gmra.mrb[0].mxu0 %v561
        %v824 = vpop.f32.mrb[0].mxu0
        %v825 = vadd.f32 0.0, %v824
        %v826 = vpop.f32.mrb[0].mxu0
        %v827 = vpop.f32.mrb[0].mxu0
        %v828 = vadd.f32 0.0, %v827
        %v829 = vpop.f32.mrb[0].mxu0
        %830 = vmatprep.mubr.bf16.mxu0 0
        %831 = vmatmul.mubr.bf16.gmra.mrb[0].mxu0 %v562
        %v832 = vpop.f32.mrb[0].mxu0
        %v833 = vadd.f32 0.0, %v832
        %v834 = vpop.f32.mrb[0].mxu0
        %v835 = vpop.f32.mrb[0].mxu0
        %v836 = vadd.f32 0.0, %v835
        %v837 = vpop.f32.mrb[0].mxu0
        %838 = vmatprep.mubr.bf16.mxu0 0
        %839 = vmatmul.mubr.bf16.gmra.mrb[0].mxu0 %v563
        %v840 = vpop.f32.mrb[0].mxu0
        %v841 = vadd.f32 0.0, %v840
        %v842 = vpop.f32.mrb[0].mxu0
        %v843 = vpop.f32.mrb[0].mxu0
        %v844 = vadd.f32 0.0, %v843
        %v845 = vpop.f32.mrb[0].mxu0
        %846 = vmatprep.mubr.bf16.mxu0 0
        %847 = vmatmul.mubr.bf16.gmra.mrb[0].mxu0 %v564
        %v848 = vpop.f32.mrb[0].mxu0
        %v849 = vadd.f32 0.0, %v848
        %v850 = vpop.f32.mrb[0].mxu0
        %v851 = vpop.f32.mrb[0].mxu0
        %v852 = vadd.f32 0.0, %v851
        %v853 = vpop.f32.mrb[0].mxu0
        %854 = vmatprep.mubr.bf16.mxu0 0
        %855 = vmatmul.mubr.bf16.gmra.mrb[0].mxu0 %v565
        %v856 = vpop.f32.mrb[0].mxu0
        %v857 = vadd.f32 0.0, %v856
        %v858 = vpop.f32.mrb[0].mxu0
        %v859 = vpop.f32.mrb[0].mxu0
        %v860 = vadd.f32 0.0, %v859
        %v861 = vpop.f32.mrb[0].mxu0
        %862 = vmatprep.mubr.bf16.mxu0 0
        %863 = vmatmul.mubr.bf16.gmra.mrb[0].mxu0 %v566
        %v864 = vpop.f32.mrb[0].mxu0
        %v865 = vadd.f32 0.0, %v864
        %v866 = vpop.f32.mrb[0].mxu0
        %v867 = vpop.f32.mrb[0].mxu0
        %v868 = vadd.f32 0.0, %v867
        %v869 = vpop.f32.mrb[0].mxu0
        %870 = vmatprep.mubr.bf16.mxu0 0
        %871 = vmatmul.mubr.bf16.gmra.mrb[0].mxu0 %v567
        %v872 = vpop.f32.mrb[0].mxu0
        %v873 = vadd.f32 0.0, %v872
        %v874 = vpop.f32.mrb[0].mxu0
        %v875 = vpop.f32.mrb[0].mxu0
        %v876 = vadd.f32 0.0, %v875
        %v877 = vpop.f32.mrb[0].mxu0
        %878 = vdwg.mxu0
        %v879 = vmax.f32 %v753, 0.0
        %v880 = vmax.f32 %v756, 0.0
        %v881 = vmax.f32 %v761, 0.0
        %v882 = vmax.f32 %v764, 0.0
        %v883 = vmax.f32 %v769, 0.0
        %v884 = vmax.f32 %v772, 0.0
        %v885 = vmax.f32 %v777, 0.0
        %v886 = vmax.f32 %v780, 0.0
        %v887 = vmax.f32 %v785, 0.0
        %v888 = vmax.f32 %v788, 0.0
        %v889 = vmax.f32 %v793, 0.0
        %v890 = vmax.f32 %v796, 0.0
        %v891 = vmax.f32 %v801, 0.0
        %v892 = vmax.f32 %v804, 0.0
        %v893 = vmax.f32 %v809, 0.0
        %v894 = vmax.f32 %v812, 0.0
        %v895 = vmax.f32 %v817, 0.0
        %v896 = vmax.f32 %v820, 0.0
        %v897 = vmax.f32 %v825, 0.0
        %v898 = vmax.f32 %v828, 0.0
        %v899 = vmax.f32 %v833, 0.0
        %v900 = vmax.f32 %v836, 0.0
        %v901 = vmax.f32 %v841, 0.0
        %v902 = vmax.f32 %v844, 0.0
        %v903 = vmax.f32 %v849, 0.0
        %v904 = vmax.f32 %v852, 0.0
        %v905 = vmax.f32 %v857, 0.0
        %v906 = vmax.f32 %v860, 0.0
        %v907 = vmax.f32 %v865, 0.0
        %v908 = vmax.f32 %v868, 0.0
        %v909 = vmax.f32 %v873, 0.0
        %v910 = vmax.f32 %v876, 0.0
        %v911 = vmul.f32 %v879, %v879
        %v912 = vmul.f32 %v880, %v880
        %v913 = vmul.f32 %v881, %v881
        %v914 = vmul.f32 %v882, %v882
        %v915 = vmul.f32 %v883, %v883
        %v916 = vmul.f32 %v884, %v884
        %v917 = vmul.f32 %v885, %v885
        %v918 = vmul.f32 %v886, %v886
        %v919 = vmul.f32 %v887, %v887
        %v920 = vmul.f32 %v888, %v888
        %v921 = vmul.f32 %v889, %v889
        %v922 = vmul.f32 %v890, %v890
        %v923 = vmul.f32 %v891, %v891
        %v924 = vmul.f32 %v892, %v892
        %v925 = vmul.f32 %v893, %v893
        %v926 = vmul.f32 %v894, %v894
        %v927 = vmul.f32 %v895, %v895
        %v928 = vmul.f32 %v896, %v896
        %v929 = vmul.f32 %v897, %v897
        %v930 = vmul.f32 %v898, %v898
        %v931 = vmul.f32 %v899, %v899
        %v932 = vmul.f32 %v900, %v900
        %v933 = vmul.f32 %v901, %v901
        %v934 = vmul.f32 %v902, %v902
        %v935 = vmul.f32 %v903, %v903
        %v936 = vmul.f32 %v904, %v904
        %v937 = vmul.f32 %v905, %v905
        %v938 = vmul.f32 %v906, %v906
        %v939 = vmul.f32 %v907, %v907
        %v940 = vmul.f32 %v908, %v908
        %v941 = vmul.f32 %v909, %v909
        %v942 = vmul.f32 %v910, %v910
        %v943 = vpack.c.bf16 %v912, %v911
        %v944 = vpack.c.bf16 %v914, %v913
        %v945 = vpack.c.bf16 %v916, %v915
        %v946 = vpack.c.bf16 %v918, %v917
        %v947 = vpack.c.bf16 %v920, %v919
        %v948 = vpack.c.bf16 %v922, %v921
        %v949 = vpack.c.bf16 %v924, %v923
        %v950 = vpack.c.bf16 %v926, %v925
        %v951 = vpack.c.bf16 %v928, %v927
        %v952 = vpack.c.bf16 %v930, %v929
        %v953 = vpack.c.bf16 %v932, %v931
        %v954 = vpack.c.bf16 %v934, %v933
        %v955 = vpack.c.bf16 %v936, %v935
        %v956 = vpack.c.bf16 %v938, %v937
        %v957 = vpack.c.bf16 %v940, %v939
        %v958 = vpack.c.bf16 %v942, %v941
        %v959 = vld [vmem:[#allocation10] sm:$0xf]
        %v960 = vld [vmem:[#allocation10 + $0x4] sm:$0xf]
        %v961 = vld [vmem:[#allocation10 + $0x8] sm:$0xf]
        %v962 = vld [vmem:[#allocation10 + $0xc] sm:$0xf]
        %v963 = vld [vmem:[#allocation10 + $0x10] sm:$0xf]
        %v964 = vld [vmem:[#allocation10 + $0x14] sm:$0xf]
        %v965 = vld [vmem:[#allocation10 + $0x18] sm:$0xf]
        %v966 = vld [vmem:[#allocation10 + $0x1c] sm:$0xf]
        %v967 = vld [vmem:[#allocation10 + $0x20] sm:$0xf]
        %v968 = vld [vmem:[#allocation10 + $0x24] sm:$0xf]
        %v969 = vld [vmem:[#allocation10 + $0x28] sm:$0xf]
        %v970 = vld [vmem:[#allocation10 + $0x2c] sm:$0xf]
        %v971 = vld [vmem:[#allocation10 + $0x30] sm:$0xf]
        %v972 = vld [vmem:[#allocation10 + $0x34] sm:$0xf]
        %v973 = vld [vmem:[#allocation10 + $0x38] sm:$0xf]
        %v974 = vld [vmem:[#allocation10 + $0x3c] sm:$0xf]
        %v991 = vunpack.c.l.b16 %v959
        %v992 = vunpack.c.l.b16 %v960
        %v993 = vunpack.c.l.b16 %v961
        %v994 = vunpack.c.l.b16 %v962
        %v995 = vunpack.c.l.b16 %v963
        %v996 = vunpack.c.l.b16 %v964
        %v997 = vunpack.c.l.b16 %v965
        %v998 = vunpack.c.l.b16 %v966
        %v999 = vunpack.c.l.b16 %v967
        %v1000 = vunpack.c.l.b16 %v968
        %v1001 = vunpack.c.l.b16 %v969
        %v1002 = vunpack.c.l.b16 %v970
        %v1003 = vunpack.c.l.b16 %v971
        %v1004 = vunpack.c.l.b16 %v972
        %v1005 = vunpack.c.l.b16 %v973
        %v1006 = vunpack.c.l.b16 %v974
        %v1007 = vpack.c.b16 %v992, %v991
        %v1008 = vpack.c.b16 %v994, %v993
        %v1009 = vpack.c.b16 %v996, %v995
        %v1010 = vpack.c.b16 %v998, %v997
        %v1011 = vpack.c.b16 %v1000, %v999
        %v1012 = vpack.c.b16 %v1002, %v1001
        %v1013 = vpack.c.b16 %v1004, %v1003
        %v1014 = vpack.c.b16 %v1006, %v1005
        %1023 = vmatprep.subr.bf16.mxu0 0
        %1024 = vmatpush1.bf16.msra.mxu0 %v1007
        %1025 = vmatprep.subr.bf16.mxu0 0
        %1026 = vmatpush1.bf16.msra.mxu0 %v1008
        %1027 = vmatprep.subr.bf16.mxu0 0
        %1028 = vmatpush1.bf16.msra.mxu0 %v1009
        %1029 = vmatprep.subr.bf16.mxu0 0
        %1030 = vmatpush1.bf16.msra.mxu0 %v1010
        %1031 = vmatprep.subr.bf16.mxu0 0
        %1032 = vmatpush1.bf16.msra.mxu0 %v1011
        %1033 = vmatprep.subr.bf16.mxu0 0
        %1034 = vmatpush1.bf16.msra.mxu0 %v1012
        %1035 = vmatprep.subr.bf16.mxu0 0
        %1036 = vmatpush1.bf16.msra.mxu0 %v1013
        %1037 = vmatprep.subr.bf16.mxu0 0
        %1038 = vmatpush1.bf16.msra.mxu0 %v1014
        %1039 = vmatprep.subr.bf16.mxu0 0
        %1040 = vmatpush1.bf16.msra.mxu0 0
        %1041 = vmatprep.subr.bf16.mxu0 0
        %1042 = vmatpush1.bf16.msra.mxu0 0
        %1043 = vmatprep.subr.bf16.mxu0 0
        %1044 = vmatpush1.bf16.msra.mxu0 0
        %1045 = vmatprep.subr.bf16.mxu0 0
        %1046 = vmatpush1.bf16.msra.mxu0 0
        %1047 = vmatprep.subr.bf16.mxu0 0
        %1048 = vmatpush1.bf16.msra.mxu0 0
        %1049 = vmatprep.subr.bf16.mxu0 0
        %1050 = vmatpush1.bf16.msra.mxu0 0
        %1051 = vmatprep.subr.bf16.mxu0 0
        %1052 = vmatpush1.bf16.msra.mxu0 0
        %1053 = vmatprep.subr.bf16.mxu0 0
        %1054 = vmatpush1.bf16.msra.mxu0 0
        %1055 = vmatprep.mubr.bf16.mxu0 0
        %1056 = vmatmul.mubr.bf16.gmra.mrb[0].mxu0 %v943
        %v1057 = vpop.f32.mrb[0].mxu0
        %v1058 = vadd.f32 0.0, %v1057
        %v1059 = vpop.f32.mrb[0].mxu0
        %v1060 = vpop.f32.mrb[0].mxu0
        %v1061 = vadd.f32 0.0, %v1060
        %v1062 = vpop.f32.mrb[0].mxu0
        %1063 = vmatprep.mubr.bf16.mxu0 0
        %1064 = vmatmul.mubr.bf16.gmra.mrb[0].mxu0 %v944
        %v1065 = vpop.f32.mrb[0].mxu0
        %v1066 = vadd.f32 0.0, %v1065
        %v1067 = vpop.f32.mrb[0].mxu0
        %v1068 = vpop.f32.mrb[0].mxu0
        %v1069 = vadd.f32 0.0, %v1068
        %v1070 = vpop.f32.mrb[0].mxu0
        %1071 = vmatprep.mubr.bf16.mxu0 0
        %1072 = vmatmul.mubr.bf16.gmra.mrb[0].mxu0 %v945
        %v1073 = vpop.f32.mrb[0].mxu0
        %v1074 = vadd.f32 0.0, %v1073
        %v1075 = vpop.f32.mrb[0].mxu0
        %v1076 = vpop.f32.mrb[0].mxu0
        %v1077 = vadd.f32 0.0, %v1076
        %v1078 = vpop.f32.mrb[0].mxu0
        %1079 = vmatprep.mubr.bf16.mxu0 0
        %1080 = vmatmul.mubr.bf16.gmra.mrb[0].mxu0 %v946
        %v1081 = vpop.f32.mrb[0].mxu0
        %v1082 = vadd.f32 0.0, %v1081
        %v1083 = vpop.f32.mrb[0].mxu0
        %v1084 = vpop.f32.mrb[0].mxu0
        %v1085 = vadd.f32 0.0, %v1084
        %v1086 = vpop.f32.mrb[0].mxu0
        %1087 = vmatprep.mubr.bf16.mxu0 0
        %1088 = vmatmul.mubr.bf16.gmra.mrb[0].mxu0 %v947
        %v1089 = vpop.f32.mrb[0].mxu0
        %v1090 = vadd.f32 0.0, %v1089
        %v1091 = vpop.f32.mrb[0].mxu0
        %v1092 = vpop.f32.mrb[0].mxu0
        %v1093 = vadd.f32 0.0, %v1092
        %v1094 = vpop.f32.mrb[0].mxu0
        %1095 = vmatprep.mubr.bf16.mxu0 0
        %1096 = vmatmul.mubr.bf16.gmra.mrb[0].mxu0 %v948
        %v1097 = vpop.f32.mrb[0].mxu0
        %v1098 = vadd.f32 0.0, %v1097
        %v1099 = vpop.f32.mrb[0].mxu0
        %v1100 = vpop.f32.mrb[0].mxu0
        %v1101 = vadd.f32 0.0, %v1100
        %v1102 = vpop.f32.mrb[0].mxu0
        %1103 = vmatprep.mubr.bf16.mxu0 0
        %1104 = vmatmul.mubr.bf16.gmra.mrb[0].mxu0 %v949
        %v1105 = vpop.f32.mrb[0].mxu0
        %v1106 = vadd.f32 0.0, %v1105
        %v1107 = vpop.f32.mrb[0].mxu0
        %v1108 = vpop.f32.mrb[0].mxu0
        %v1109 = vadd.f32 0.0, %v1108
        %v1110 = vpop.f32.mrb[0].mxu0
        %1111 = vmatprep.mubr.bf16.mxu0 0
        %1112 = vmatmul.mubr.bf16.gmra.mrb[0].mxu0 %v950
        %v1113 = vpop.f32.mrb[0].mxu0
        %v1114 = vadd.f32 0.0, %v1113
        %v1115 = vpop.f32.mrb[0].mxu0
        %v1116 = vpop.f32.mrb[0].mxu0
        %v1117 = vadd.f32 0.0, %v1116
        %v1118 = vpop.f32.mrb[0].mxu0
        %1119 = vmatprep.mubr.bf16.mxu0 0
        %1120 = vmatmul.mubr.bf16.gmra.mrb[0].mxu0 %v951
        %v1121 = vpop.f32.mrb[0].mxu0
        %v1122 = vadd.f32 0.0, %v1121
        %v1123 = vpop.f32.mrb[0].mxu0
        %v1124 = vpop.f32.mrb[0].mxu0
        %v1125 = vadd.f32 0.0, %v1124
        %v1126 = vpop.f32.mrb[0].mxu0
        %1127 = vmatprep.mubr.bf16.mxu0 0
        %1128 = vmatmul.mubr.bf16.gmra.mrb[0].mxu0 %v952
        %v1129 = vpop.f32.mrb[0].mxu0
        %v1130 = vadd.f32 0.0, %v1129
        %v1131 = vpop.f32.mrb[0].mxu0
        %v1132 = vpop.f32.mrb[0].mxu0
        %v1133 = vadd.f32 0.0, %v1132
        %v1134 = vpop.f32.mrb[0].mxu0
        %1135 = vmatprep.mubr.bf16.mxu0 0
        %1136 = vmatmul.mubr.bf16.gmra.mrb[0].mxu0 %v953
        %v1137 = vpop.f32.mrb[0].mxu0
        %v1138 = vadd.f32 0.0, %v1137
        %v1139 = vpop.f32.mrb[0].mxu0
        %v1140 = vpop.f32.mrb[0].mxu0
        %v1141 = vadd.f32 0.0, %v1140
        %v1142 = vpop.f32.mrb[0].mxu0
        %1143 = vmatprep.mubr.bf16.mxu0 0
        %1144 = vmatmul.mubr.bf16.gmra.mrb[0].mxu0 %v954
        %v1145 = vpop.f32.mrb[0].mxu0
        %v1146 = vadd.f32 0.0, %v1145
        %v1147 = vpop.f32.mrb[0].mxu0
        %v1148 = vpop.f32.mrb[0].mxu0
        %v1149 = vadd.f32 0.0, %v1148
        %v1150 = vpop.f32.mrb[0].mxu0
        %1151 = vmatprep.mubr.bf16.mxu0 0
        %1152 = vmatmul.mubr.bf16.gmra.mrb[0].mxu0 %v955
        %v1153 = vpop.f32.mrb[0].mxu0
        %v1154 = vadd.f32 0.0, %v1153
        %v1155 = vpop.f32.mrb[0].mxu0
        %v1156 = vpop.f32.mrb[0].mxu0
        %v1157 = vadd.f32 0.0, %v1156
        %v1158 = vpop.f32.mrb[0].mxu0
        %1159 = vmatprep.mubr.bf16.mxu0 0
        %1160 = vmatmul.mubr.bf16.gmra.mrb[0].mxu0 %v956
        %v1161 = vpop.f32.mrb[0].mxu0
        %v1162 = vadd.f32 0.0, %v1161
        %v1163 = vpop.f32.mrb[0].mxu0
        %v1164 = vpop.f32.mrb[0].mxu0
        %v1165 = vadd.f32 0.0, %v1164
        %v1166 = vpop.f32.mrb[0].mxu0
        %1167 = vmatprep.mubr.bf16.mxu0 0
        %1168 = vmatmul.mubr.bf16.gmra.mrb[0].mxu0 %v957
        %v1169 = vpop.f32.mrb[0].mxu0
        %v1170 = vadd.f32 0.0, %v1169
        %v1171 = vpop.f32.mrb[0].mxu0
        %v1172 = vpop.f32.mrb[0].mxu0
        %v1173 = vadd.f32 0.0, %v1172
        %v1174 = vpop.f32.mrb[0].mxu0
        %1175 = vmatprep.mubr.bf16.mxu0 0
        %1176 = vmatmul.mubr.bf16.gmra.mrb[0].mxu0 %v958
        %v1177 = vpop.f32.mrb[0].mxu0
        %v1178 = vadd.f32 0.0, %v1177
        %v1179 = vpop.f32.mrb[0].mxu0
        %v1180 = vpop.f32.mrb[0].mxu0
        %v1181 = vadd.f32 0.0, %v1180
        %v1182 = vpop.f32.mrb[0].mxu0
        %1183 = vdwg.mxu0
        %v1184 = vld [vmem:[#allocation8] sm:$0xf]
        %v1185 = vld [vmem:[#allocation8 + $0x4] sm:$0xf]
        %v1186 = vld [vmem:[#allocation8 + $0x8] sm:$0xf]
        %v1187 = vld [vmem:[#allocation8 + $0xc] sm:$0xf]
        %v1188 = vld [vmem:[#allocation8 + $0x10] sm:$0xf]
        %v1189 = vld [vmem:[#allocation8 + $0x14] sm:$0xf]
        %v1190 = vld [vmem:[#allocation8 + $0x18] sm:$0xf]
        %v1191 = vld [vmem:[#allocation8 + $0x1c] sm:$0xf]
        %v1192 = vld [vmem:[#allocation8 + $0x20] sm:$0xf]
        %v1193 = vld [vmem:[#allocation8 + $0x24] sm:$0xf]
        %v1194 = vld [vmem:[#allocation8 + $0x28] sm:$0xf]
        %v1195 = vld [vmem:[#allocation8 + $0x2c] sm:$0xf]
        %v1196 = vld [vmem:[#allocation8 + $0x30] sm:$0xf]
        %v1197 = vld [vmem:[#allocation8 + $0x34] sm:$0xf]
        %v1198 = vld [vmem:[#allocation8 + $0x38] sm:$0xf]
        %v1199 = vld [vmem:[#allocation8 + $0x3c] sm:$0xf]
        %v1216 = vunpack.c.l.b16 %v1184
        %v1217 = vunpack.c.l.b16 %v1185
        %v1218 = vunpack.c.l.b16 %v1186
        %v1219 = vunpack.c.l.b16 %v1187
        %v1220 = vunpack.c.l.b16 %v1188
        %v1221 = vunpack.c.l.b16 %v1189
        %v1222 = vunpack.c.l.b16 %v1190
        %v1223 = vunpack.c.l.b16 %v1191
        %v1224 = vunpack.c.l.b16 %v1192
        %v1225 = vunpack.c.l.b16 %v1193
        %v1226 = vunpack.c.l.b16 %v1194
        %v1227 = vunpack.c.l.b16 %v1195
        %v1228 = vunpack.c.l.b16 %v1196
        %v1229 = vunpack.c.l.b16 %v1197
        %v1230 = vunpack.c.l.b16 %v1198
        %v1231 = vunpack.c.l.b16 %v1199
        %v1232 = vpack.c.b16 %v1217, %v1216
        %v1233 = vpack.c.b16 %v1219, %v1218
        %v1234 = vpack.c.b16 %v1221, %v1220
        %v1235 = vpack.c.b16 %v1223, %v1222
        %v1236 = vpack.c.b16 %v1225, %v1224
        %v1237 = vpack.c.b16 %v1227, %v1226
        %v1238 = vpack.c.b16 %v1229, %v1228
        %v1239 = vpack.c.b16 %v1231, %v1230
        %1248 = vmatprep.subr.bf16.mxu0 0
        %1249 = vmatpush1.bf16.msra.mxu0 %v1232
        %1250 = vmatprep.subr.bf16.mxu0 0
        %1251 = vmatpush1.bf16.msra.mxu0 %v1233
        %1252 = vmatprep.subr.bf16.mxu0 0
        %1253 = vmatpush1.bf16.msra.mxu0 %v1234
        %1254 = vmatprep.subr.bf16.mxu0 0
        %1255 = vmatpush1.bf16.msra.mxu0 %v1235
        %1256 = vmatprep.subr.bf16.mxu0 0
        %1257 = vmatpush1.bf16.msra.mxu0 %v1236
        %1258 = vmatprep.subr.bf16.mxu0 0
        %1259 = vmatpush1.bf16.msra.mxu0 %v1237
        %1260 = vmatprep.subr.bf16.mxu0 0
        %1261 = vmatpush1.bf16.msra.mxu0 %v1238
        %1262 = vmatprep.subr.bf16.mxu0 0
        %1263 = vmatpush1.bf16.msra.mxu0 %v1239
        %1264 = vmatprep.subr.bf16.mxu0 0
        %1265 = vmatpush1.bf16.msra.mxu0 0
        %1266 = vmatprep.subr.bf16.mxu0 0
        %1267 = vmatpush1.bf16.msra.mxu0 0
        %1268 = vmatprep.subr.bf16.mxu0 0
        %1269 = vmatpush1.bf16.msra.mxu0 0
        %1270 = vmatprep.subr.bf16.mxu0 0
        %1271 = vmatpush1.bf16.msra.mxu0 0
        %1272 = vmatprep.subr.bf16.mxu0 0
        %1273 = vmatpush1.bf16.msra.mxu0 0
        %1274 = vmatprep.subr.bf16.mxu0 0
        %1275 = vmatpush1.bf16.msra.mxu0 0
        %1276 = vmatprep.subr.bf16.mxu0 0
        %1277 = vmatpush1.bf16.msra.mxu0 0
        %1278 = vmatprep.subr.bf16.mxu0 0
        %1279 = vmatpush1.bf16.msra.mxu0 0
        %1280 = vmatprep.mubr.bf16.mxu0 0
        %1281 = vmatmul.mubr.bf16.gmra.mrb[0].mxu0 %v638
        %v1282 = vpop.f32.mrb[0].mxu0
        %v1283 = vadd.f32 0.0, %v1282
        %v1284 = vpop.f32.mrb[0].mxu0
        %v1285 = vpop.f32.mrb[0].mxu0
        %v1286 = vadd.f32 0.0, %v1285
        %v1287 = vpop.f32.mrb[0].mxu0
        %1288 = vmatprep.mubr.bf16.mxu0 0
        %1289 = vmatmul.mubr.bf16.gmra.mrb[0].mxu0 %v639
        %v1290 = vpop.f32.mrb[0].mxu0
        %v1291 = vadd.f32 0.0, %v1290
        %v1292 = vpop.f32.mrb[0].mxu0
        %v1293 = vpop.f32.mrb[0].mxu0
        %v1294 = vadd.f32 0.0, %v1293
        %v1295 = vpop.f32.mrb[0].mxu0
        %1296 = vmatprep.mubr.bf16.mxu0 0
        %1297 = vmatmul.mubr.bf16.gmra.mrb[0].mxu0 %v640
        %v1298 = vpop.f32.mrb[0].mxu0
        %v1299 = vadd.f32 0.0, %v1298
        %v1300 = vpop.f32.mrb[0].mxu0
        %v1301 = vpop.f32.mrb[0].mxu0
        %v1302 = vadd.f32 0.0, %v1301
        %v1303 = vpop.f32.mrb[0].mxu0
        %1304 = vmatprep.mubr.bf16.mxu0 0
        %1305 = vmatmul.mubr.bf16.gmra.mrb[0].mxu0 %v641
        %v1306 = vpop.f32.mrb[0].mxu0
        %v1307 = vadd.f32 0.0, %v1306
        %v1308 = vpop.f32.mrb[0].mxu0
        %v1309 = vpop.f32.mrb[0].mxu0
        %v1310 = vadd.f32 0.0, %v1309
        %v1311 = vpop.f32.mrb[0].mxu0
        %1312 = vmatprep.mubr.bf16.mxu0 0
        %1313 = vmatmul.mubr.bf16.gmra.mrb[0].mxu0 %v642
        %v1314 = vpop.f32.mrb[0].mxu0
        %v1315 = vadd.f32 0.0, %v1314
        %v1316 = vpop.f32.mrb[0].mxu0
        %v1317 = vpop.f32.mrb[0].mxu0
        %v1318 = vadd.f32 0.0, %v1317
        %v1319 = vpop.f32.mrb[0].mxu0
        %1320 = vmatprep.mubr.bf16.mxu0 0
        %1321 = vmatmul.mubr.bf16.gmra.mrb[0].mxu0 %v643
        %v1322 = vpop.f32.mrb[0].mxu0
        %v1323 = vadd.f32 0.0, %v1322
        %v1324 = vpop.f32.mrb[0].mxu0
        %v1325 = vpop.f32.mrb[0].mxu0
        %v1326 = vadd.f32 0.0, %v1325
        %v1327 = vpop.f32.mrb[0].mxu0
        %1328 = vmatprep.mubr.bf16.mxu0 0
        %1329 = vmatmul.mubr.bf16.gmra.mrb[0].mxu0 %v644
        %v1330 = vpop.f32.mrb[0].mxu0
        %v1331 = vadd.f32 0.0, %v1330
        %v1332 = vpop.f32.mrb[0].mxu0
        %v1333 = vpop.f32.mrb[0].mxu0
        %v1334 = vadd.f32 0.0, %v1333
        %v1335 = vpop.f32.mrb[0].mxu0
        %1336 = vmatprep.mubr.bf16.mxu0 0
        %1337 = vmatmul.mubr.bf16.gmra.mrb[0].mxu0 %v645
        %v1338 = vpop.f32.mrb[0].mxu0
        %v1339 = vadd.f32 0.0, %v1338
        %v1340 = vpop.f32.mrb[0].mxu0
        %v1341 = vpop.f32.mrb[0].mxu0
        %v1342 = vadd.f32 0.0, %v1341
        %v1343 = vpop.f32.mrb[0].mxu0
        %1344 = vmatprep.mubr.bf16.mxu0 0
        %1345 = vmatmul.mubr.bf16.gmra.mrb[0].mxu0 %v646
        %v1346 = vpop.f32.mrb[0].mxu0
        %v1347 = vadd.f32 0.0, %v1346
        %v1348 = vpop.f32.mrb[0].mxu0
        %v1349 = vpop.f32.mrb[0].mxu0
        %v1350 = vadd.f32 0.0, %v1349
        %v1351 = vpop.f32.mrb[0].mxu0
        %1352 = vmatprep.mubr.bf16.mxu0 0
        %1353 = vmatmul.mubr.bf16.gmra.mrb[0].mxu0 %v647
        %v1354 = vpop.f32.mrb[0].mxu0
        %v1355 = vadd.f32 0.0, %v1354
        %v1356 = vpop.f32.mrb[0].mxu0
        %v1357 = vpop.f32.mrb[0].mxu0
        %v1358 = vadd.f32 0.0, %v1357
        %v1359 = vpop.f32.mrb[0].mxu0
        %1360 = vmatprep.mubr.bf16.mxu0 0
        %1361 = vmatmul.mubr.bf16.gmra.mrb[0].mxu0 %v648
        %v1362 = vpop.f32.mrb[0].mxu0
        %v1363 = vadd.f32 0.0, %v1362
        %v1364 = vpop.f32.mrb[0].mxu0
        %v1365 = vpop.f32.mrb[0].mxu0
        %v1366 = vadd.f32 0.0, %v1365
        %v1367 = vpop.f32.mrb[0].mxu0
        %1368 = vmatprep.mubr.bf16.mxu0 0
        %1369 = vmatmul.mubr.bf16.gmra.mrb[0].mxu0 %v649
        %v1370 = vpop.f32.mrb[0].mxu0
        %v1371 = vadd.f32 0.0, %v1370
        %v1372 = vpop.f32.mrb[0].mxu0
        %v1373 = vpop.f32.mrb[0].mxu0
        %v1374 = vadd.f32 0.0, %v1373
        %v1375 = vpop.f32.mrb[0].mxu0
        %1376 = vmatprep.mubr.bf16.mxu0 0
        %1377 = vmatmul.mubr.bf16.gmra.mrb[0].mxu0 %v650
        %v1378 = vpop.f32.mrb[0].mxu0
        %v1379 = vadd.f32 0.0, %v1378
        %v1380 = vpop.f32.mrb[0].mxu0
        %v1381 = vpop.f32.mrb[0].mxu0
        %v1382 = vadd.f32 0.0, %v1381
        %v1383 = vpop.f32.mrb[0].mxu0
        %1384 = vmatprep.mubr.bf16.mxu0 0
        %1385 = vmatmul.mubr.bf16.gmra.mrb[0].mxu0 %v651
        %v1386 = vpop.f32.mrb[0].mxu0
        %v1387 = vadd.f32 0.0, %v1386
        %v1388 = vpop.f32.mrb[0].mxu0
        %v1389 = vpop.f32.mrb[0].mxu0
        %v1390 = vadd.f32 0.0, %v1389
        %v1391 = vpop.f32.mrb[0].mxu0
        %1392 = vmatprep.mubr.bf16.mxu0 0
        %1393 = vmatmul.mubr.bf16.gmra.mrb[0].mxu0 %v652
        %v1394 = vpop.f32.mrb[0].mxu0
        %v1395 = vadd.f32 0.0, %v1394
        %v1396 = vpop.f32.mrb[0].mxu0
        %v1397 = vpop.f32.mrb[0].mxu0
        %v1398 = vadd.f32 0.0, %v1397
        %v1399 = vpop.f32.mrb[0].mxu0
        %1400 = vmatprep.mubr.bf16.mxu0 0
        %1401 = vmatmul.mubr.bf16.gmra.mrb[0].mxu0 %v653
        %v1402 = vpop.f32.mrb[0].mxu0
        %v1403 = vadd.f32 0.0, %v1402
        %v1404 = vpop.f32.mrb[0].mxu0
        %v1405 = vpop.f32.mrb[0].mxu0
        %v1406 = vadd.f32 0.0, %v1405
        %v1407 = vpop.f32.mrb[0].mxu0
        %1408 = vdwg.mxu0
        %v1409 = vxor.u32 %v1283, 2147483648
        %v1410 = vxor.u32 %v1286, 2147483648
        %v1411 = vxor.u32 %v1291, 2147483648
        %v1412 = vxor.u32 %v1294, 2147483648
        %v1413 = vxor.u32 %v1299, 2147483648
        %v1414 = vxor.u32 %v1302, 2147483648
        %v1415 = vxor.u32 %v1307, 2147483648
        %v1416 = vxor.u32 %v1310, 2147483648
        %v1417 = vxor.u32 %v1315, 2147483648
        %v1418 = vxor.u32 %v1318, 2147483648
        %v1419 = vxor.u32 %v1323, 2147483648
        %v1420 = vxor.u32 %v1326, 2147483648
        %v1421 = vxor.u32 %v1331, 2147483648
        %v1422 = vxor.u32 %v1334, 2147483648
        %v1423 = vxor.u32 %v1339, 2147483648
        %v1424 = vxor.u32 %v1342, 2147483648
        %v1425 = vxor.u32 %v1347, 2147483648
        %v1426 = vxor.u32 %v1350, 2147483648
        %v1427 = vxor.u32 %v1355, 2147483648
        %v1428 = vxor.u32 %v1358, 2147483648
        %v1429 = vxor.u32 %v1363, 2147483648
        %v1430 = vxor.u32 %v1366, 2147483648
        %v1431 = vxor.u32 %v1371, 2147483648
        %v1432 = vxor.u32 %v1374, 2147483648
        %v1433 = vxor.u32 %v1379, 2147483648
        %v1434 = vxor.u32 %v1382, 2147483648
        %v1435 = vxor.u32 %v1387, 2147483648
        %v1436 = vxor.u32 %v1390, 2147483648
        %v1437 = vxor.u32 %v1395, 2147483648
        %v1438 = vxor.u32 %v1398, 2147483648
        %v1439 = vxor.u32 %v1403, 2147483648
        %v1440 = vxor.u32 %v1406, 2147483648
        %v1441 = vmul.f32 %v1409, 1.442695
        %v1442 = vpow.pop %v1441
        %v1443 = vmul.f32 %v1410, 1.442695
        %v1444 = vpow.pop %v1443
        %v1445 = vmul.f32 %v1411, 1.442695
        %v1446 = vpow.pop %v1445
        %v1447 = vmul.f32 %v1412, 1.442695
        %v1448 = vpow.pop %v1447
        %v1449 = vmul.f32 %v1413, 1.442695
        %v1450 = vpow.pop %v1449
        %v1451 = vmul.f32 %v1414, 1.442695
        %v1452 = vpow.pop %v1451
        %v1453 = vmul.f32 %v1415, 1.442695
        %v1454 = vpow.pop %v1453
        %v1455 = vmul.f32 %v1416, 1.442695
        %v1456 = vpow.pop %v1455
        %v1457 = vmul.f32 %v1417, 1.442695
        %v1458 = vpow.pop %v1457
        %v1459 = vmul.f32 %v1418, 1.442695
        %v1460 = vpow.pop %v1459
        %v1461 = vmul.f32 %v1419, 1.442695
        %v1462 = vpow.pop %v1461
        %v1463 = vmul.f32 %v1420, 1.442695
        %v1464 = vpow.pop %v1463
        %v1465 = vmul.f32 %v1421, 1.442695
        %v1466 = vpow.pop %v1465
        %v1467 = vmul.f32 %v1422, 1.442695
        %v1468 = vpow.pop %v1467
        %v1469 = vmul.f32 %v1423, 1.442695
        %v1470 = vpow.pop %v1469
        %v1471 = vmul.f32 %v1424, 1.442695
        %v1472 = vpow.pop %v1471
        %v1473 = vmul.f32 %v1425, 1.442695
        %v1474 = vpow.pop %v1473
        %v1475 = vmul.f32 %v1426, 1.442695
        %v1476 = vpow.pop %v1475
        %v1477 = vmul.f32 %v1427, 1.442695
        %v1478 = vpow.pop %v1477
        %v1479 = vmul.f32 %v1428, 1.442695
        %v1480 = vpow.pop %v1479
        %v1481 = vmul.f32 %v1429, 1.442695
        %v1482 = vpow.pop %v1481
        %v1483 = vmul.f32 %v1430, 1.442695
        %v1484 = vpow.pop %v1483
        %v1485 = vmul.f32 %v1431, 1.442695
        %v1486 = vpow.pop %v1485
        %v1487 = vmul.f32 %v1432, 1.442695
        %v1488 = vpow.pop %v1487
        %v1489 = vmul.f32 %v1433, 1.442695
        %v1490 = vpow.pop %v1489
        %v1491 = vmul.f32 %v1434, 1.442695
        %v1492 = vpow.pop %v1491
        %v1493 = vmul.f32 %v1435, 1.442695
        %v1494 = vpow.pop %v1493
        %v1495 = vmul.f32 %v1436, 1.442695
        %v1496 = vpow.pop %v1495
        %v1497 = vmul.f32 %v1437, 1.442695
        %v1498 = vpow.pop %v1497
        %v1499 = vmul.f32 %v1438, 1.442695
        %v1500 = vpow.pop %v1499
        %v1501 = vmul.f32 %v1439, 1.442695
        %v1502 = vpow.pop %v1501
        %v1503 = vmul.f32 %v1440, 1.442695
        %v1504 = vpow.pop %v1503
        %v1505 = vadd.f32 %v1442, 1.0
        %v1506 = vadd.f32 %v1444, 1.0
        %v1507 = vadd.f32 %v1446, 1.0
        %v1508 = vadd.f32 %v1448, 1.0
        %v1509 = vadd.f32 %v1450, 1.0
        %v1510 = vadd.f32 %v1452, 1.0
        %v1511 = vadd.f32 %v1454, 1.0
        %v1512 = vadd.f32 %v1456, 1.0
        %v1513 = vadd.f32 %v1458, 1.0
        %v1514 = vadd.f32 %v1460, 1.0
        %v1515 = vadd.f32 %v1462, 1.0
        %v1516 = vadd.f32 %v1464, 1.0
        %v1517 = vadd.f32 %v1466, 1.0
        %v1518 = vadd.f32 %v1468, 1.0
        %v1519 = vadd.f32 %v1470, 1.0
        %v1520 = vadd.f32 %v1472, 1.0
        %v1521 = vadd.f32 %v1474, 1.0
        %v1522 = vadd.f32 %v1476, 1.0
        %v1523 = vadd.f32 %v1478, 1.0
        %v1524 = vadd.f32 %v1480, 1.0
        %v1525 = vadd.f32 %v1482, 1.0
        %v1526 = vadd.f32 %v1484, 1.0
        %v1527 = vadd.f32 %v1486, 1.0
        %v1528 = vadd.f32 %v1488, 1.0
        %v1529 = vadd.f32 %v1490, 1.0
        %v1530 = vadd.f32 %v1492, 1.0
        %v1531 = vadd.f32 %v1494, 1.0
        %v1532 = vadd.f32 %v1496, 1.0
        %v1533 = vadd.f32 %v1498, 1.0
        %v1534 = vadd.f32 %v1500, 1.0
        %v1535 = vadd.f32 %v1502, 1.0
        %v1536 = vadd.f32 %v1504, 1.0
        %v1537 = vrcp.pop %v1505
        %v1538 = vmul.f32 1.0, %v1537
        %v1539 = vrcp.pop %v1506
        %v1540 = vmul.f32 1.0, %v1539
        %v1541 = vrcp.pop %v1507
        %v1542 = vmul.f32 1.0, %v1541
        %v1543 = vrcp.pop %v1508
        %v1544 = vmul.f32 1.0, %v1543
        %v1545 = vrcp.pop %v1509
        %v1546 = vmul.f32 1.0, %v1545
        %v1547 = vrcp.pop %v1510
        %v1548 = vmul.f32 1.0, %v1547
        %v1549 = vrcp.pop %v1511
        %v1550 = vmul.f32 1.0, %v1549
        %v1551 = vrcp.pop %v1512
        %v1552 = vmul.f32 1.0, %v1551
        %v1553 = vrcp.pop %v1513
        %v1554 = vmul.f32 1.0, %v1553
        %v1555 = vrcp.pop %v1514
        %v1556 = vmul.f32 1.0, %v1555
        %v1557 = vrcp.pop %v1515
        %v1558 = vmul.f32 1.0, %v1557
        %v1559 = vrcp.pop %v1516
        %v1560 = vmul.f32 1.0, %v1559
        %v1561 = vrcp.pop %v1517
        %v1562 = vmul.f32 1.0, %v1561
        %v1563 = vrcp.pop %v1518
        %v1564 = vmul.f32 1.0, %v1563
        %v1565 = vrcp.pop %v1519
        %v1566 = vmul.f32 1.0, %v1565
        %v1567 = vrcp.pop %v1520
        %v1568 = vmul.f32 1.0, %v1567
        %v1569 = vrcp.pop %v1521
        %v1570 = vmul.f32 1.0, %v1569
        %v1571 = vrcp.pop %v1522
        %v1572 = vmul.f32 1.0, %v1571
        %v1573 = vrcp.pop %v1523
        %v1574 = vmul.f32 1.0, %v1573
        %v1575 = vrcp.pop %v1524
        %v1576 = vmul.f32 1.0, %v1575
        %v1577 = vrcp.pop %v1525
        %v1578 = vmul.f32 1.0, %v1577
        %v1579 = vrcp.pop %v1526
        %v1580 = vmul.f32 1.0, %v1579
        %v1581 = vrcp.pop %v1527
        %v1582 = vmul.f32 1.0, %v1581
        %v1583 = vrcp.pop %v1528
        %v1584 = vmul.f32 1.0, %v1583
        %v1585 = vrcp.pop %v1529
        %v1586 = vmul.f32 1.0, %v1585
        %v1587 = vrcp.pop %v1530
        %v1588 = vmul.f32 1.0, %v1587
        %v1589 = vrcp.pop %v1531
        %v1590 = vmul.f32 1.0, %v1589
        %v1591 = vrcp.pop %v1532
        %v1592 = vmul.f32 1.0, %v1591
        %v1593 = vrcp.pop %v1533
        %v1594 = vmul.f32 1.0, %v1593
        %v1595 = vrcp.pop %v1534
        %v1596 = vmul.f32 1.0, %v1595
        %v1597 = vrcp.pop %v1535
        %v1598 = vmul.f32 1.0, %v1597
        %v1599 = vrcp.pop %v1536
        %v1600 = vmul.f32 1.0, %v1599
        %v1601 = vmul.f32 %v1538, %v1058
        %v1602 = vmul.f32 %v1540, %v1061
        %v1603 = vmul.f32 %v1542, %v1066
        %v1604 = vmul.f32 %v1544, %v1069
        %v1605 = vmul.f32 %v1546, %v1074
        %v1606 = vmul.f32 %v1548, %v1077
        %v1607 = vmul.f32 %v1550, %v1082
        %v1608 = vmul.f32 %v1552, %v1085
        %v1609 = vmul.f32 %v1554, %v1090
        %v1610 = vmul.f32 %v1556, %v1093
        %v1611 = vmul.f32 %v1558, %v1098
        %v1612 = vmul.f32 %v1560, %v1101
        %v1613 = vmul.f32 %v1562, %v1106
        %v1614 = vmul.f32 %v1564, %v1109
        %v1615 = vmul.f32 %v1566, %v1114
        %v1616 = vmul.f32 %v1568, %v1117
        %v1617 = vmul.f32 %v1570, %v1122
        %v1618 = vmul.f32 %v1572, %v1125
        %v1619 = vmul.f32 %v1574, %v1130
        %v1620 = vmul.f32 %v1576, %v1133
        %v1621 = vmul.f32 %v1578, %v1138
        %v1622 = vmul.f32 %v1580, %v1141
        %v1623 = vmul.f32 %v1582, %v1146
        %v1624 = vmul.f32 %v1584, %v1149
        %v1625 = vmul.f32 %v1586, %v1154
        %v1626 = vmul.f32 %v1588, %v1157
        %v1627 = vmul.f32 %v1590, %v1162
        %v1628 = vmul.f32 %v1592, %v1165
        %v1629 = vmul.f32 %v1594, %v1170
        %v1630 = vmul.f32 %v1596, %v1173
        %v1631 = vmul.f32 %v1598, %v1178
        %v1632 = vmul.f32 %v1600, %v1181
        %1633 = vst [vmem:[%s379] sm:$0xff] %v1601
        %1634 = vst [vmem:[%s379 + $0x8] sm:$0xff] %v1602
        %1635 = vst [vmem:[%s379 + $0x10] sm:$0xff] %v1603
        %1636 = vst [vmem:[%s379 + $0x18] sm:$0xff] %v1604
        %1637 = vst [vmem:[%s379 + $0x20] sm:$0xff] %v1605
        %1638 = vst [vmem:[%s379 + $0x28] sm:$0xff] %v1606
        %1639 = vst [vmem:[%s379 + $0x30] sm:$0xff] %v1607
        %1640 = vst [vmem:[%s379 + $0x38] sm:$0xff] %v1608
        %1641 = vst [vmem:[%s379 + $0x40] sm:$0xff] %v1609
        %1642 = vst [vmem:[%s379 + $0x48] sm:$0xff] %v1610
        %1643 = vst [vmem:[%s379 + $0x50] sm:$0xff] %v1611
        %1644 = vst [vmem:[%s379 + $0x58] sm:$0xff] %v1612
        %1645 = vst [vmem:[%s379 + $0x60] sm:$0xff] %v1613
        %1646 = vst [vmem:[%s379 + $0x68] sm:$0xff] %v1614
        %1647 = vst [vmem:[%s379 + $0x70] sm:$0xff] %v1615
        %1648 = vst [vmem:[%s379 + $0x78] sm:$0xff] %v1616
        %1649 = vst [vmem:[%s379 + $0x80] sm:$0xff] %v1617
        %1650 = vst [vmem:[%s379 + $0x88] sm:$0xff] %v1618
        %1651 = vst [vmem:[%s379 + $0x90] sm:$0xff] %v1619
        %1652 = vst [vmem:[%s379 + $0x98] sm:$0xff] %v1620
        %1653 = vst [vmem:[%s379 + $0xa0] sm:$0xff] %v1621
        %1654 = vst [vmem:[%s379 + $0xa8] sm:$0xff] %v1622
        %1655 = vst [vmem:[%s379 + $0xb0] sm:$0xff] %v1623
        %1656 = vst [vmem:[%s379 + $0xb8] sm:$0xff] %v1624
        %1657 = vst [vmem:[%s379 + $0xc0] sm:$0xff] %v1625
        %1658 = vst [vmem:[%s379 + $0xc8] sm:$0xff] %v1626
        %1659 = vst [vmem:[%s379 + $0xd0] sm:$0xff] %v1627
        %1660 = vst [vmem:[%s379 + $0xd8] sm:$0xff] %v1628
        %1661 = vst [vmem:[%s379 + $0xe0] sm:$0xff] %v1629
        %1662 = vst [vmem:[%s379 + $0xe8] sm:$0xff] %v1630
        %1663 = vst [vmem:[%s379 + $0xf0] sm:$0xff] %v1631
        %1664 = vst [vmem:[%s379 + $0xf8] sm:$0xff] %v1632
        %s1665 = sand.u32 %s193, 1
        %s1666 = scalar_lea.sflag [#allocation4], %s1665
        %s1667 = sand.u32 %s193, 1
        %s1668 = smul.addr %s1667, 256
        %s1669 = scalar_lea.vmem [#allocation11], %s1668
        // Predicated region
        $region69: #{tpu_custom_call.1} parent=47 // pred_check
          %p1670 = pneg %p203
        $region70: #{tpu_custom_call.1} parent=47 // pred_check_branch
          %1672 = sbr.rel (%p1670) target = $region72
        $region71: #{tpu_custom_call.1} parent=47 // pred_region
          %s1673 = smul.u32 32, %s28
          %s1675 = ssub.s32 4096, 4096
          %1676 = vsyncadd %s1666, %s1675
          %s1677 = smul.addr %s1673, 128
          %s1678 = scalar_lea.hbm %s7, %s1677
          %s1679 = sshll.u32 %s1669, 4
          %s1680 = int_to_ptr.vmem [resolvable:$true] %s1679
          %1685 = dma.vmem_to_hbm [thread:$0]  %s1680, 4096, %s1678, %s1666, 128, 128, 8
        $region72: #{tpu_custom_call.1} parent=47 // pred_fallthru
          _
      $region48: #{tpu_custom_call.1} parent=5 // pred_fallthru
        _
      %p1686 = scmp.le.s32.totalorder 2, %s23
      // Predicated region
      $region73: #{tpu_custom_call.1} parent=5 // pred_check
        %p1687 = pneg %p1686
      $region74: #{tpu_custom_call.1} parent=5 // pred_check_branch
        %1689 = sbr.rel (%p1687) target = $region76
      $region75: #{tpu_custom_call.1} parent=5 // pred_region
        %s1690 = ssub.s32 %s23, 2
        // Predicated region
        $region77: #{tpu_custom_call.1} parent=75 // pred_check
          %p1691 = pneg %p209
        $region78: #{tpu_custom_call.1} parent=75 // pred_check_branch
          %1693 = sbr.rel (%p1691) target = $region80
        $region79: #{tpu_custom_call.1} parent=75 // pred_region
          %s1694 = sand.u32 %s194, 1
          %s1695 = scalar_lea.sflag [#allocation4], %s1694
          %s1696 = sand.u32 %s194, 1
          %s1697 = smul.addr %s1696, 256
          %s1698 = scalar_lea.vmem [#allocation11], %s1697
          %1699 = dma.done %s1695, 4096
        $region80: #{tpu_custom_call.1} parent=75 // pred_fallthru
          _
      $region76: #{tpu_custom_call.1} parent=5 // pred_fallthru
        _
    $region6: #{tpu_custom_call.1} parent=1 // loop_footer
      %s27 = sadd.s32 1, %s23
    $region7: #{tpu_custom_call.1} parent=1 // loop_footer_branch
      %22 = sbr.rel target = $region3
    $region8: #{tpu_custom_call.1} parent=1 // loop_exit
      _
    %1700 = vsyncpa [#allocation3], 1
    %s1701 = scalar_lea.sflag [#allocation3], 1
    %1702 = vsyncpa %s1701, 1
    %1703 = vsyncpa [#allocation6], 1
    %s1704 = scalar_lea.sflag [#allocation6], 1
    %1705 = vsyncpa %s1704, 1
    %1706 = vsyncpa [#allocation9], 1
    %1707 = vsyncpa [#allocation4], 1
    %s1708 = scalar_lea.sflag [#allocation4], 1
    %1709 = vsyncpa %s1708, 1

</llo_original>
